<compile_context>
chip_gen: v6e
topology: v6e:2x2x1
jax: 0.10.0
libtpu: 0.0.40
codegen_flags: <defaults>
</compile_context>

<pallas_src>
import functools

import jax
import jax.numpy as jnp
from jax.experimental import pallas as pl
from jax.experimental.pallas import tpu as pltpu


# ----------------------------------------------------------------------------
# Positional encoding (parameter-free, built once in plain JAX — glue only)
# ----------------------------------------------------------------------------
def make_positional_encoding(d_model, max_len=401):
    position = jnp.arange(max_len, dtype=jnp.float32)[:, None]          # (L, 1)
    div_term = jnp.exp(
        jnp.arange(0, d_model, 2, dtype=jnp.float32)
        * (-jnp.log(jnp.float32(10000.0)) / d_model)
    )                                                                    # (d/2,)
    pe = jnp.zeros((max_len, d_model), dtype=jnp.float32)
    pe = pe.at[:, 0::2].set(jnp.sin(position * div_term))
    pe = pe.at[:, 1::2].set(jnp.cos(position * div_term))
    return pe                                                            # (max_len, d_model)


# ----------------------------------------------------------------------------
# Pallas kernel: one block of `batch_block` batch elements per grid step
# ----------------------------------------------------------------------------
def _mha_kernel(q_ref, k_ref, v_ref,
                wq_ref, wk_ref, wv_ref, wout_ref,
                addq_ref, addk_ref, addv_ref,
                bout_ref, mask_ref, gate_ref, o_ref,
                *, batch_block, num_heads, head_dim, lq, lk, compute_dtype):
    f32 = jnp.float32
    H = num_heads
    Nq = batch_block * lq
    Nk = batch_block * lk

    qf = q_ref[...].astype(compute_dtype)        # (Nq, Din)
    kf = k_ref[...].astype(compute_dtype)        # (Nk, Din)
    vf = v_ref[...].astype(compute_dtype)        # (Nk, Din)
    wq = wq_ref[...].astype(compute_dtype)       # (H, Din, hd)
    wk = wk_ref[...].astype(compute_dtype)       # (H, Din, hd)
    wv = wv_ref[...].astype(compute_dtype)       # (H, Din, hd)
    wout = wout_ref[...].astype(compute_dtype)   # (H, hd, Din)

    din = qf.shape[-1]

    # Heads-batched projections over the whole (batch-flattened) block.
    # Broadcasting the activations over the head axis keeps the data layout
    # (H, N, hd) throughout — no lane slicing / concatenation anywhere.
    qb = jnp.broadcast_to(qf[None], (H, Nq, din))
    kb = jnp.broadcast_to(kf[None], (H, Nk, din))
    vb = jnp.broadcast_to(vf[None], (H, Nk, din))

    # add*_ref already contains (linear bias + positional projection), per head,
    # tiled over the batch block.
    qh = jnp.einsum('hnd,hde->hne', qb, wq, preferred_element_type=f32) + addq_ref[...]
    kh = jnp.einsum('hnd,hde->hne', kb, wk, preferred_element_type=f32) + addk_ref[...]
    vh = jnp.einsum('hnd,hde->hne', vb, wv, preferred_element_type=f32) + addv_ref[...]

    mask = mask_ref[...]            # (Lq, Lk) additive mask
    bout = bout_ref[...]            # (1, Din)
    gate = gate_ref[0, 0]           # scalar, lives in SMEM

    scale = f32(1.0) / jnp.sqrt(f32(head_dim))

    # Static (small) loop over the batch elements inside the block: attention
    # must not mix batch elements, so scores are computed per element with a
    # heads-batched einsum.  Row slices below are sublane-aligned (multiples of
    # lq / lk), so they are cheap.
    for b in range(batch_block):
        qh_b = qh[:, b * lq:(b + 1) * lq, :]     # (H, Lq, hd)
        kh_b = kh[:, b * lk:(b + 1) * lk, :]     # (H, Lk, hd)
        vh_b = vh[:, b * lk:(b + 1) * lk, :]     # (H, Lk, hd)

        s = jnp.einsum('hqe,hke->hqk',
                       qh_b.astype(compute_dtype), kh_b.astype(compute_dtype),
                       preferred_element_type=f32) * scale               # (H, Lq, Lk)
        s = s + mask[None]
        s = s - jnp.max(s, axis=-1, keepdims=True)
        p = jnp.exp(s)
        p = p * pl.reciprocal(jnp.sum(p, axis=-1, keepdims=True), approx=True)

        attn = jnp.einsum('hqk,hke->hqe',
                          p.astype(compute_dtype), vh_b.astype(compute_dtype),
                          preferred_element_type=f32)                    # (H, Lq, hd)

        # Output projection, head-split: sum_h attn_h @ wout_h  (== concat+proj)
        proj = jnp.einsum('hqe,hed->hqd',
                          attn.astype(compute_dtype), wout,
                          preferred_element_type=f32)                    # (H, Lq, Din)
        o_b = (jnp.sum(proj, axis=0) + bout) * gate                      # (Lq, Din)

        o_ref[b * lq:(b + 1) * lq, :] = o_b.astype(o_ref.dtype)


# ----------------------------------------------------------------------------
# Wrapper
# ----------------------------------------------------------------------------
def low_rank_mha(query, key, value, attn_mask, params, num_heads,
                 *, batch_block=None, compute_dtype=jnp.float32):
    B, Lq, Din = query.shape
    Lk = key.shape[1]
    E = params["wq"].shape[1]
    H = num_heads
    hd = E // H

    if batch_block is None:
        batch_block = B                       # single grid step by default
    assert B % batch_block == 0
    n_blocks = B // batch_block
    # (8,128) rule for the blocked row axis (full-array blocks are exempt).
    assert batch_block == B or ((batch_block * Lq) % 8 == 0 and (batch_block * Lk) % 8 == 0)

    f32 = jnp.float32
    pe = params["pe"]

    # --- batch-invariant precompute (plain JAX, once) ------------------------
    pos_q = pe[:Lq] @ params["wpos"] + params["bpos"]        # (Lq, E)
    pos_k = pe[:Lk] @ params["wpos"] + params["bpos"]        # (Lk, E)

    def split_heads_add(add):                # (L, E) -> (H, Bt*L, hd)
        L = add.shape[0]
        a = add.reshape(L, H, hd).transpose(1, 0, 2)         # (H, L, hd)
        return jnp.tile(a, (1, batch_block, 1)).astype(f32)  # (H, Bt*L, hd)

    addq = split_heads_add(pos_q + params["bq"])             # bias + pos folded
    addk = split_heads_add(pos_k + params["bk"])
    addv = split_heads_add(pos_k + params["bv"])

    def split_heads_w(w):                    # (Din, E) -> (H, Din, hd)
        return w.reshape(Din, H, hd).transpose(1, 0, 2).astype(compute_dtype)

    wq_h = split_heads_w(params["wq"])
    wk_h = split_heads_w(params["wk"])
    wv_h = split_heads_w(params["wv"])
    wout_h = params["wout"].reshape(H, hd, Din).astype(compute_dtype)    # (H, hd, Din)

    bout = params["bout"].reshape(1, Din).astype(f32)
    gate = params["gates"].reshape(1, 1).astype(f32)
    mask = attn_mask.astype(f32)

    # --- batch-flattened activations -----------------------------------------
    q_flat = query.reshape(B * Lq, Din).astype(f32)
    k_flat = key.reshape(B * Lk, Din).astype(f32)
    v_flat = value.reshape(B * Lk, Din).astype(f32)

    def rep3(a):
        return pl.BlockSpec(a.shape, lambda i: (0, 0, 0))

    def rep2(a):
        return pl.BlockSpec(a.shape, lambda i: (0, 0))

    kernel = functools.partial(
        _mha_kernel, batch_block=batch_block, num_heads=H, head_dim=hd,
        lq=Lq, lk=Lk, compute_dtype=compute_dtype)

    out_flat = pl.pallas_call(
        kernel,
        out_shape=jax.ShapeDtypeStruct((B * Lq, Din), f32),
        grid_spec=pltpu.PrefetchScalarGridSpec(
            num_scalar_prefetch=0,
            grid=(n_blocks,),
            in_specs=[
                pl.BlockSpec((batch_block * Lq, Din), lambda i: (i, 0)),   # q
                pl.BlockSpec((batch_block * Lk, Din), lambda i: (i, 0)),   # k
                pl.BlockSpec((batch_block * Lk, Din), lambda i: (i, 0)),   # v
                rep3(wq_h), rep3(wk_h), rep3(wv_h), rep3(wout_h),
                rep3(addq), rep3(addk), rep3(addv),
                rep2(bout), rep2(mask),
                pl.BlockSpec(memory_space=pltpu.MemorySpace.SMEM),         # gate scalar
            ],
            out_specs=pl.BlockSpec((batch_block * Lq, Din), lambda i: (i, 0)),
        ),
        compiler_params=pltpu.CompilerParams(
            dimension_semantics=("parallel",)),      # batch axis carries no accumulator
    )(q_flat, k_flat, v_flat,
      wq_h, wk_h, wv_h, wout_h,
      addq, addk, addv,
      bout, mask, gate)

    return out_flat.reshape(B, Lq, Din)


# ----------------------------------------------------------------------------
# Pure-JAX reference (mirrors the PyTorch forward) for validation
# ----------------------------------------------------------------------------
def reference_mha(query, key, value, attn_mask, params, num_heads):
    B, Lq, Din = query.shape
    Lk = key.shape[1]
    E = params["wq"].shape[1]
    hd = E // num_heads
    pe = params["pe"]

    def lin(x, w, b):
        return x @ w + b

    pos_q = lin(pe[:Lq], params["wpos"], params["bpos"])[None]           # (1,Lq,E)
    pos_k = lin(pe[:Lk], params["wpos"], params["bpos"])[None]           # (1,Lk,E)

    k = (lin(key, params["wk"], params["bk"]) + pos_k).reshape(B, Lk, num_heads, hd).transpose(0, 2, 1, 3)
    v = (lin(value, params["wv"], params["bv"]) + pos_k).reshape(B, Lk, num_heads, hd).transpose(0, 2, 1, 3)
    q = (lin(query, params["wq"], params["bq"]) + pos_q).reshape(B, Lq, num_heads, hd).transpose(0, 2, 1, 3)

    w = jnp.einsum("bhqd,bhkd->bhqk", q, k) / jnp.sqrt(jnp.float32(hd))
    w = w + attn_mask[None, None]
    w = jax.nn.softmax(w, axis=-1)
    o = jnp.einsum("bhqk,bhkd->bhqd", w, v)
    o = o.transpose(0, 2, 1, 3).reshape(B, Lq, E)
    return (o @ params["wout"] + params["bout"]) * params["gates"][0]


# ----------------------------------------------------------------------------
if __name__ == "__main__":
    # Small shapes consistent with the module's forward.
    B, Lq, Lk = 2, 8, 8
    IN_DIM, EMBED_DIM, NUM_HEADS = 16, 32, 4

    key0 = jax.random.PRNGKey(0)
    ks = jax.random.split(key0, 16)

    def init(k, shape, scale=0.1):
        return scale * jax.random.normal(k, shape, dtype=jnp.float32)

    params = {
        "wq": init(ks[0], (IN_DIM, EMBED_DIM)),
        "bq": init(ks[1], (EMBED_DIM,)),
        "wk": init(ks[2], (IN_DIM, EMBED_DIM)),
        "bk": init(ks[3], (EMBED_DIM,)),
        "wv": init(ks[4], (IN_DIM, EMBED_DIM)),
        "bv": init(ks[5], (EMBED_DIM,)),
        "wpos": init(ks[6], (IN_DIM, EMBED_DIM)),
        "bpos": init(ks[7], (EMBED_DIM,)),
        "wout": init(ks[8], (EMBED_DIM, IN_DIM)),
        "bout": init(ks[9], (IN_DIM,)),
        # nn.Parameter(torch.zeros([1])) -> shape [1]; set to a deterministic
        # nonzero value so the output is non-trivial.
        "gates": jnp.array([0.5], dtype=jnp.float32),
        "pe": make_positional_encoding(IN_DIM, max_len=401),
    }

    query = init(ks[10], (B, Lq, IN_DIM), scale=1.0)
    key_t = init(ks[11], (B, Lk, IN_DIM), scale=1.0)
    value = init(ks[12], (B, Lk, IN_DIM), scale=1.0)
    attn_mask = init(ks[13], (Lq, Lk), scale=1.0)   # additive 2-D mask

    out = low_rank_mha(query, key_t, value, attn_mask, params, NUM_HEADS)
    out = jax.block_until_ready(out)

    ref = reference_mha(query, key_t, value, attn_mask, params, NUM_HEADS)
    assert out.shape == (B, Lq, IN_DIM)
    # Tolerance accounts for the approximate (EUP) softmax reciprocal.
    err = jnp.max(jnp.abs(out - ref))
    assert jnp.allclose(out, ref, atol=3e-3, rtol=3e-3), f"max abs err {err}"

    print("KERNEL_OK")
</pallas_src>

<mosaic_0001>
module attributes {stable_mosaic.version = 11 : i64} {
  func.func @_mha_kernel(%arg0: i32, %arg1: memref<16x16xf32, #tpu.memory_space<vmem>>, %arg2: memref<16x16xf32, #tpu.memory_space<vmem>>, %arg3: memref<16x16xf32, #tpu.memory_space<vmem>>, %arg4: memref<4x16x8xf32, #tpu.memory_space<vmem>>, %arg5: memref<4x16x8xf32, #tpu.memory_space<vmem>>, %arg6: memref<4x16x8xf32, #tpu.memory_space<vmem>>, %arg7: memref<4x8x16xf32, #tpu.memory_space<vmem>>, %arg8: memref<4x16x8xf32, #tpu.memory_space<vmem>>, %arg9: memref<4x16x8xf32, #tpu.memory_space<vmem>>, %arg10: memref<4x16x8xf32, #tpu.memory_space<vmem>>, %arg11: memref<1x16xf32, #tpu.memory_space<vmem>>, %arg12: memref<8x8xf32, #tpu.memory_space<vmem>>, %arg13: memref<1x1xf32, #tpu.memory_space<smem>>, %arg14: memref<16x16xf32, #tpu.memory_space<vmem>>) attributes {dimension_semantics = [#tpu.dimension_semantics<parallel>], iteration_bounds = array<i64: 1>, scalar_prefetch = 0 : i64, scratch_operands = 0 : i64, tpu.core_type = #tpu.core_type<tc>, window_params = [{transform_indices = @transform_0, window_bounds = array<i64: 16, 16>}, {transform_indices = @transform_1, window_bounds = array<i64: 16, 16>}, {transform_indices = @transform_2, window_bounds = array<i64: 16, 16>}, {pipeline_mode = #tpu.pipeline_mode<synchronous>, transform_indices = @transform_3, window_bounds = array<i64: 4, 16, 8>}, {pipeline_mode = #tpu.pipeline_mode<synchronous>, transform_indices = @transform_4, window_bounds = array<i64: 4, 16, 8>}, {pipeline_mode = #tpu.pipeline_mode<synchronous>, transform_indices = @transform_5, window_bounds = array<i64: 4, 16, 8>}, {pipeline_mode = #tpu.pipeline_mode<synchronous>, transform_indices = @transform_6, window_bounds = array<i64: 4, 8, 16>}, {pipeline_mode = #tpu.pipeline_mode<synchronous>, transform_indices = @transform_7, window_bounds = array<i64: 4, 16, 8>}, {pipeline_mode = #tpu.pipeline_mode<synchronous>, transform_indices = @transform_8, window_bounds = array<i64: 4, 16, 8>}, {pipeline_mode = #tpu.pipeline_mode<synchronous>, transform_indices = @transform_9, window_bounds = array<i64: 4, 16, 8>}, {pipeline_mode = #tpu.pipeline_mode<synchronous>, transform_indices = @transform_10, window_bounds = array<i64: 1, 16>}, {pipeline_mode = #tpu.pipeline_mode<synchronous>, transform_indices = @transform_11, window_bounds = array<i64: 8, 8>}, {transform_indices = @transform_12, window_bounds = array<i64: 1, 1>}, {transform_indices = @transform_13, window_bounds = array<i64: 16, 16>}]} {
    %c0 = arith.constant 0 : index
    %c0_0 = arith.constant 0 : index
    %0 = vector.load %arg1[%c0, %c0_0] : memref<16x16xf32, #tpu.memory_space<vmem>>, vector<16x16xf32>
    %c0_1 = arith.constant 0 : index
    %c0_2 = arith.constant 0 : index
    %1 = vector.load %arg2[%c0_1, %c0_2] : memref<16x16xf32, #tpu.memory_space<vmem>>, vector<16x16xf32>
    %c0_3 = arith.constant 0 : index
    %c0_4 = arith.constant 0 : index
    %2 = vector.load %arg3[%c0_3, %c0_4] : memref<16x16xf32, #tpu.memory_space<vmem>>, vector<16x16xf32>
    %c0_5 = arith.constant 0 : index
    %c0_6 = arith.constant 0 : index
    %c0_7 = arith.constant 0 : index
    %3 = vector.load %arg4[%c0_5, %c0_6, %c0_7] : memref<4x16x8xf32, #tpu.memory_space<vmem>>, vector<4x16x8xf32>
    %c0_8 = arith.constant 0 : index
    %c0_9 = arith.constant 0 : index
    %c0_10 = arith.constant 0 : index
    %4 = vector.load %arg5[%c0_8, %c0_9, %c0_10] : memref<4x16x8xf32, #tpu.memory_space<vmem>>, vector<4x16x8xf32>
    %c0_11 = arith.constant 0 : index
    %c0_12 = arith.constant 0 : index
    %c0_13 = arith.constant 0 : index
    %5 = vector.load %arg6[%c0_11, %c0_12, %c0_13] : memref<4x16x8xf32, #tpu.memory_space<vmem>>, vector<4x16x8xf32>
    %c0_14 = arith.constant 0 : index
    %c0_15 = arith.constant 0 : index
    %c0_16 = arith.constant 0 : index
    %6 = vector.load %arg7[%c0_14, %c0_15, %c0_16] : memref<4x8x16xf32, #tpu.memory_space<vmem>>, vector<4x8x16xf32>
    %7 = vector.shape_cast %0 : vector<16x16xf32> to vector<1x16x16xf32>
    %8 = vector.shape_cast %7 : vector<1x16x16xf32> to vector<1x16x16xf32>
    %9 = vector.broadcast %8 : vector<1x16x16xf32> to vector<4x16x16xf32>
    %10 = vector.shape_cast %1 : vector<16x16xf32> to vector<1x16x16xf32>
    %11 = vector.shape_cast %10 : vector<1x16x16xf32> to vector<1x16x16xf32>
    %12 = vector.broadcast %11 : vector<1x16x16xf32> to vector<4x16x16xf32>
    %13 = vector.shape_cast %2 : vector<16x16xf32> to vector<1x16x16xf32>
    %14 = vector.shape_cast %13 : vector<1x16x16xf32> to vector<1x16x16xf32>
    %15 = vector.broadcast %14 : vector<1x16x16xf32> to vector<4x16x16xf32>
    "tpu.trace_start"() <{level = 10 : i32, message = "hnd,hde->hne"}> : () -> ()
    %cst = arith.constant dense<0.000000e+00> : vector<4x16x8xf32>
    %16 = tpu.matmul %9, %3, %cst {dimension_numbers = #tpu.dot_dimension_numbers<[2], [1], [1], [2], [0, 0, 0, 1, 1, 2], [0], [0]>} : vector<4x16x16xf32>, vector<4x16x8xf32>, vector<4x16x8xf32> -> vector<4x16x8xf32>
    "tpu.trace_stop"() : () -> ()
    %c0_17 = arith.constant 0 : index
    %c0_18 = arith.constant 0 : index
    %c0_19 = arith.constant 0 : index
    %17 = vector.load %arg8[%c0_17, %c0_18, %c0_19] : memref<4x16x8xf32, #tpu.memory_space<vmem>>, vector<4x16x8xf32>
    %18 = arith.addf %16, %17 : vector<4x16x8xf32>
    "tpu.trace_start"() <{level = 10 : i32, message = "hnd,hde->hne"}> : () -> ()
    %cst_20 = arith.constant dense<0.000000e+00> : vector<4x16x8xf32>
    %19 = tpu.matmul %12, %4, %cst_20 {dimension_numbers = #tpu.dot_dimension_numbers<[2], [1], [1], [2], [0, 0, 0, 1, 1, 2], [0], [0]>} : vector<4x16x16xf32>, vector<4x16x8xf32>, vector<4x16x8xf32> -> vector<4x16x8xf32>
    "tpu.trace_stop"() : () -> ()
    %c0_21 = arith.constant 0 : index
    %c0_22 = arith.constant 0 : index
    %c0_23 = arith.constant 0 : index
    %20 = vector.load %arg9[%c0_21, %c0_22, %c0_23] : memref<4x16x8xf32, #tpu.memory_space<vmem>>, vector<4x16x8xf32>
    %21 = arith.addf %19, %20 : vector<4x16x8xf32>
    "tpu.trace_start"() <{level = 10 : i32, message = "hnd,hde->hne"}> : () -> ()
    %cst_24 = arith.constant dense<0.000000e+00> : vector<4x16x8xf32>
    %22 = tpu.matmul %15, %5, %cst_24 {dimension_numbers = #tpu.dot_dimension_numbers<[2], [1], [1], [2], [0, 0, 0, 1, 1, 2], [0], [0]>} : vector<4x16x16xf32>, vector<4x16x8xf32>, vector<4x16x8xf32> -> vector<4x16x8xf32>
    "tpu.trace_stop"() : () -> ()
    %c0_25 = arith.constant 0 : index
    %c0_26 = arith.constant 0 : index
    %c0_27 = arith.constant 0 : index
    %23 = vector.load %arg10[%c0_25, %c0_26, %c0_27] : memref<4x16x8xf32, #tpu.memory_space<vmem>>, vector<4x16x8xf32>
    %24 = arith.addf %22, %23 : vector<4x16x8xf32>
    %c0_28 = arith.constant 0 : index
    %c0_29 = arith.constant 0 : index
    %25 = vector.load %arg12[%c0_28, %c0_29] : memref<8x8xf32, #tpu.memory_space<vmem>>, vector<8x8xf32>
    %c0_30 = arith.constant 0 : index
    %c0_31 = arith.constant 0 : index
    %26 = vector.load %arg11[%c0_30, %c0_31] : memref<1x16xf32, #tpu.memory_space<vmem>>, vector<1x16xf32>
    %c0_32 = arith.constant 0 : index
    %c0_33 = arith.constant 0 : index
    %27 = memref.load %arg13[%c0_32, %c0_33] : memref<1x1xf32, #tpu.memory_space<smem>>
    %cst_34 = arith.constant 8.000000e+00 : f32
    %28 = math.sqrt %cst_34 : f32
    %cst_35 = arith.constant 1.000000e+00 : f32
    %29 = arith.divf %cst_35, %28 : f32
    %30 = vector.extract_strided_slice %18 {offsets = [0, 0, 0], sizes = [4, 8, 8], strides = [1, 1, 1]} : vector<4x16x8xf32> to vector<4x8x8xf32>
    %31 = vector.extract_strided_slice %21 {offsets = [0, 0, 0], sizes = [4, 8, 8], strides = [1, 1, 1]} : vector<4x16x8xf32> to vector<4x8x8xf32>
    %32 = vector.extract_strided_slice %24 {offsets = [0, 0, 0], sizes = [4, 8, 8], strides = [1, 1, 1]} : vector<4x16x8xf32> to vector<4x8x8xf32>
    "tpu.trace_start"() <{level = 10 : i32, message = "hqe,hke->hqk"}> : () -> ()
    %cst_36 = arith.constant dense<0.000000e+00> : vector<4x8x8xf32>
    %33 = tpu.matmul %30, %31, %cst_36 {dimension_numbers = #tpu.dot_dimension_numbers<[2], [2], [1], [1], [0, 0, 0, 1, 1, 1], [0], [0]>} : vector<4x8x8xf32>, vector<4x8x8xf32>, vector<4x8x8xf32> -> vector<4x8x8xf32>
    "tpu.trace_stop"() : () -> ()
    %34 = vector.broadcast %29 : f32 to vector<4x8x8xf32>
    %35 = arith.mulf %33, %34 : vector<4x8x8xf32>
    %36 = vector.shape_cast %25 : vector<8x8xf32> to vector<1x8x8xf32>
    %37 = vector.broadcast %36 : vector<1x8x8xf32> to vector<4x8x8xf32>
    %38 = arith.addf %35, %37 : vector<4x8x8xf32>
    %cst_37 = arith.constant dense<0xFF800000> : vector<4x8xf32>
    %39 = vector.multi_reduction <maximumf>, %38, %cst_37 [2] : vector<4x8x8xf32> to vector<4x8xf32>
    %40 = vector.shape_cast %39 : vector<4x8xf32> to vector<4x8x1xf32>
    %41 = vector.broadcast %40 : vector<4x8x1xf32> to vector<4x8x8xf32>
    %42 = arith.subf %38, %41 : vector<4x8x8xf32>
    %43 = math.exp %42 : vector<4x8x8xf32>
    %cst_38 = arith.constant dense<0.000000e+00> : vector<4x8xf32>
    %44 = vector.multi_reduction <add>, %43, %cst_38 [2] : vector<4x8x8xf32> to vector<4x8xf32>
    %45 = vector.shape_cast %44 : vector<4x8xf32> to vector<4x8x1xf32>
    %46 = tpu.reciprocal %45 {approx = true} : vector<4x8x1xf32> -> vector<4x8x1xf32>
    %47 = vector.broadcast %46 : vector<4x8x1xf32> to vector<4x8x8xf32>
    %48 = arith.mulf %43, %47 : vector<4x8x8xf32>
    "tpu.trace_start"() <{level = 10 : i32, message = "hqk,hke->hqe"}> : () -> ()
    %cst_39 = arith.constant dense<0.000000e+00> : vector<4x8x8xf32>
    %49 = tpu.matmul %48, %32, %cst_39 {dimension_numbers = #tpu.dot_dimension_numbers<[2], [1], [1], [2], [0, 0, 0, 1, 1, 2], [0], [0]>} : vector<4x8x8xf32>, vector<4x8x8xf32>, vector<4x8x8xf32> -> vector<4x8x8xf32>
    "tpu.trace_stop"() : () -> ()
    "tpu.trace_start"() <{level = 10 : i32, message = "hqe,hed->hqd"}> : () -> ()
    %cst_40 = arith.constant dense<0.000000e+00> : vector<4x8x16xf32>
    %50 = tpu.matmul %49, %6, %cst_40 {dimension_numbers = #tpu.dot_dimension_numbers<[2], [1], [1], [2], [0, 0, 0, 1, 1, 2], [0], [0]>} : vector<4x8x8xf32>, vector<4x8x16xf32>, vector<4x8x16xf32> -> vector<4x8x16xf32>
    "tpu.trace_stop"() : () -> ()
    %cst_41 = arith.constant dense<0.000000e+00> : vector<8x16xf32>
    %51 = vector.multi_reduction <add>, %50, %cst_41 [0] : vector<4x8x16xf32> to vector<8x16xf32>
    %52 = vector.broadcast %26 : vector<1x16xf32> to vector<8x16xf32>
    %53 = arith.addf %51, %52 : vector<8x16xf32>
    %54 = vector.broadcast %27 : f32 to vector<8x16xf32>
    %55 = arith.mulf %53, %54 : vector<8x16xf32>
    %c0_42 = arith.constant 0 : index
    %c0_43 = arith.constant 0 : index
    %56 = vector.load %arg14[%c0_42, %c0_43] : memref<16x16xf32, #tpu.memory_space<vmem>>, vector<8x16xf32>
    tpu.vector_store %arg14[%c0_42, %c0_43], %55 {strides = array<i32>} : memref<16x16xf32, #tpu.memory_space<vmem>>, vector<8x16xf32>,
    %57 = vector.extract_strided_slice %18 {offsets = [0, 8, 0], sizes = [4, 8, 8], strides = [1, 1, 1]} : vector<4x16x8xf32> to vector<4x8x8xf32>
    %58 = vector.extract_strided_slice %21 {offsets = [0, 8, 0], sizes = [4, 8, 8], strides = [1, 1, 1]} : vector<4x16x8xf32> to vector<4x8x8xf32>
    %59 = vector.extract_strided_slice %24 {offsets = [0, 8, 0], sizes = [4, 8, 8], strides = [1, 1, 1]} : vector<4x16x8xf32> to vector<4x8x8xf32>
    "tpu.trace_start"() <{level = 10 : i32, message = "hqe,hke->hqk"}> : () -> ()
    %cst_44 = arith.constant dense<0.000000e+00> : vector<4x8x8xf32>
    %60 = tpu.matmul %57, %58, %cst_44 {dimension_numbers = #tpu.dot_dimension_numbers<[2], [2], [1], [1], [0, 0, 0, 1, 1, 1], [0], [0]>} : vector<4x8x8xf32>, vector<4x8x8xf32>, vector<4x8x8xf32> -> vector<4x8x8xf32>
    "tpu.trace_stop"() : () -> ()
    %61 = vector.broadcast %29 : f32 to vector<4x8x8xf32>
    %62 = arith.mulf %60, %61 : vector<4x8x8xf32>
    %63 = vector.shape_cast %25 : vector<8x8xf32> to vector<1x8x8xf32>
    %64 = vector.broadcast %63 : vector<1x8x8xf32> to vector<4x8x8xf32>
    %65 = arith.addf %62, %64 : vector<4x8x8xf32>
    %cst_45 = arith.constant dense<0xFF800000> : vector<4x8xf32>
    %66 = vector.multi_reduction <maximumf>, %65, %cst_45 [2] : vector<4x8x8xf32> to vector<4x8xf32>
    %67 = vector.shape_cast %66 : vector<4x8xf32> to vector<4x8x1xf32>
    %68 = vector.broadcast %67 : vector<4x8x1xf32> to vector<4x8x8xf32>
    %69 = arith.subf %65, %68 : vector<4x8x8xf32>
    %70 = math.exp %69 : vector<4x8x8xf32>
    %cst_46 = arith.constant dense<0.000000e+00> : vector<4x8xf32>
    %71 = vector.multi_reduction <add>, %70, %cst_46 [2] : vector<4x8x8xf32> to vector<4x8xf32>
    %72 = vector.shape_cast %71 : vector<4x8xf32> to vector<4x8x1xf32>
    %73 = tpu.reciprocal %72 {approx = true} : vector<4x8x1xf32> -> vector<4x8x1xf32>
    %74 = vector.broadcast %73 : vector<4x8x1xf32> to vector<4x8x8xf32>
    %75 = arith.mulf %70, %74 : vector<4x8x8xf32>
    "tpu.trace_start"() <{level = 10 : i32, message = "hqk,hke->hqe"}> : () -> ()
    %cst_47 = arith.constant dense<0.000000e+00> : vector<4x8x8xf32>
    %76 = tpu.matmul %75, %59, %cst_47 {dimension_numbers = #tpu.dot_dimension_numbers<[2], [1], [1], [2], [0, 0, 0, 1, 1, 2], [0], [0]>} : vector<4x8x8xf32>, vector<4x8x8xf32>, vector<4x8x8xf32> -> vector<4x8x8xf32>
    "tpu.trace_stop"() : () -> ()
    "tpu.trace_start"() <{level = 10 : i32, message = "hqe,hed->hqd"}> : () -> ()
    %cst_48 = arith.constant dense<0.000000e+00> : vector<4x8x16xf32>
    %77 = tpu.matmul %76, %6, %cst_48 {dimension_numbers = #tpu.dot_dimension_numbers<[2], [1], [1], [2], [0, 0, 0, 1, 1, 2], [0], [0]>} : vector<4x8x8xf32>, vector<4x8x16xf32>, vector<4x8x16xf32> -> vector<4x8x16xf32>
    "tpu.trace_stop"() : () -> ()
    %cst_49 = arith.constant dense<0.000000e+00> : vector<8x16xf32>
    %78 = vector.multi_reduction <add>, %77, %cst_49 [0] : vector<4x8x16xf32> to vector<8x16xf32>
    %79 = vector.broadcast %26 : vector<1x16xf32> to vector<8x16xf32>
    %80 = arith.addf %78, %79 : vector<8x16xf32>
    %81 = vector.broadcast %27 : f32 to vector<8x16xf32>
    %82 = arith.mulf %80, %81 : vector<8x16xf32>
    %c8 = arith.constant 8 : index
    %c0_50 = arith.constant 0 : index
    %83 = vector.load %arg14[%c8, %c0_50] : memref<16x16xf32, #tpu.memory_space<vmem>>, vector<8x16xf32>
    tpu.vector_store %arg14[%c8, %c0_50], %82 {strides = array<i32>} : memref<16x16xf32, #tpu.memory_space<vmem>>, vector<8x16xf32>,
    return
  }
  func.func @transform_0(%arg0: i32) -> (i32, i32) {
    %c0_i32 = arith.constant 0 : i32
    %c0_i32_0 = arith.constant 0 : i32
    return %arg0, %c0_i32 : i32, i32
  }
  func.func @transform_1(%arg0: i32) -> (i32, i32) {
    %c0_i32 = arith.constant 0 : i32
    %c0_i32_0 = arith.constant 0 : i32
    return %arg0, %c0_i32 : i32, i32
  }
  func.func @transform_2(%arg0: i32) -> (i32, i32) {
    %c0_i32 = arith.constant 0 : i32
    %c0_i32_0 = arith.constant 0 : i32
    return %arg0, %c0_i32 : i32, i32
  }
  func.func @transform_3(%arg0: i32) -> (i32, i32, i32) {
    %c0_i32 = arith.constant 0 : i32
    %c0_i32_0 = arith.constant 0 : i32
    %c0_i32_1 = arith.constant 0 : i32
    %c0_i32_2 = arith.constant 0 : i32
    return %c0_i32, %c0_i32_0, %c0_i32_1 : i32, i32, i32
  }
  func.func @transform_4(%arg0: i32) -> (i32, i32, i32) {
    %c0_i32 = arith.constant 0 : i32
    %c0_i32_0 = arith.constant 0 : i32
    %c0_i32_1 = arith.constant 0 : i32
    %c0_i32_2 = arith.constant 0 : i32
    return %c0_i32, %c0_i32_0, %c0_i32_1 : i32, i32, i32
  }
  func.func @transform_5(%arg0: i32) -> (i32, i32, i32) {
    %c0_i32 = arith.constant 0 : i32
    %c0_i32_0 = arith.constant 0 : i32
    %c0_i32_1 = arith.constant 0 : i32
    %c0_i32_2 = arith.constant 0 : i32
    return %c0_i32, %c0_i32_0, %c0_i32_1 : i32, i32, i32
  }
  func.func @transform_6(%arg0: i32) -> (i32, i32, i32) {
    %c0_i32 = arith.constant 0 : i32
    %c0_i32_0 = arith.constant 0 : i32
    %c0_i32_1 = arith.constant 0 : i32
    %c0_i32_2 = arith.constant 0 : i32
    return %c0_i32, %c0_i32_0, %c0_i32_1 : i32, i32, i32
  }
  func.func @transform_7(%arg0: i32) -> (i32, i32, i32) {
    %c0_i32 = arith.constant 0 : i32
    %c0_i32_0 = arith.constant 0 : i32
    %c0_i32_1 = arith.constant 0 : i32
    %c0_i32_2 = arith.constant 0 : i32
    return %c0_i32, %c0_i32_0, %c0_i32_1 : i32, i32, i32
  }
  func.func @transform_8(%arg0: i32) -> (i32, i32, i32) {
    %c0_i32 = arith.constant 0 : i32
    %c0_i32_0 = arith.constant 0 : i32
    %c0_i32_1 = arith.constant 0 : i32
    %c0_i32_2 = arith.constant 0 : i32
    return %c0_i32, %c0_i32_0, %c0_i32_1 : i32, i32, i32
  }
  func.func @transform_9(%arg0: i32) -> (i32, i32, i32) {
    %c0_i32 = arith.constant 0 : i32
    %c0_i32_0 = arith.constant 0 : i32
    %c0_i32_1 = arith.constant 0 : i32
    %c0_i32_2 = arith.constant 0 : i32
    return %c0_i32, %c0_i32_0, %c0_i32_1 : i32, i32, i32
  }
  func.func @transform_10(%arg0: i32) -> (i32, i32) {
    %c0_i32 = arith.constant 0 : i32
    %c0_i32_0 = arith.constant 0 : i32
    %c0_i32_1 = arith.constant 0 : i32
    return %c0_i32, %c0_i32_0 : i32, i32
  }
  func.func @transform_11(%arg0: i32) -> (i32, i32) {
    %c0_i32 = arith.constant 0 : i32
    %c0_i32_0 = arith.constant 0 : i32
    %c0_i32_1 = arith.constant 0 : i32
    return %c0_i32, %c0_i32_0 : i32, i32
  }
  func.func @transform_12(%arg0: i32) -> (i32, i32) {
    %c0_i32 = arith.constant 0 : i32
    %c0_i32_0 = arith.constant 0 : i32
    %c0_i32_1 = arith.constant 0 : i32
    return %c0_i32, %c0_i32_0 : i32, i32
  }
  func.func @transform_13(%arg0: i32) -> (i32, i32) {
    %c0_i32 = arith.constant 0 : i32
    %c0_i32_0 = arith.constant 0 : i32
    return %arg0, %c0_i32 : i32, i32
  }
}

</mosaic_0001>

<llo_original>
// kernel: tpu_custom_call.1
$region0: #{tpu_custom_call.1}
  #allocation0 [shape = 'u32[]', space=smem, size = 0x4, offset = 0x4, fixed_abs, tag = 'smem constant byte address 0x4 - core index']
  #allocation1 [shape = 'u32[144,128]{1,0:T(1,128)}', space=vmem, size = 0x12000, scoped, tag = 'internal scratch']
  #allocation2 [shape = 'f32[1,1]{1,0:T(1,128)S(6)}', space=smem, size = 0x200, scoped, tag = 'scoped memory for tpu_custom_call.1']
  %s0 = inlined_call_operand.vmem [shape: f32[16,16], index: 0, kind: input, shape index: {}]
  %s1 = inlined_call_operand.vmem [shape: f32[16,16], index: 1, kind: input, shape index: {}]
  %s2 = inlined_call_operand.vmem [shape: f32[16,16], index: 2, kind: input, shape index: {}]
  %s3 = inlined_call_operand.vmem [shape: f32[4,16,8], index: 3, kind: input, shape index: {}]
  %s4 = inlined_call_operand.vmem [shape: f32[4,16,8], index: 4, kind: input, shape index: {}]
  %s5 = inlined_call_operand.vmem [shape: f32[4,16,8], index: 5, kind: input, shape index: {}]
  %s6 = inlined_call_operand.vmem [shape: f32[4,8,16], index: 6, kind: input, shape index: {}]
  %s7 = inlined_call_operand.vmem [shape: f32[4,16,8], index: 7, kind: input, shape index: {}]
  %s8 = inlined_call_operand.vmem [shape: f32[4,16,8], index: 8, kind: input, shape index: {}]
  %s9 = inlined_call_operand.vmem [shape: f32[4,16,8], index: 9, kind: input, shape index: {}]
  %s10 = inlined_call_operand.vmem [shape: f32[1,16], index: 10, kind: input, shape index: {}]
  %s11 = inlined_call_operand.vmem [shape: f32[8,8], index: 11, kind: input, shape index: {}]
  %s12 = inlined_call_operand.<no memory space> [shape: f32[1,1], index: 12, kind: input, shape index: {}]
  %s13 = inlined_call_operand.hbm [shape: f32[16,16], index: 13, kind: output, shape index: {}]
  %s14 = sld [smem:[#allocation0]]
  $region62: #{tpu_custom_call.1} parent=0
    _
  %s16 = ssub.s32 1, %s14
  %s17 = scalar_select 0, %s16, %s14
  %18 = sst [smem:[#allocation2]] %s12
  $region1: #{tpu_custom_call.1} parent=0
    #allocation3 [shape = 'u8[8192]{0}', space=vmem, size = 0x2000, scoped, tag = 'output window, operand 0, single buffered']
    #allocation4 [shape = 's32[1]{0}', space=sflag, size = 0x4, scoped, tag = 'scoped memory for tpu_custom_call.1']
    %19 = vsyncpa [#allocation4], 0
    // Predicated region
    $region2: #{tpu_custom_call.1} parent=1 // pred_check
      _
    $region3: #{tpu_custom_call.1} parent=1 // pred_check_branch
      %21 = sbr.rel (0) target = $region5
    $region4: #{tpu_custom_call.1} parent=1 // pred_region
      _
    $region5: #{tpu_custom_call.1} parent=1 // pred_fallthru
      _
    // Predicated region
    $region6: #{tpu_custom_call.1} parent=1 // pred_check
      _
    $region7: #{tpu_custom_call.1} parent=1 // pred_check_branch
      %23 = sbr.rel (0) target = $region9
    $region8: #{tpu_custom_call.1} parent=1 // pred_region
      _
    $region9: #{tpu_custom_call.1} parent=1 // pred_fallthru
      _
    // Predicated region
    $region10: #{tpu_custom_call.1} parent=1 // pred_check
      _
    $region11: #{tpu_custom_call.1} parent=1 // pred_check_branch
      %25 = sbr.rel (0) target = $region13
    $region12: #{tpu_custom_call.1} parent=1 // pred_region
      _
    $region13: #{tpu_custom_call.1} parent=1 // pred_fallthru
      _
    // Predicated region
    $region14: #{tpu_custom_call.1} parent=1 // pred_check
      _
    $region15: #{tpu_custom_call.1} parent=1 // pred_check_branch
      %27 = sbr.rel (0) target = $region17
    $region16: #{tpu_custom_call.1} parent=1 // pred_region
      _
    $region17: #{tpu_custom_call.1} parent=1 // pred_fallthru
      _
    // Predicated region
    $region18: #{tpu_custom_call.1} parent=1 // pred_check
      _
    $region19: #{tpu_custom_call.1} parent=1 // pred_check_branch
      %29 = sbr.rel (0) target = $region21
    $region20: #{tpu_custom_call.1} parent=1 // pred_region
      _
    $region21: #{tpu_custom_call.1} parent=1 // pred_fallthru
      _
    // Predicated region
    $region22: #{tpu_custom_call.1} parent=1 // pred_check
      _
    $region23: #{tpu_custom_call.1} parent=1 // pred_check_branch
      %31 = sbr.rel (0) target = $region25
    $region24: #{tpu_custom_call.1} parent=1 // pred_region
      _
    $region25: #{tpu_custom_call.1} parent=1 // pred_fallthru
      _
    // Predicated region
    $region26: #{tpu_custom_call.1} parent=1 // pred_check
      _
    $region27: #{tpu_custom_call.1} parent=1 // pred_check_branch
      %33 = sbr.rel (0) target = $region29
    $region28: #{tpu_custom_call.1} parent=1 // pred_region
      _
    $region29: #{tpu_custom_call.1} parent=1 // pred_fallthru
      _
    // Predicated region
    $region30: #{tpu_custom_call.1} parent=1 // pred_check
      _
    $region31: #{tpu_custom_call.1} parent=1 // pred_check_branch
      %35 = sbr.rel (0) target = $region33
    $region32: #{tpu_custom_call.1} parent=1 // pred_region
      _
    $region33: #{tpu_custom_call.1} parent=1 // pred_fallthru
      _
    // Predicated region
    $region34: #{tpu_custom_call.1} parent=1 // pred_check
      _
    $region35: #{tpu_custom_call.1} parent=1 // pred_check_branch
      %37 = sbr.rel (0) target = $region37
    $region36: #{tpu_custom_call.1} parent=1 // pred_region
      _
    $region37: #{tpu_custom_call.1} parent=1 // pred_fallthru
      _
    // Predicated region
    $region38: #{tpu_custom_call.1} parent=1 // pred_check
      _
    $region39: #{tpu_custom_call.1} parent=1 // pred_check_branch
      %39 = sbr.rel (0) target = $region41
    $region40: #{tpu_custom_call.1} parent=1 // pred_region
      _
    $region41: #{tpu_custom_call.1} parent=1 // pred_fallthru
      _
    // Predicated region
    $region42: #{tpu_custom_call.1} parent=1 // pred_check
      _
    $region43: #{tpu_custom_call.1} parent=1 // pred_check_branch
      %41 = sbr.rel (0) target = $region45
    $region44: #{tpu_custom_call.1} parent=1 // pred_region
      _
    $region45: #{tpu_custom_call.1} parent=1 // pred_fallthru
      _
    // Predicated region
    $region46: #{tpu_custom_call.1} parent=1 // pred_check
      _
    $region47: #{tpu_custom_call.1} parent=1 // pred_check_branch
      %43 = sbr.rel (0) target = $region49
    $region48: #{tpu_custom_call.1} parent=1 // pred_region
      _
    $region49: #{tpu_custom_call.1} parent=1 // pred_fallthru
      _
    // Predicated region
    $region50: #{tpu_custom_call.1} parent=1 // pred_check
      _
    $region51: #{tpu_custom_call.1} parent=1 // pred_check_branch
      %45 = sbr.rel (0) target = $region53
    $region52: #{tpu_custom_call.1} parent=1 // pred_region
      _
    $region53: #{tpu_custom_call.1} parent=1 // pred_fallthru
      _
    %v46 = vld [vmem:[%s0] sm:$0xff]
    %v47 = vld [vmem:[%s0 + $0x8] sm:$0xff]
    %v48 = vld [vmem:[%s1] sm:$0xff]
    %v49 = vld [vmem:[%s1 + $0x8] sm:$0xff]
    %v50 = vld [vmem:[%s2] sm:$0xff]
    %v51 = vld [vmem:[%s2 + $0x8] sm:$0xff]
    %v52 = vld [vmem:[%s3] sm:$0xff]
    %v53 = vld [vmem:[%s3 + $0x8] sm:$0xff]
    %v54 = vld [vmem:[%s3 + $0x10] sm:$0xff]
    %v55 = vld [vmem:[%s3 + $0x18] sm:$0xff]
    %v56 = vld [vmem:[%s3 + $0x20] sm:$0xff]
    %v57 = vld [vmem:[%s3 + $0x28] sm:$0xff]
    %v58 = vld [vmem:[%s3 + $0x30] sm:$0xff]
    %v59 = vld [vmem:[%s3 + $0x38] sm:$0xff]
    %v60 = vld [vmem:[%s4] sm:$0xff]
    %v61 = vld [vmem:[%s4 + $0x8] sm:$0xff]
    %v62 = vld [vmem:[%s4 + $0x10] sm:$0xff]
    %v63 = vld [vmem:[%s4 + $0x18] sm:$0xff]
    %v64 = vld [vmem:[%s4 + $0x20] sm:$0xff]
    %v65 = vld [vmem:[%s4 + $0x28] sm:$0xff]
    %v66 = vld [vmem:[%s4 + $0x30] sm:$0xff]
    %v67 = vld [vmem:[%s4 + $0x38] sm:$0xff]
    %v68 = vld [vmem:[%s5] sm:$0xff]
    %v69 = vld [vmem:[%s5 + $0x8] sm:$0xff]
    %v70 = vld [vmem:[%s5 + $0x10] sm:$0xff]
    %v71 = vld [vmem:[%s5 + $0x18] sm:$0xff]
    %v72 = vld [vmem:[%s5 + $0x20] sm:$0xff]
    %v73 = vld [vmem:[%s5 + $0x28] sm:$0xff]
    %v74 = vld [vmem:[%s5 + $0x30] sm:$0xff]
    %v75 = vld [vmem:[%s5 + $0x38] sm:$0xff]
    %v76 = vld [vmem:[%s6] sm:$0xff]
    %v77 = vld [vmem:[%s6 + $0x8] sm:$0xff]
    %v78 = vld [vmem:[%s6 + $0x10] sm:$0xff]
    %v79 = vld [vmem:[%s6 + $0x18] sm:$0xff]
    %v80 = vld [vmem:[%s7] sm:$0xff]
    %v81 = vld [vmem:[%s7 + $0x8] sm:$0xff]
    %v82 = vld [vmem:[%s7 + $0x10] sm:$0xff]
    %v83 = vld [vmem:[%s7 + $0x18] sm:$0xff]
    %v84 = vld [vmem:[%s7 + $0x20] sm:$0xff]
    %v85 = vld [vmem:[%s7 + $0x28] sm:$0xff]
    %v86 = vld [vmem:[%s7 + $0x30] sm:$0xff]
    %v87 = vld [vmem:[%s7 + $0x38] sm:$0xff]
    %vm88 = vcmask 130048
    %v90 = vsel %vm88, %v46, 0
    %v93 = vsel %vm88, %v47, 0
    %95 = vmatprep.subr.mxu0 0.0
    %96 = vmatpush1.msra.mxu0 0.0
    %97 = vmatprep.subr.mxu0 0.0
    %98 = vmatpush1.msra.mxu0 0.0
    %99 = vmatprep.subr.mxu0 0.0
    %100 = vmatpush1.msra.mxu0 0.0
    %101 = vmatprep.subr.mxu0 0.0
    %102 = vmatpush1.msra.mxu0 0.0
    %103 = vmatprep.subr.mxu0 0.0
    %104 = vmatpush1.msra.mxu0 0.0
    %105 = vmatprep.subr.mxu0 0.0
    %106 = vmatpush1.msra.mxu0 0.0
    %107 = vmatprep.subr.mxu0 0.0
    %108 = vmatpush1.msra.mxu0 0.0
    %109 = vmatprep.subr.mxu0 0.0
    %110 = vmatpush1.msra.mxu0 0.0
    %111 = vmatprep.subr.mxu0 0.0
    %112 = vmatpush1.msra.mxu0 0.0
    %113 = vmatprep.subr.mxu0 0.0
    %114 = vmatpush1.msra.mxu0 0.0
    %115 = vmatprep.subr.mxu0 0.0
    %116 = vmatpush1.msra.mxu0 0.0
    %117 = vmatprep.subr.mxu0 0.0
    %118 = vmatpush1.msra.mxu0 0.0
    %119 = vmatprep.subr.mxu0 0.0
    %120 = vmatpush1.msra.mxu0 0.0
    %121 = vmatprep.subr.mxu0 0.0
    %122 = vmatpush1.msra.mxu0 0.0
    %123 = vmatprep.subr.mxu0 0.0
    %124 = vmatpush1.msra.mxu0 %v53
    %125 = vmatprep.subr.mxu0 0.0
    %126 = vmatpush1.msra.mxu0 %v52
    %127 = vmatprep.subr.mxu0 0.0
    %128 = vmatpush2.msra.mxu0 0.0
    %129 = vmatprep.subr.mxu0 0.0
    %130 = vmatpush2.msra.mxu0 0.0
    %131 = vmatprep.subr.mxu0 0.0
    %132 = vmatpush2.msra.mxu0 0.0
    %133 = vmatprep.subr.mxu0 0.0
    %134 = vmatpush2.msra.mxu0 0.0
    %135 = vmatprep.subr.mxu0 0.0
    %136 = vmatpush2.msra.mxu0 0.0
    %137 = vmatprep.subr.mxu0 0.0
    %138 = vmatpush2.msra.mxu0 0.0
    %139 = vmatprep.subr.mxu0 0.0
    %140 = vmatpush2.msra.mxu0 0.0
    %141 = vmatprep.subr.mxu0 0.0
    %142 = vmatpush2.msra.mxu0 0.0
    %143 = vmatprep.subr.mxu0 0.0
    %144 = vmatpush2.msra.mxu0 0.0
    %145 = vmatprep.subr.mxu0 0.0
    %146 = vmatpush2.msra.mxu0 0.0
    %147 = vmatprep.subr.mxu0 0.0
    %148 = vmatpush2.msra.mxu0 0.0
    %149 = vmatprep.subr.mxu0 0.0
    %150 = vmatpush2.msra.mxu0 0.0
    %151 = vmatprep.subr.mxu0 0.0
    %152 = vmatpush2.msra.mxu0 0.0
    %153 = vmatprep.subr.mxu0 0.0
    %154 = vmatpush2.msra.mxu0 0.0
    %155 = vmatprep.subr.mxu0 0.0
    %156 = vmatpush2.msra.mxu0 0.0
    %157 = vmatprep.subr.mxu0 0.0
    %158 = vmatpush2.msra.mxu0 0.0
    %159 = vmatprep.mubr.f32.mxu0 0.0
    %160 = vmatmul.mubr.f32.gmra.mxu0 %v90
    %v161 = vpop.f32.mrf.mxu0
    %v162 = vadd.f32 %v80, %v161
    %v163 = vpop.f32.mrf.mxu0
    %164 = vmatprep.mubr.f32.mxu0 0.0
    %165 = vmatmul.mubr.f32.gmra.mxu0 %v93
    %v166 = vpop.f32.mrf.mxu0
    %v167 = vadd.f32 %v81, %v166
    %v168 = vpop.f32.mrf.mxu0
    %169 = vdwg.mxu0
    %170 = vmatprep.subr.mxu0 0.0
    %171 = vmatpush1.msra.mxu0 0.0
    %172 = vmatprep.subr.mxu0 0.0
    %173 = vmatpush1.msra.mxu0 0.0
    %174 = vmatprep.subr.mxu0 0.0
    %175 = vmatpush1.msra.mxu0 0.0
    %176 = vmatprep.subr.mxu0 0.0
    %177 = vmatpush1.msra.mxu0 0.0
    %178 = vmatprep.subr.mxu0 0.0
    %179 = vmatpush1.msra.mxu0 0.0
    %180 = vmatprep.subr.mxu0 0.0
    %181 = vmatpush1.msra.mxu0 0.0
    %182 = vmatprep.subr.mxu0 0.0
    %183 = vmatpush1.msra.mxu0 0.0
    %184 = vmatprep.subr.mxu0 0.0
    %185 = vmatpush1.msra.mxu0 0.0
    %186 = vmatprep.subr.mxu0 0.0
    %187 = vmatpush1.msra.mxu0 0.0
    %188 = vmatprep.subr.mxu0 0.0
    %189 = vmatpush1.msra.mxu0 0.0
    %190 = vmatprep.subr.mxu0 0.0
    %191 = vmatpush1.msra.mxu0 0.0
    %192 = vmatprep.subr.mxu0 0.0
    %193 = vmatpush1.msra.mxu0 0.0
    %194 = vmatprep.subr.mxu0 0.0
    %195 = vmatpush1.msra.mxu0 0.0
    %196 = vmatprep.subr.mxu0 0.0
    %197 = vmatpush1.msra.mxu0 0.0
    %198 = vmatprep.subr.mxu0 0.0
    %199 = vmatpush1.msra.mxu0 %v55
    %200 = vmatprep.subr.mxu0 0.0
    %201 = vmatpush1.msra.mxu0 %v54
    %202 = vmatprep.subr.mxu0 0.0
    %203 = vmatpush2.msra.mxu0 0.0
    %204 = vmatprep.subr.mxu0 0.0
    %205 = vmatpush2.msra.mxu0 0.0
    %206 = vmatprep.subr.mxu0 0.0
    %207 = vmatpush2.msra.mxu0 0.0
    %208 = vmatprep.subr.mxu0 0.0
    %209 = vmatpush2.msra.mxu0 0.0
    %210 = vmatprep.subr.mxu0 0.0
    %211 = vmatpush2.msra.mxu0 0.0
    %212 = vmatprep.subr.mxu0 0.0
    %213 = vmatpush2.msra.mxu0 0.0
    %214 = vmatprep.subr.mxu0 0.0
    %215 = vmatpush2.msra.mxu0 0.0
    %216 = vmatprep.subr.mxu0 0.0
    %217 = vmatpush2.msra.mxu0 0.0
    %218 = vmatprep.subr.mxu0 0.0
    %219 = vmatpush2.msra.mxu0 0.0
    %220 = vmatprep.subr.mxu0 0.0
    %221 = vmatpush2.msra.mxu0 0.0
    %222 = vmatprep.subr.mxu0 0.0
    %223 = vmatpush2.msra.mxu0 0.0
    %224 = vmatprep.subr.mxu0 0.0
    %225 = vmatpush2.msra.mxu0 0.0
    %226 = vmatprep.subr.mxu0 0.0
    %227 = vmatpush2.msra.mxu0 0.0
    %228 = vmatprep.subr.mxu0 0.0
    %229 = vmatpush2.msra.mxu0 0.0
    %230 = vmatprep.subr.mxu0 0.0
    %231 = vmatpush2.msra.mxu0 0.0
    %232 = vmatprep.subr.mxu0 0.0
    %233 = vmatpush2.msra.mxu0 0.0
    %234 = vmatprep.mubr.f32.mxu0 0.0
    %235 = vmatmul.mubr.f32.gmra.mxu0 %v90
    %v236 = vpop.f32.mrf.mxu0
    %v237 = vadd.f32 %v82, %v236
    %v238 = vpop.f32.mrf.mxu0
    %239 = vmatprep.mubr.f32.mxu0 0.0
    %240 = vmatmul.mubr.f32.gmra.mxu0 %v93
    %v241 = vpop.f32.mrf.mxu0
    %v242 = vadd.f32 %v83, %v241
    %v243 = vpop.f32.mrf.mxu0
    %244 = vdwg.mxu0
    %245 = vmatprep.subr.mxu0 0.0
    %246 = vmatpush1.msra.mxu0 0.0
    %247 = vmatprep.subr.mxu0 0.0
    %248 = vmatpush1.msra.mxu0 0.0
    %249 = vmatprep.subr.mxu0 0.0
    %250 = vmatpush1.msra.mxu0 0.0
    %251 = vmatprep.subr.mxu0 0.0
    %252 = vmatpush1.msra.mxu0 0.0
    %253 = vmatprep.subr.mxu0 0.0
    %254 = vmatpush1.msra.mxu0 0.0
    %255 = vmatprep.subr.mxu0 0.0
    %256 = vmatpush1.msra.mxu0 0.0
    %257 = vmatprep.subr.mxu0 0.0
    %258 = vmatpush1.msra.mxu0 0.0
    %259 = vmatprep.subr.mxu0 0.0
    %260 = vmatpush1.msra.mxu0 0.0
    %261 = vmatprep.subr.mxu0 0.0
    %262 = vmatpush1.msra.mxu0 0.0
    %263 = vmatprep.subr.mxu0 0.0
    %264 = vmatpush1.msra.mxu0 0.0
    %265 = vmatprep.subr.mxu0 0.0
    %266 = vmatpush1.msra.mxu0 0.0
    %267 = vmatprep.subr.mxu0 0.0
    %268 = vmatpush1.msra.mxu0 0.0
    %269 = vmatprep.subr.mxu0 0.0
    %270 = vmatpush1.msra.mxu0 0.0
    %271 = vmatprep.subr.mxu0 0.0
    %272 = vmatpush1.msra.mxu0 0.0
    %273 = vmatprep.subr.mxu0 0.0
    %274 = vmatpush1.msra.mxu0 %v57
    %275 = vmatprep.subr.mxu0 0.0
    %276 = vmatpush1.msra.mxu0 %v56
    %277 = vmatprep.subr.mxu0 0.0
    %278 = vmatpush2.msra.mxu0 0.0
    %279 = vmatprep.subr.mxu0 0.0
    %280 = vmatpush2.msra.mxu0 0.0
    %281 = vmatprep.subr.mxu0 0.0
    %282 = vmatpush2.msra.mxu0 0.0
    %283 = vmatprep.subr.mxu0 0.0
    %284 = vmatpush2.msra.mxu0 0.0
    %285 = vmatprep.subr.mxu0 0.0
    %286 = vmatpush2.msra.mxu0 0.0
    %287 = vmatprep.subr.mxu0 0.0
    %288 = vmatpush2.msra.mxu0 0.0
    %289 = vmatprep.subr.mxu0 0.0
    %290 = vmatpush2.msra.mxu0 0.0
    %291 = vmatprep.subr.mxu0 0.0
    %292 = vmatpush2.msra.mxu0 0.0
    %293 = vmatprep.subr.mxu0 0.0
    %294 = vmatpush2.msra.mxu0 0.0
    %295 = vmatprep.subr.mxu0 0.0
    %296 = vmatpush2.msra.mxu0 0.0
    %297 = vmatprep.subr.mxu0 0.0
    %298 = vmatpush2.msra.mxu0 0.0
    %299 = vmatprep.subr.mxu0 0.0
    %300 = vmatpush2.msra.mxu0 0.0
    %301 = vmatprep.subr.mxu0 0.0
    %302 = vmatpush2.msra.mxu0 0.0
    %303 = vmatprep.subr.mxu0 0.0
    %304 = vmatpush2.msra.mxu0 0.0
    %305 = vmatprep.subr.mxu0 0.0
    %306 = vmatpush2.msra.mxu0 0.0
    %307 = vmatprep.subr.mxu0 0.0
    %308 = vmatpush2.msra.mxu0 0.0
    %309 = vmatprep.mubr.f32.mxu0 0.0
    %310 = vmatmul.mubr.f32.gmra.mxu0 %v90
    %v311 = vpop.f32.mrf.mxu0
    %v312 = vadd.f32 %v84, %v311
    %v313 = vpop.f32.mrf.mxu0
    %314 = vmatprep.mubr.f32.mxu0 0.0
    %315 = vmatmul.mubr.f32.gmra.mxu0 %v93
    %v316 = vpop.f32.mrf.mxu0
    %v317 = vadd.f32 %v85, %v316
    %v318 = vpop.f32.mrf.mxu0
    %319 = vdwg.mxu0
    %320 = vmatprep.subr.mxu0 0.0
    %321 = vmatpush1.msra.mxu0 0.0
    %322 = vmatprep.subr.mxu0 0.0
    %323 = vmatpush1.msra.mxu0 0.0
    %324 = vmatprep.subr.mxu0 0.0
    %325 = vmatpush1.msra.mxu0 0.0
    %326 = vmatprep.subr.mxu0 0.0
    %327 = vmatpush1.msra.mxu0 0.0
    %328 = vmatprep.subr.mxu0 0.0
    %329 = vmatpush1.msra.mxu0 0.0
    %330 = vmatprep.subr.mxu0 0.0
    %331 = vmatpush1.msra.mxu0 0.0
    %332 = vmatprep.subr.mxu0 0.0
    %333 = vmatpush1.msra.mxu0 0.0
    %334 = vmatprep.subr.mxu0 0.0
    %335 = vmatpush1.msra.mxu0 0.0
    %336 = vmatprep.subr.mxu0 0.0
    %337 = vmatpush1.msra.mxu0 0.0
    %338 = vmatprep.subr.mxu0 0.0
    %339 = vmatpush1.msra.mxu0 0.0
    %340 = vmatprep.subr.mxu0 0.0
    %341 = vmatpush1.msra.mxu0 0.0
    %342 = vmatprep.subr.mxu0 0.0
    %343 = vmatpush1.msra.mxu0 0.0
    %344 = vmatprep.subr.mxu0 0.0
    %345 = vmatpush1.msra.mxu0 0.0
    %346 = vmatprep.subr.mxu0 0.0
    %347 = vmatpush1.msra.mxu0 0.0
    %348 = vmatprep.subr.mxu0 0.0
    %349 = vmatpush1.msra.mxu0 %v59
    %350 = vmatprep.subr.mxu0 0.0
    %351 = vmatpush1.msra.mxu0 %v58
    %352 = vmatprep.subr.mxu0 0.0
    %353 = vmatpush2.msra.mxu0 0.0
    %354 = vmatprep.subr.mxu0 0.0
    %355 = vmatpush2.msra.mxu0 0.0
    %356 = vmatprep.subr.mxu0 0.0
    %357 = vmatpush2.msra.mxu0 0.0
    %358 = vmatprep.subr.mxu0 0.0
    %359 = vmatpush2.msra.mxu0 0.0
    %360 = vmatprep.subr.mxu0 0.0
    %361 = vmatpush2.msra.mxu0 0.0
    %362 = vmatprep.subr.mxu0 0.0
    %363 = vmatpush2.msra.mxu0 0.0
    %364 = vmatprep.subr.mxu0 0.0
    %365 = vmatpush2.msra.mxu0 0.0
    %366 = vmatprep.subr.mxu0 0.0
    %367 = vmatpush2.msra.mxu0 0.0
    %368 = vmatprep.subr.mxu0 0.0
    %369 = vmatpush2.msra.mxu0 0.0
    %370 = vmatprep.subr.mxu0 0.0
    %371 = vmatpush2.msra.mxu0 0.0
    %372 = vmatprep.subr.mxu0 0.0
    %373 = vmatpush2.msra.mxu0 0.0
    %374 = vmatprep.subr.mxu0 0.0
    %375 = vmatpush2.msra.mxu0 0.0
    %376 = vmatprep.subr.mxu0 0.0
    %377 = vmatpush2.msra.mxu0 0.0
    %378 = vmatprep.subr.mxu0 0.0
    %379 = vmatpush2.msra.mxu0 0.0
    %380 = vmatprep.subr.mxu0 0.0
    %381 = vmatpush2.msra.mxu0 0.0
    %382 = vmatprep.subr.mxu0 0.0
    %383 = vmatpush2.msra.mxu0 0.0
    %384 = vmatprep.mubr.f32.mxu0 0.0
    %385 = vmatmul.mubr.f32.gmra.mxu0 %v90
    %v386 = vpop.f32.mrf.mxu0
    %v387 = vadd.f32 %v86, %v386
    %v388 = vpop.f32.mrf.mxu0
    %389 = vmatprep.mubr.f32.mxu0 0.0
    %390 = vmatmul.mubr.f32.gmra.mxu0 %v93
    %v391 = vpop.f32.mrf.mxu0
    %v392 = vadd.f32 %v87, %v391
    %v393 = vpop.f32.mrf.mxu0
    %394 = vdwg.mxu0
    %v395 = vld [vmem:[%s8] sm:$0xff]
    %v396 = vld [vmem:[%s8 + $0x8] sm:$0xff]
    %v397 = vld [vmem:[%s8 + $0x10] sm:$0xff]
    %v398 = vld [vmem:[%s8 + $0x18] sm:$0xff]
    %v399 = vld [vmem:[%s8 + $0x20] sm:$0xff]
    %v400 = vld [vmem:[%s8 + $0x28] sm:$0xff]
    %v401 = vld [vmem:[%s8 + $0x30] sm:$0xff]
    %v402 = vld [vmem:[%s8 + $0x38] sm:$0xff]
    %v404 = vsel %vm88, %v48, 0
    %v407 = vsel %vm88, %v49, 0
    %409 = vmatprep.subr.mxu0 0.0
    %410 = vmatpush1.msra.mxu0 0.0
    %411 = vmatprep.subr.mxu0 0.0
    %412 = vmatpush1.msra.mxu0 0.0
    %413 = vmatprep.subr.mxu0 0.0
    %414 = vmatpush1.msra.mxu0 0.0
    %415 = vmatprep.subr.mxu0 0.0
    %416 = vmatpush1.msra.mxu0 0.0
    %417 = vmatprep.subr.mxu0 0.0
    %418 = vmatpush1.msra.mxu0 0.0
    %419 = vmatprep.subr.mxu0 0.0
    %420 = vmatpush1.msra.mxu0 0.0
    %421 = vmatprep.subr.mxu0 0.0
    %422 = vmatpush1.msra.mxu0 0.0
    %423 = vmatprep.subr.mxu0 0.0
    %424 = vmatpush1.msra.mxu0 0.0
    %425 = vmatprep.subr.mxu0 0.0
    %426 = vmatpush1.msra.mxu0 0.0
    %427 = vmatprep.subr.mxu0 0.0
    %428 = vmatpush1.msra.mxu0 0.0
    %429 = vmatprep.subr.mxu0 0.0
    %430 = vmatpush1.msra.mxu0 0.0
    %431 = vmatprep.subr.mxu0 0.0
    %432 = vmatpush1.msra.mxu0 0.0
    %433 = vmatprep.subr.mxu0 0.0
    %434 = vmatpush1.msra.mxu0 0.0
    %435 = vmatprep.subr.mxu0 0.0
    %436 = vmatpush1.msra.mxu0 0.0
    %437 = vmatprep.subr.mxu0 0.0
    %438 = vmatpush1.msra.mxu0 %v61
    %439 = vmatprep.subr.mxu0 0.0
    %440 = vmatpush1.msra.mxu0 %v60
    %441 = vmatprep.subr.mxu0 0.0
    %442 = vmatpush2.msra.mxu0 0.0
    %443 = vmatprep.subr.mxu0 0.0
    %444 = vmatpush2.msra.mxu0 0.0
    %445 = vmatprep.subr.mxu0 0.0
    %446 = vmatpush2.msra.mxu0 0.0
    %447 = vmatprep.subr.mxu0 0.0
    %448 = vmatpush2.msra.mxu0 0.0
    %449 = vmatprep.subr.mxu0 0.0
    %450 = vmatpush2.msra.mxu0 0.0
    %451 = vmatprep.subr.mxu0 0.0
    %452 = vmatpush2.msra.mxu0 0.0
    %453 = vmatprep.subr.mxu0 0.0
    %454 = vmatpush2.msra.mxu0 0.0
    %455 = vmatprep.subr.mxu0 0.0
    %456 = vmatpush2.msra.mxu0 0.0
    %457 = vmatprep.subr.mxu0 0.0
    %458 = vmatpush2.msra.mxu0 0.0
    %459 = vmatprep.subr.mxu0 0.0
    %460 = vmatpush2.msra.mxu0 0.0
    %461 = vmatprep.subr.mxu0 0.0
    %462 = vmatpush2.msra.mxu0 0.0
    %463 = vmatprep.subr.mxu0 0.0
    %464 = vmatpush2.msra.mxu0 0.0
    %465 = vmatprep.subr.mxu0 0.0
    %466 = vmatpush2.msra.mxu0 0.0
    %467 = vmatprep.subr.mxu0 0.0
    %468 = vmatpush2.msra.mxu0 0.0
    %469 = vmatprep.subr.mxu0 0.0
    %470 = vmatpush2.msra.mxu0 0.0
    %471 = vmatprep.subr.mxu0 0.0
    %472 = vmatpush2.msra.mxu0 0.0
    %473 = vmatprep.mubr.f32.mxu0 0.0
    %474 = vmatmul.mubr.f32.gmra.mxu0 %v404
    %v475 = vpop.f32.mrf.mxu0
    %v476 = vadd.f32 %v395, %v475
    %v477 = vpop.f32.mrf.mxu0
    %478 = vmatprep.mubr.f32.mxu0 0.0
    %479 = vmatmul.mubr.f32.gmra.mxu0 %v407
    %v480 = vpop.f32.mrf.mxu0
    %v481 = vadd.f32 %v396, %v480
    %v482 = vpop.f32.mrf.mxu0
    %483 = vdwg.mxu0
    %484 = vmatprep.subr.mxu0 0.0
    %485 = vmatpush1.msra.mxu0 0.0
    %486 = vmatprep.subr.mxu0 0.0
    %487 = vmatpush1.msra.mxu0 0.0
    %488 = vmatprep.subr.mxu0 0.0
    %489 = vmatpush1.msra.mxu0 0.0
    %490 = vmatprep.subr.mxu0 0.0
    %491 = vmatpush1.msra.mxu0 0.0
    %492 = vmatprep.subr.mxu0 0.0
    %493 = vmatpush1.msra.mxu0 0.0
    %494 = vmatprep.subr.mxu0 0.0
    %495 = vmatpush1.msra.mxu0 0.0
    %496 = vmatprep.subr.mxu0 0.0
    %497 = vmatpush1.msra.mxu0 0.0
    %498 = vmatprep.subr.mxu0 0.0
    %499 = vmatpush1.msra.mxu0 0.0
    %500 = vmatprep.subr.mxu0 0.0
    %501 = vmatpush1.msra.mxu0 0.0
    %502 = vmatprep.subr.mxu0 0.0
    %503 = vmatpush1.msra.mxu0 0.0
    %504 = vmatprep.subr.mxu0 0.0
    %505 = vmatpush1.msra.mxu0 0.0
    %506 = vmatprep.subr.mxu0 0.0
    %507 = vmatpush1.msra.mxu0 0.0
    %508 = vmatprep.subr.mxu0 0.0
    %509 = vmatpush1.msra.mxu0 0.0
    %510 = vmatprep.subr.mxu0 0.0
    %511 = vmatpush1.msra.mxu0 0.0
    %512 = vmatprep.subr.mxu0 0.0
    %513 = vmatpush1.msra.mxu0 %v63
    %514 = vmatprep.subr.mxu0 0.0
    %515 = vmatpush1.msra.mxu0 %v62
    %516 = vmatprep.subr.mxu0 0.0
    %517 = vmatpush2.msra.mxu0 0.0
    %518 = vmatprep.subr.mxu0 0.0
    %519 = vmatpush2.msra.mxu0 0.0
    %520 = vmatprep.subr.mxu0 0.0
    %521 = vmatpush2.msra.mxu0 0.0
    %522 = vmatprep.subr.mxu0 0.0
    %523 = vmatpush2.msra.mxu0 0.0
    %524 = vmatprep.subr.mxu0 0.0
    %525 = vmatpush2.msra.mxu0 0.0
    %526 = vmatprep.subr.mxu0 0.0
    %527 = vmatpush2.msra.mxu0 0.0
    %528 = vmatprep.subr.mxu0 0.0
    %529 = vmatpush2.msra.mxu0 0.0
    %530 = vmatprep.subr.mxu0 0.0
    %531 = vmatpush2.msra.mxu0 0.0
    %532 = vmatprep.subr.mxu0 0.0
    %533 = vmatpush2.msra.mxu0 0.0
    %534 = vmatprep.subr.mxu0 0.0
    %535 = vmatpush2.msra.mxu0 0.0
    %536 = vmatprep.subr.mxu0 0.0
    %537 = vmatpush2.msra.mxu0 0.0
    %538 = vmatprep.subr.mxu0 0.0
    %539 = vmatpush2.msra.mxu0 0.0
    %540 = vmatprep.subr.mxu0 0.0
    %541 = vmatpush2.msra.mxu0 0.0
    %542 = vmatprep.subr.mxu0 0.0
    %543 = vmatpush2.msra.mxu0 0.0
    %544 = vmatprep.subr.mxu0 0.0
    %545 = vmatpush2.msra.mxu0 0.0
    %546 = vmatprep.subr.mxu0 0.0
    %547 = vmatpush2.msra.mxu0 0.0
    %548 = vmatprep.mubr.f32.mxu0 0.0
    %549 = vmatmul.mubr.f32.gmra.mxu0 %v404
    %v550 = vpop.f32.mrf.mxu0
    %v551 = vadd.f32 %v397, %v550
    %v552 = vpop.f32.mrf.mxu0
    %553 = vmatprep.mubr.f32.mxu0 0.0
    %554 = vmatmul.mubr.f32.gmra.mxu0 %v407
    %v555 = vpop.f32.mrf.mxu0
    %v556 = vadd.f32 %v398, %v555
    %v557 = vpop.f32.mrf.mxu0
    %558 = vdwg.mxu0
    %559 = vmatprep.subr.mxu0 0.0
    %560 = vmatpush1.msra.mxu0 0.0
    %561 = vmatprep.subr.mxu0 0.0
    %562 = vmatpush1.msra.mxu0 0.0
    %563 = vmatprep.subr.mxu0 0.0
    %564 = vmatpush1.msra.mxu0 0.0
    %565 = vmatprep.subr.mxu0 0.0
    %566 = vmatpush1.msra.mxu0 0.0
    %567 = vmatprep.subr.mxu0 0.0
    %568 = vmatpush1.msra.mxu0 0.0
    %569 = vmatprep.subr.mxu0 0.0
    %570 = vmatpush1.msra.mxu0 0.0
    %571 = vmatprep.subr.mxu0 0.0
    %572 = vmatpush1.msra.mxu0 0.0
    %573 = vmatprep.subr.mxu0 0.0
    %574 = vmatpush1.msra.mxu0 0.0
    %575 = vmatprep.subr.mxu0 0.0
    %576 = vmatpush1.msra.mxu0 0.0
    %577 = vmatprep.subr.mxu0 0.0
    %578 = vmatpush1.msra.mxu0 0.0
    %579 = vmatprep.subr.mxu0 0.0
    %580 = vmatpush1.msra.mxu0 0.0
    %581 = vmatprep.subr.mxu0 0.0
    %582 = vmatpush1.msra.mxu0 0.0
    %583 = vmatprep.subr.mxu0 0.0
    %584 = vmatpush1.msra.mxu0 0.0
    %585 = vmatprep.subr.mxu0 0.0
    %586 = vmatpush1.msra.mxu0 0.0
    %587 = vmatprep.subr.mxu0 0.0
    %588 = vmatpush1.msra.mxu0 %v65
    %589 = vmatprep.subr.mxu0 0.0
    %590 = vmatpush1.msra.mxu0 %v64
    %591 = vmatprep.subr.mxu0 0.0
    %592 = vmatpush2.msra.mxu0 0.0
    %593 = vmatprep.subr.mxu0 0.0
    %594 = vmatpush2.msra.mxu0 0.0
    %595 = vmatprep.subr.mxu0 0.0
    %596 = vmatpush2.msra.mxu0 0.0
    %597 = vmatprep.subr.mxu0 0.0
    %598 = vmatpush2.msra.mxu0 0.0
    %599 = vmatprep.subr.mxu0 0.0
    %600 = vmatpush2.msra.mxu0 0.0
    %601 = vmatprep.subr.mxu0 0.0
    %602 = vmatpush2.msra.mxu0 0.0
    %603 = vmatprep.subr.mxu0 0.0
    %604 = vmatpush2.msra.mxu0 0.0
    %605 = vmatprep.subr.mxu0 0.0
    %606 = vmatpush2.msra.mxu0 0.0
    %607 = vmatprep.subr.mxu0 0.0
    %608 = vmatpush2.msra.mxu0 0.0
    %609 = vmatprep.subr.mxu0 0.0
    %610 = vmatpush2.msra.mxu0 0.0
    %611 = vmatprep.subr.mxu0 0.0
    %612 = vmatpush2.msra.mxu0 0.0
    %613 = vmatprep.subr.mxu0 0.0
    %614 = vmatpush2.msra.mxu0 0.0
    %615 = vmatprep.subr.mxu0 0.0
    %616 = vmatpush2.msra.mxu0 0.0
    %617 = vmatprep.subr.mxu0 0.0
    %618 = vmatpush2.msra.mxu0 0.0
    %619 = vmatprep.subr.mxu0 0.0
    %620 = vmatpush2.msra.mxu0 0.0
    %621 = vmatprep.subr.mxu0 0.0
    %622 = vmatpush2.msra.mxu0 0.0
    %623 = vmatprep.mubr.f32.mxu0 0.0
    %624 = vmatmul.mubr.f32.gmra.mxu0 %v404
    %v625 = vpop.f32.mrf.mxu0
    %v626 = vadd.f32 %v399, %v625
    %v627 = vpop.f32.mrf.mxu0
    %628 = vmatprep.mubr.f32.mxu0 0.0
    %629 = vmatmul.mubr.f32.gmra.mxu0 %v407
    %v630 = vpop.f32.mrf.mxu0
    %v631 = vadd.f32 %v400, %v630
    %v632 = vpop.f32.mrf.mxu0
    %633 = vdwg.mxu0
    %634 = vmatprep.subr.mxu0 0.0
    %635 = vmatpush1.msra.mxu0 0.0
    %636 = vmatprep.subr.mxu0 0.0
    %637 = vmatpush1.msra.mxu0 0.0
    %638 = vmatprep.subr.mxu0 0.0
    %639 = vmatpush1.msra.mxu0 0.0
    %640 = vmatprep.subr.mxu0 0.0
    %641 = vmatpush1.msra.mxu0 0.0
    %642 = vmatprep.subr.mxu0 0.0
    %643 = vmatpush1.msra.mxu0 0.0
    %644 = vmatprep.subr.mxu0 0.0
    %645 = vmatpush1.msra.mxu0 0.0
    %646 = vmatprep.subr.mxu0 0.0
    %647 = vmatpush1.msra.mxu0 0.0
    %648 = vmatprep.subr.mxu0 0.0
    %649 = vmatpush1.msra.mxu0 0.0
    %650 = vmatprep.subr.mxu0 0.0
    %651 = vmatpush1.msra.mxu0 0.0
    %652 = vmatprep.subr.mxu0 0.0
    %653 = vmatpush1.msra.mxu0 0.0
    %654 = vmatprep.subr.mxu0 0.0
    %655 = vmatpush1.msra.mxu0 0.0
    %656 = vmatprep.subr.mxu0 0.0
    %657 = vmatpush1.msra.mxu0 0.0
    %658 = vmatprep.subr.mxu0 0.0
    %659 = vmatpush1.msra.mxu0 0.0
    %660 = vmatprep.subr.mxu0 0.0
    %661 = vmatpush1.msra.mxu0 0.0
    %662 = vmatprep.subr.mxu0 0.0
    %663 = vmatpush1.msra.mxu0 %v67
    %664 = vmatprep.subr.mxu0 0.0
    %665 = vmatpush1.msra.mxu0 %v66
    %666 = vmatprep.subr.mxu0 0.0
    %667 = vmatpush2.msra.mxu0 0.0
    %668 = vmatprep.subr.mxu0 0.0
    %669 = vmatpush2.msra.mxu0 0.0
    %670 = vmatprep.subr.mxu0 0.0
    %671 = vmatpush2.msra.mxu0 0.0
    %672 = vmatprep.subr.mxu0 0.0
    %673 = vmatpush2.msra.mxu0 0.0
    %674 = vmatprep.subr.mxu0 0.0
    %675 = vmatpush2.msra.mxu0 0.0
    %676 = vmatprep.subr.mxu0 0.0
    %677 = vmatpush2.msra.mxu0 0.0
    %678 = vmatprep.subr.mxu0 0.0
    %679 = vmatpush2.msra.mxu0 0.0
    %680 = vmatprep.subr.mxu0 0.0
    %681 = vmatpush2.msra.mxu0 0.0
    %682 = vmatprep.subr.mxu0 0.0
    %683 = vmatpush2.msra.mxu0 0.0
    %684 = vmatprep.subr.mxu0 0.0
    %685 = vmatpush2.msra.mxu0 0.0
    %686 = vmatprep.subr.mxu0 0.0
    %687 = vmatpush2.msra.mxu0 0.0
    %688 = vmatprep.subr.mxu0 0.0
    %689 = vmatpush2.msra.mxu0 0.0
    %690 = vmatprep.subr.mxu0 0.0
    %691 = vmatpush2.msra.mxu0 0.0
    %692 = vmatprep.subr.mxu0 0.0
    %693 = vmatpush2.msra.mxu0 0.0
    %694 = vmatprep.subr.mxu0 0.0
    %695 = vmatpush2.msra.mxu0 0.0
    %696 = vmatprep.subr.mxu0 0.0
    %697 = vmatpush2.msra.mxu0 0.0
    %698 = vmatprep.mubr.f32.mxu0 0.0
    %699 = vmatmul.mubr.f32.gmra.mxu0 %v404
    %v700 = vpop.f32.mrf.mxu0
    %v701 = vadd.f32 %v401, %v700
    %v702 = vpop.f32.mrf.mxu0
    %703 = vmatprep.mubr.f32.mxu0 0.0
    %704 = vmatmul.mubr.f32.gmra.mxu0 %v407
    %v705 = vpop.f32.mrf.mxu0
    %v706 = vadd.f32 %v402, %v705
    %v707 = vpop.f32.mrf.mxu0
    %708 = vdwg.mxu0
    %v709 = vld [vmem:[%s9] sm:$0xff]
    %v710 = vld [vmem:[%s9 + $0x8] sm:$0xff]
    %v711 = vld [vmem:[%s9 + $0x10] sm:$0xff]
    %v712 = vld [vmem:[%s9 + $0x18] sm:$0xff]
    %v713 = vld [vmem:[%s9 + $0x20] sm:$0xff]
    %v714 = vld [vmem:[%s9 + $0x28] sm:$0xff]
    %v715 = vld [vmem:[%s9 + $0x30] sm:$0xff]
    %v716 = vld [vmem:[%s9 + $0x38] sm:$0xff]
    %v718 = vsel %vm88, %v50, 0
    %v721 = vsel %vm88, %v51, 0
    %723 = vmatprep.subr.mxu0 0.0
    %724 = vmatpush1.msra.mxu0 0.0
    %725 = vmatprep.subr.mxu0 0.0
    %726 = vmatpush1.msra.mxu0 0.0
    %727 = vmatprep.subr.mxu0 0.0
    %728 = vmatpush1.msra.mxu0 0.0
    %729 = vmatprep.subr.mxu0 0.0
    %730 = vmatpush1.msra.mxu0 0.0
    %731 = vmatprep.subr.mxu0 0.0
    %732 = vmatpush1.msra.mxu0 0.0
    %733 = vmatprep.subr.mxu0 0.0
    %734 = vmatpush1.msra.mxu0 0.0
    %735 = vmatprep.subr.mxu0 0.0
    %736 = vmatpush1.msra.mxu0 0.0
    %737 = vmatprep.subr.mxu0 0.0
    %738 = vmatpush1.msra.mxu0 0.0
    %739 = vmatprep.subr.mxu0 0.0
    %740 = vmatpush1.msra.mxu0 0.0
    %741 = vmatprep.subr.mxu0 0.0
    %742 = vmatpush1.msra.mxu0 0.0
    %743 = vmatprep.subr.mxu0 0.0
    %744 = vmatpush1.msra.mxu0 0.0
    %745 = vmatprep.subr.mxu0 0.0
    %746 = vmatpush1.msra.mxu0 0.0
    %747 = vmatprep.subr.mxu0 0.0
    %748 = vmatpush1.msra.mxu0 0.0
    %749 = vmatprep.subr.mxu0 0.0
    %750 = vmatpush1.msra.mxu0 0.0
    %751 = vmatprep.subr.mxu0 0.0
    %752 = vmatpush1.msra.mxu0 %v69
    %753 = vmatprep.subr.mxu0 0.0
    %754 = vmatpush1.msra.mxu0 %v68
    %755 = vmatprep.subr.mxu0 0.0
    %756 = vmatpush2.msra.mxu0 0.0
    %757 = vmatprep.subr.mxu0 0.0
    %758 = vmatpush2.msra.mxu0 0.0
    %759 = vmatprep.subr.mxu0 0.0
    %760 = vmatpush2.msra.mxu0 0.0
    %761 = vmatprep.subr.mxu0 0.0
    %762 = vmatpush2.msra.mxu0 0.0
    %763 = vmatprep.subr.mxu0 0.0
    %764 = vmatpush2.msra.mxu0 0.0
    %765 = vmatprep.subr.mxu0 0.0
    %766 = vmatpush2.msra.mxu0 0.0
    %767 = vmatprep.subr.mxu0 0.0
    %768 = vmatpush2.msra.mxu0 0.0
    %769 = vmatprep.subr.mxu0 0.0
    %770 = vmatpush2.msra.mxu0 0.0
    %771 = vmatprep.subr.mxu0 0.0
    %772 = vmatpush2.msra.mxu0 0.0
    %773 = vmatprep.subr.mxu0 0.0
    %774 = vmatpush2.msra.mxu0 0.0
    %775 = vmatprep.subr.mxu0 0.0
    %776 = vmatpush2.msra.mxu0 0.0
    %777 = vmatprep.subr.mxu0 0.0
    %778 = vmatpush2.msra.mxu0 0.0
    %779 = vmatprep.subr.mxu0 0.0
    %780 = vmatpush2.msra.mxu0 0.0
    %781 = vmatprep.subr.mxu0 0.0
    %782 = vmatpush2.msra.mxu0 0.0
    %783 = vmatprep.subr.mxu0 0.0
    %784 = vmatpush2.msra.mxu0 0.0
    %785 = vmatprep.subr.mxu0 0.0
    %786 = vmatpush2.msra.mxu0 0.0
    %787 = vmatprep.mubr.f32.mxu0 0.0
    %788 = vmatmul.mubr.f32.gmra.mxu0 %v718
    %v789 = vpop.f32.mrf.mxu0
    %v790 = vadd.f32 %v709, %v789
    %v791 = vpop.f32.mrf.mxu0
    %792 = vmatprep.mubr.f32.mxu0 0.0
    %793 = vmatmul.mubr.f32.gmra.mxu0 %v721
    %v794 = vpop.f32.mrf.mxu0
    %v795 = vadd.f32 %v710, %v794
    %v796 = vpop.f32.mrf.mxu0
    %797 = vdwg.mxu0
    %798 = vmatprep.subr.mxu0 0.0
    %799 = vmatpush1.msra.mxu0 0.0
    %800 = vmatprep.subr.mxu0 0.0
    %801 = vmatpush1.msra.mxu0 0.0
    %802 = vmatprep.subr.mxu0 0.0
    %803 = vmatpush1.msra.mxu0 0.0
    %804 = vmatprep.subr.mxu0 0.0
    %805 = vmatpush1.msra.mxu0 0.0
    %806 = vmatprep.subr.mxu0 0.0
    %807 = vmatpush1.msra.mxu0 0.0
    %808 = vmatprep.subr.mxu0 0.0
    %809 = vmatpush1.msra.mxu0 0.0
    %810 = vmatprep.subr.mxu0 0.0
    %811 = vmatpush1.msra.mxu0 0.0
    %812 = vmatprep.subr.mxu0 0.0
    %813 = vmatpush1.msra.mxu0 0.0
    %814 = vmatprep.subr.mxu0 0.0
    %815 = vmatpush1.msra.mxu0 0.0
    %816 = vmatprep.subr.mxu0 0.0
    %817 = vmatpush1.msra.mxu0 0.0
    %818 = vmatprep.subr.mxu0 0.0
    %819 = vmatpush1.msra.mxu0 0.0
    %820 = vmatprep.subr.mxu0 0.0
    %821 = vmatpush1.msra.mxu0 0.0
    %822 = vmatprep.subr.mxu0 0.0
    %823 = vmatpush1.msra.mxu0 0.0
    %824 = vmatprep.subr.mxu0 0.0
    %825 = vmatpush1.msra.mxu0 0.0
    %826 = vmatprep.subr.mxu0 0.0
    %827 = vmatpush1.msra.mxu0 %v71
    %828 = vmatprep.subr.mxu0 0.0
    %829 = vmatpush1.msra.mxu0 %v70
    %830 = vmatprep.subr.mxu0 0.0
    %831 = vmatpush2.msra.mxu0 0.0
    %832 = vmatprep.subr.mxu0 0.0
    %833 = vmatpush2.msra.mxu0 0.0
    %834 = vmatprep.subr.mxu0 0.0
    %835 = vmatpush2.msra.mxu0 0.0
    %836 = vmatprep.subr.mxu0 0.0
    %837 = vmatpush2.msra.mxu0 0.0
    %838 = vmatprep.subr.mxu0 0.0
    %839 = vmatpush2.msra.mxu0 0.0
    %840 = vmatprep.subr.mxu0 0.0
    %841 = vmatpush2.msra.mxu0 0.0
    %842 = vmatprep.subr.mxu0 0.0
    %843 = vmatpush2.msra.mxu0 0.0
    %844 = vmatprep.subr.mxu0 0.0
    %845 = vmatpush2.msra.mxu0 0.0
    %846 = vmatprep.subr.mxu0 0.0
    %847 = vmatpush2.msra.mxu0 0.0
    %848 = vmatprep.subr.mxu0 0.0
    %849 = vmatpush2.msra.mxu0 0.0
    %850 = vmatprep.subr.mxu0 0.0
    %851 = vmatpush2.msra.mxu0 0.0
    %852 = vmatprep.subr.mxu0 0.0
    %853 = vmatpush2.msra.mxu0 0.0
    %854 = vmatprep.subr.mxu0 0.0
    %855 = vmatpush2.msra.mxu0 0.0
    %856 = vmatprep.subr.mxu0 0.0
    %857 = vmatpush2.msra.mxu0 0.0
    %858 = vmatprep.subr.mxu0 0.0
    %859 = vmatpush2.msra.mxu0 0.0
    %860 = vmatprep.subr.mxu0 0.0
    %861 = vmatpush2.msra.mxu0 0.0
    %862 = vmatprep.mubr.f32.mxu0 0.0
    %863 = vmatmul.mubr.f32.gmra.mxu0 %v718
    %v864 = vpop.f32.mrf.mxu0
    %v865 = vadd.f32 %v711, %v864
    %v866 = vpop.f32.mrf.mxu0
    %867 = vmatprep.mubr.f32.mxu0 0.0
    %868 = vmatmul.mubr.f32.gmra.mxu0 %v721
    %v869 = vpop.f32.mrf.mxu0
    %v870 = vadd.f32 %v712, %v869
    %v871 = vpop.f32.mrf.mxu0
    %872 = vdwg.mxu0
    %873 = vmatprep.subr.mxu0 0.0
    %874 = vmatpush1.msra.mxu0 0.0
    %875 = vmatprep.subr.mxu0 0.0
    %876 = vmatpush1.msra.mxu0 0.0
    %877 = vmatprep.subr.mxu0 0.0
    %878 = vmatpush1.msra.mxu0 0.0
    %879 = vmatprep.subr.mxu0 0.0
    %880 = vmatpush1.msra.mxu0 0.0
    %881 = vmatprep.subr.mxu0 0.0
    %882 = vmatpush1.msra.mxu0 0.0
    %883 = vmatprep.subr.mxu0 0.0
    %884 = vmatpush1.msra.mxu0 0.0
    %885 = vmatprep.subr.mxu0 0.0
    %886 = vmatpush1.msra.mxu0 0.0
    %887 = vmatprep.subr.mxu0 0.0
    %888 = vmatpush1.msra.mxu0 0.0
    %889 = vmatprep.subr.mxu0 0.0
    %890 = vmatpush1.msra.mxu0 0.0
    %891 = vmatprep.subr.mxu0 0.0
    %892 = vmatpush1.msra.mxu0 0.0
    %893 = vmatprep.subr.mxu0 0.0
    %894 = vmatpush1.msra.mxu0 0.0
    %895 = vmatprep.subr.mxu0 0.0
    %896 = vmatpush1.msra.mxu0 0.0
    %897 = vmatprep.subr.mxu0 0.0
    %898 = vmatpush1.msra.mxu0 0.0
    %899 = vmatprep.subr.mxu0 0.0
    %900 = vmatpush1.msra.mxu0 0.0
    %901 = vmatprep.subr.mxu0 0.0
    %902 = vmatpush1.msra.mxu0 %v73
    %903 = vmatprep.subr.mxu0 0.0
    %904 = vmatpush1.msra.mxu0 %v72
    %905 = vmatprep.subr.mxu0 0.0
    %906 = vmatpush2.msra.mxu0 0.0
    %907 = vmatprep.subr.mxu0 0.0
    %908 = vmatpush2.msra.mxu0 0.0
    %909 = vmatprep.subr.mxu0 0.0
    %910 = vmatpush2.msra.mxu0 0.0
    %911 = vmatprep.subr.mxu0 0.0
    %912 = vmatpush2.msra.mxu0 0.0
    %913 = vmatprep.subr.mxu0 0.0
    %914 = vmatpush2.msra.mxu0 0.0
    %915 = vmatprep.subr.mxu0 0.0
    %916 = vmatpush2.msra.mxu0 0.0
    %917 = vmatprep.subr.mxu0 0.0
    %918 = vmatpush2.msra.mxu0 0.0
    %919 = vmatprep.subr.mxu0 0.0
    %920 = vmatpush2.msra.mxu0 0.0
    %921 = vmatprep.subr.mxu0 0.0
    %922 = vmatpush2.msra.mxu0 0.0
    %923 = vmatprep.subr.mxu0 0.0
    %924 = vmatpush2.msra.mxu0 0.0
    %925 = vmatprep.subr.mxu0 0.0
    %926 = vmatpush2.msra.mxu0 0.0
    %927 = vmatprep.subr.mxu0 0.0
    %928 = vmatpush2.msra.mxu0 0.0
    %929 = vmatprep.subr.mxu0 0.0
    %930 = vmatpush2.msra.mxu0 0.0
    %931 = vmatprep.subr.mxu0 0.0
    %932 = vmatpush2.msra.mxu0 0.0
    %933 = vmatprep.subr.mxu0 0.0
    %934 = vmatpush2.msra.mxu0 0.0
    %935 = vmatprep.subr.mxu0 0.0
    %936 = vmatpush2.msra.mxu0 0.0
    %937 = vmatprep.mubr.f32.mxu0 0.0
    %938 = vmatmul.mubr.f32.gmra.mxu0 %v718
    %v939 = vpop.f32.mrf.mxu0
    %v940 = vadd.f32 %v713, %v939
    %v941 = vpop.f32.mrf.mxu0
    %942 = vmatprep.mubr.f32.mxu0 0.0
    %943 = vmatmul.mubr.f32.gmra.mxu0 %v721
    %v944 = vpop.f32.mrf.mxu0
    %v945 = vadd.f32 %v714, %v944
    %v946 = vpop.f32.mrf.mxu0
    %947 = vdwg.mxu0
    %948 = vmatprep.subr.mxu0 0.0
    %949 = vmatpush1.msra.mxu0 0.0
    %950 = vmatprep.subr.mxu0 0.0
    %951 = vmatpush1.msra.mxu0 0.0
    %952 = vmatprep.subr.mxu0 0.0
    %953 = vmatpush1.msra.mxu0 0.0
    %954 = vmatprep.subr.mxu0 0.0
    %955 = vmatpush1.msra.mxu0 0.0
    %956 = vmatprep.subr.mxu0 0.0
    %957 = vmatpush1.msra.mxu0 0.0
    %958 = vmatprep.subr.mxu0 0.0
    %959 = vmatpush1.msra.mxu0 0.0
    %960 = vmatprep.subr.mxu0 0.0
    %961 = vmatpush1.msra.mxu0 0.0
    %962 = vmatprep.subr.mxu0 0.0
    %963 = vmatpush1.msra.mxu0 0.0
    %964 = vmatprep.subr.mxu0 0.0
    %965 = vmatpush1.msra.mxu0 0.0
    %966 = vmatprep.subr.mxu0 0.0
    %967 = vmatpush1.msra.mxu0 0.0
    %968 = vmatprep.subr.mxu0 0.0
    %969 = vmatpush1.msra.mxu0 0.0
    %970 = vmatprep.subr.mxu0 0.0
    %971 = vmatpush1.msra.mxu0 0.0
    %972 = vmatprep.subr.mxu0 0.0
    %973 = vmatpush1.msra.mxu0 0.0
    %974 = vmatprep.subr.mxu0 0.0
    %975 = vmatpush1.msra.mxu0 0.0
    %976 = vmatprep.subr.mxu0 0.0
    %977 = vmatpush1.msra.mxu0 %v75
    %978 = vmatprep.subr.mxu0 0.0
    %979 = vmatpush1.msra.mxu0 %v74
    %980 = vmatprep.subr.mxu0 0.0
    %981 = vmatpush2.msra.mxu0 0.0
    %982 = vmatprep.subr.mxu0 0.0
    %983 = vmatpush2.msra.mxu0 0.0
    %984 = vmatprep.subr.mxu0 0.0
    %985 = vmatpush2.msra.mxu0 0.0
    %986 = vmatprep.subr.mxu0 0.0
    %987 = vmatpush2.msra.mxu0 0.0
    %988 = vmatprep.subr.mxu0 0.0
    %989 = vmatpush2.msra.mxu0 0.0
    %990 = vmatprep.subr.mxu0 0.0
    %991 = vmatpush2.msra.mxu0 0.0
    %992 = vmatprep.subr.mxu0 0.0
    %993 = vmatpush2.msra.mxu0 0.0
    %994 = vmatprep.subr.mxu0 0.0
    %995 = vmatpush2.msra.mxu0 0.0
    %996 = vmatprep.subr.mxu0 0.0
    %997 = vmatpush2.msra.mxu0 0.0
    %998 = vmatprep.subr.mxu0 0.0
    %999 = vmatpush2.msra.mxu0 0.0
    %1000 = vmatprep.subr.mxu0 0.0
    %1001 = vmatpush2.msra.mxu0 0.0
    %1002 = vmatprep.subr.mxu0 0.0
    %1003 = vmatpush2.msra.mxu0 0.0
    %1004 = vmatprep.subr.mxu0 0.0
    %1005 = vmatpush2.msra.mxu0 0.0
    %1006 = vmatprep.subr.mxu0 0.0
    %1007 = vmatpush2.msra.mxu0 0.0
    %1008 = vmatprep.subr.mxu0 0.0
    %1009 = vmatpush2.msra.mxu0 0.0
    %1010 = vmatprep.subr.mxu0 0.0
    %1011 = vmatpush2.msra.mxu0 0.0
    %1012 = vmatprep.mubr.f32.mxu0 0.0
    %1013 = vmatmul.mubr.f32.gmra.mxu0 %v718
    %v1014 = vpop.f32.mrf.mxu0
    %v1015 = vadd.f32 %v715, %v1014
    %v1016 = vpop.f32.mrf.mxu0
    %1017 = vmatprep.mubr.f32.mxu0 0.0
    %1018 = vmatmul.mubr.f32.gmra.mxu0 %v721
    %v1019 = vpop.f32.mrf.mxu0
    %v1020 = vadd.f32 %v716, %v1019
    %v1021 = vpop.f32.mrf.mxu0
    %1022 = vdwg.mxu0
    %v1023 = vld [vmem:[%s11] sm:$0xff]
    %v1024 = vld [vmem:[%s10] sm:$0x1]
    %s1025 = sld [smem:[#allocation2]]
    %vm1026 = vcmask 64512
    %v1028 = vsel %vm1026, %v162, 0
    %v1031 = vsel %vm1026, %v476, 0
    %1033 = vmatprep.subr.mxu0 0.0
    %1034 = vmatpush1.xpose.msra.mxu0 0.0
    %1035 = vmatprep.subr.mxu0 0.0
    %1036 = vmatpush1.xpose.msra.mxu0 0.0
    %1037 = vmatprep.subr.mxu0 0.0
    %1038 = vmatpush1.xpose.msra.mxu0 0.0
    %1039 = vmatprep.subr.mxu0 0.0
    %1040 = vmatpush1.xpose.msra.mxu0 0.0
    %1041 = vmatprep.subr.mxu0 0.0
    %1042 = vmatpush1.xpose.msra.mxu0 0.0
    %1043 = vmatprep.subr.mxu0 0.0
    %1044 = vmatpush1.xpose.msra.mxu0 0.0
    %1045 = vmatprep.subr.mxu0 0.0
    %1046 = vmatpush1.xpose.msra.mxu0 0.0
    %1047 = vmatprep.subr.mxu0 0.0
    %1048 = vmatpush1.xpose.msra.mxu0 0.0
    %1049 = vmatprep.subr.mxu0 0.0
    %1050 = vmatpush1.xpose.msra.mxu0 0.0
    %1051 = vmatprep.subr.mxu0 0.0
    %1052 = vmatpush1.xpose.msra.mxu0 0.0
    %1053 = vmatprep.subr.mxu0 0.0
    %1054 = vmatpush1.xpose.msra.mxu0 0.0
    %1055 = vmatprep.subr.mxu0 0.0
    %1056 = vmatpush1.xpose.msra.mxu0 0.0
    %1057 = vmatprep.subr.mxu0 0.0
    %1058 = vmatpush1.xpose.msra.mxu0 0.0
    %1059 = vmatprep.subr.mxu0 0.0
    %1060 = vmatpush1.xpose.msra.mxu0 0.0
    %1061 = vmatprep.subr.mxu0 0.0
    %1062 = vmatpush1.xpose.msra.mxu0 0.0
    %1063 = vmatprep.subr.mxu0 0.0
    %1064 = vmatpush1.xpose.msra.mxu0 %v1031
    %1065 = vmatprep.subr.mxu0 0.0
    %1066 = vmatpush2.xpose.msra.mxu0 0.0
    %1067 = vmatprep.subr.mxu0 0.0
    %1068 = vmatpush2.xpose.msra.mxu0 0.0
    %1069 = vmatprep.subr.mxu0 0.0
    %1070 = vmatpush2.xpose.msra.mxu0 0.0
    %1071 = vmatprep.subr.mxu0 0.0
    %1072 = vmatpush2.xpose.msra.mxu0 0.0
    %1073 = vmatprep.subr.mxu0 0.0
    %1074 = vmatpush2.xpose.msra.mxu0 0.0
    %1075 = vmatprep.subr.mxu0 0.0
    %1076 = vmatpush2.xpose.msra.mxu0 0.0
    %1077 = vmatprep.subr.mxu0 0.0
    %1078 = vmatpush2.xpose.msra.mxu0 0.0
    %1079 = vmatprep.subr.mxu0 0.0
    %1080 = vmatpush2.xpose.msra.mxu0 0.0
    %1081 = vmatprep.subr.mxu0 0.0
    %1082 = vmatpush2.xpose.msra.mxu0 0.0
    %1083 = vmatprep.subr.mxu0 0.0
    %1084 = vmatpush2.xpose.msra.mxu0 0.0
    %1085 = vmatprep.subr.mxu0 0.0
    %1086 = vmatpush2.xpose.msra.mxu0 0.0
    %1087 = vmatprep.subr.mxu0 0.0
    %1088 = vmatpush2.xpose.msra.mxu0 0.0
    %1089 = vmatprep.subr.mxu0 0.0
    %1090 = vmatpush2.xpose.msra.mxu0 0.0
    %1091 = vmatprep.subr.mxu0 0.0
    %1092 = vmatpush2.xpose.msra.mxu0 0.0
    %1093 = vmatprep.subr.mxu0 0.0
    %1094 = vmatpush2.xpose.msra.mxu0 0.0
    %1095 = vmatprep.subr.mxu0 0.0
    %1096 = vmatpush2.xpose.msra.mxu0 0.0
    %1097 = vmatprep.mubr.f32.mxu0 0.0
    %1098 = vmatmul.mubr.f32.gmra.mxu0 %v1028
    %v1099 = vpop.f32.mrf.mxu0
    %v1100 = vadd.f32 0.0, %v1099
    %v1101 = vpop.f32.mrf.mxu0
    %1102 = vdwg.mxu0
    %v1104 = vsel %vm1026, %v237, 0
    %v1107 = vsel %vm1026, %v551, 0
    %1109 = vmatprep.subr.mxu0 0.0
    %1110 = vmatpush1.xpose.msra.mxu0 0.0
    %1111 = vmatprep.subr.mxu0 0.0
    %1112 = vmatpush1.xpose.msra.mxu0 0.0
    %1113 = vmatprep.subr.mxu0 0.0
    %1114 = vmatpush1.xpose.msra.mxu0 0.0
    %1115 = vmatprep.subr.mxu0 0.0
    %1116 = vmatpush1.xpose.msra.mxu0 0.0
    %1117 = vmatprep.subr.mxu0 0.0
    %1118 = vmatpush1.xpose.msra.mxu0 0.0
    %1119 = vmatprep.subr.mxu0 0.0
    %1120 = vmatpush1.xpose.msra.mxu0 0.0
    %1121 = vmatprep.subr.mxu0 0.0
    %1122 = vmatpush1.xpose.msra.mxu0 0.0
    %1123 = vmatprep.subr.mxu0 0.0
    %1124 = vmatpush1.xpose.msra.mxu0 0.0
    %1125 = vmatprep.subr.mxu0 0.0
    %1126 = vmatpush1.xpose.msra.mxu0 0.0
    %1127 = vmatprep.subr.mxu0 0.0
    %1128 = vmatpush1.xpose.msra.mxu0 0.0
    %1129 = vmatprep.subr.mxu0 0.0
    %1130 = vmatpush1.xpose.msra.mxu0 0.0
    %1131 = vmatprep.subr.mxu0 0.0
    %1132 = vmatpush1.xpose.msra.mxu0 0.0
    %1133 = vmatprep.subr.mxu0 0.0
    %1134 = vmatpush1.xpose.msra.mxu0 0.0
    %1135 = vmatprep.subr.mxu0 0.0
    %1136 = vmatpush1.xpose.msra.mxu0 0.0
    %1137 = vmatprep.subr.mxu0 0.0
    %1138 = vmatpush1.xpose.msra.mxu0 0.0
    %1139 = vmatprep.subr.mxu0 0.0
    %1140 = vmatpush1.xpose.msra.mxu0 %v1107
    %1141 = vmatprep.subr.mxu0 0.0
    %1142 = vmatpush2.xpose.msra.mxu0 0.0
    %1143 = vmatprep.subr.mxu0 0.0
    %1144 = vmatpush2.xpose.msra.mxu0 0.0
    %1145 = vmatprep.subr.mxu0 0.0
    %1146 = vmatpush2.xpose.msra.mxu0 0.0
    %1147 = vmatprep.subr.mxu0 0.0
    %1148 = vmatpush2.xpose.msra.mxu0 0.0
    %1149 = vmatprep.subr.mxu0 0.0
    %1150 = vmatpush2.xpose.msra.mxu0 0.0
    %1151 = vmatprep.subr.mxu0 0.0
    %1152 = vmatpush2.xpose.msra.mxu0 0.0
    %1153 = vmatprep.subr.mxu0 0.0
    %1154 = vmatpush2.xpose.msra.mxu0 0.0
    %1155 = vmatprep.subr.mxu0 0.0
    %1156 = vmatpush2.xpose.msra.mxu0 0.0
    %1157 = vmatprep.subr.mxu0 0.0
    %1158 = vmatpush2.xpose.msra.mxu0 0.0
    %1159 = vmatprep.subr.mxu0 0.0
    %1160 = vmatpush2.xpose.msra.mxu0 0.0
    %1161 = vmatprep.subr.mxu0 0.0
    %1162 = vmatpush2.xpose.msra.mxu0 0.0
    %1163 = vmatprep.subr.mxu0 0.0
    %1164 = vmatpush2.xpose.msra.mxu0 0.0
    %1165 = vmatprep.subr.mxu0 0.0
    %1166 = vmatpush2.xpose.msra.mxu0 0.0
    %1167 = vmatprep.subr.mxu0 0.0
    %1168 = vmatpush2.xpose.msra.mxu0 0.0
    %1169 = vmatprep.subr.mxu0 0.0
    %1170 = vmatpush2.xpose.msra.mxu0 0.0
    %1171 = vmatprep.subr.mxu0 0.0
    %1172 = vmatpush2.xpose.msra.mxu0 0.0
    %1173 = vmatprep.mubr.f32.mxu0 0.0
    %1174 = vmatmul.mubr.f32.gmra.mxu0 %v1104
    %v1175 = vpop.f32.mrf.mxu0
    %v1176 = vadd.f32 0.0, %v1175
    %v1177 = vpop.f32.mrf.mxu0
    %1178 = vdwg.mxu0
    %v1180 = vsel %vm1026, %v312, 0
    %v1183 = vsel %vm1026, %v626, 0
    %1185 = vmatprep.subr.mxu0 0.0
    %1186 = vmatpush1.xpose.msra.mxu0 0.0
    %1187 = vmatprep.subr.mxu0 0.0
    %1188 = vmatpush1.xpose.msra.mxu0 0.0
    %1189 = vmatprep.subr.mxu0 0.0
    %1190 = vmatpush1.xpose.msra.mxu0 0.0
    %1191 = vmatprep.subr.mxu0 0.0
    %1192 = vmatpush1.xpose.msra.mxu0 0.0
    %1193 = vmatprep.subr.mxu0 0.0
    %1194 = vmatpush1.xpose.msra.mxu0 0.0
    %1195 = vmatprep.subr.mxu0 0.0
    %1196 = vmatpush1.xpose.msra.mxu0 0.0
    %1197 = vmatprep.subr.mxu0 0.0
    %1198 = vmatpush1.xpose.msra.mxu0 0.0
    %1199 = vmatprep.subr.mxu0 0.0
    %1200 = vmatpush1.xpose.msra.mxu0 0.0
    %1201 = vmatprep.subr.mxu0 0.0
    %1202 = vmatpush1.xpose.msra.mxu0 0.0
    %1203 = vmatprep.subr.mxu0 0.0
    %1204 = vmatpush1.xpose.msra.mxu0 0.0
    %1205 = vmatprep.subr.mxu0 0.0
    %1206 = vmatpush1.xpose.msra.mxu0 0.0
    %1207 = vmatprep.subr.mxu0 0.0
    %1208 = vmatpush1.xpose.msra.mxu0 0.0
    %1209 = vmatprep.subr.mxu0 0.0
    %1210 = vmatpush1.xpose.msra.mxu0 0.0
    %1211 = vmatprep.subr.mxu0 0.0
    %1212 = vmatpush1.xpose.msra.mxu0 0.0
    %1213 = vmatprep.subr.mxu0 0.0
    %1214 = vmatpush1.xpose.msra.mxu0 0.0
    %1215 = vmatprep.subr.mxu0 0.0
    %1216 = vmatpush1.xpose.msra.mxu0 %v1183
    %1217 = vmatprep.subr.mxu0 0.0
    %1218 = vmatpush2.xpose.msra.mxu0 0.0
    %1219 = vmatprep.subr.mxu0 0.0
    %1220 = vmatpush2.xpose.msra.mxu0 0.0
    %1221 = vmatprep.subr.mxu0 0.0
    %1222 = vmatpush2.xpose.msra.mxu0 0.0
    %1223 = vmatprep.subr.mxu0 0.0
    %1224 = vmatpush2.xpose.msra.mxu0 0.0
    %1225 = vmatprep.subr.mxu0 0.0
    %1226 = vmatpush2.xpose.msra.mxu0 0.0
    %1227 = vmatprep.subr.mxu0 0.0
    %1228 = vmatpush2.xpose.msra.mxu0 0.0
    %1229 = vmatprep.subr.mxu0 0.0
    %1230 = vmatpush2.xpose.msra.mxu0 0.0
    %1231 = vmatprep.subr.mxu0 0.0
    %1232 = vmatpush2.xpose.msra.mxu0 0.0
    %1233 = vmatprep.subr.mxu0 0.0
    %1234 = vmatpush2.xpose.msra.mxu0 0.0
    %1235 = vmatprep.subr.mxu0 0.0
    %1236 = vmatpush2.xpose.msra.mxu0 0.0
    %1237 = vmatprep.subr.mxu0 0.0
    %1238 = vmatpush2.xpose.msra.mxu0 0.0
    %1239 = vmatprep.subr.mxu0 0.0
    %1240 = vmatpush2.xpose.msra.mxu0 0.0
    %1241 = vmatprep.subr.mxu0 0.0
    %1242 = vmatpush2.xpose.msra.mxu0 0.0
    %1243 = vmatprep.subr.mxu0 0.0
    %1244 = vmatpush2.xpose.msra.mxu0 0.0
    %1245 = vmatprep.subr.mxu0 0.0
    %1246 = vmatpush2.xpose.msra.mxu0 0.0
    %1247 = vmatprep.subr.mxu0 0.0
    %1248 = vmatpush2.xpose.msra.mxu0 0.0
    %1249 = vmatprep.mubr.f32.mxu0 0.0
    %1250 = vmatmul.mubr.f32.gmra.mxu0 %v1180
    %v1251 = vpop.f32.mrf.mxu0
    %v1252 = vadd.f32 0.0, %v1251
    %v1253 = vpop.f32.mrf.mxu0
    %1254 = vdwg.mxu0
    %v1256 = vsel %vm1026, %v387, 0
    %v1259 = vsel %vm1026, %v701, 0
    %1261 = vmatprep.subr.mxu0 0.0
    %1262 = vmatpush1.xpose.msra.mxu0 0.0
    %1263 = vmatprep.subr.mxu0 0.0
    %1264 = vmatpush1.xpose.msra.mxu0 0.0
    %1265 = vmatprep.subr.mxu0 0.0
    %1266 = vmatpush1.xpose.msra.mxu0 0.0
    %1267 = vmatprep.subr.mxu0 0.0
    %1268 = vmatpush1.xpose.msra.mxu0 0.0
    %1269 = vmatprep.subr.mxu0 0.0
    %1270 = vmatpush1.xpose.msra.mxu0 0.0
    %1271 = vmatprep.subr.mxu0 0.0
    %1272 = vmatpush1.xpose.msra.mxu0 0.0
    %1273 = vmatprep.subr.mxu0 0.0
    %1274 = vmatpush1.xpose.msra.mxu0 0.0
    %1275 = vmatprep.subr.mxu0 0.0
    %1276 = vmatpush1.xpose.msra.mxu0 0.0
    %1277 = vmatprep.subr.mxu0 0.0
    %1278 = vmatpush1.xpose.msra.mxu0 0.0
    %1279 = vmatprep.subr.mxu0 0.0
    %1280 = vmatpush1.xpose.msra.mxu0 0.0
    %1281 = vmatprep.subr.mxu0 0.0
    %1282 = vmatpush1.xpose.msra.mxu0 0.0
    %1283 = vmatprep.subr.mxu0 0.0
    %1284 = vmatpush1.xpose.msra.mxu0 0.0
    %1285 = vmatprep.subr.mxu0 0.0
    %1286 = vmatpush1.xpose.msra.mxu0 0.0
    %1287 = vmatprep.subr.mxu0 0.0
    %1288 = vmatpush1.xpose.msra.mxu0 0.0
    %1289 = vmatprep.subr.mxu0 0.0
    %1290 = vmatpush1.xpose.msra.mxu0 0.0
    %1291 = vmatprep.subr.mxu0 0.0
    %1292 = vmatpush1.xpose.msra.mxu0 %v1259
    %1293 = vmatprep.subr.mxu0 0.0
    %1294 = vmatpush2.xpose.msra.mxu0 0.0
    %1295 = vmatprep.subr.mxu0 0.0
    %1296 = vmatpush2.xpose.msra.mxu0 0.0
    %1297 = vmatprep.subr.mxu0 0.0
    %1298 = vmatpush2.xpose.msra.mxu0 0.0
    %1299 = vmatprep.subr.mxu0 0.0
    %1300 = vmatpush2.xpose.msra.mxu0 0.0
    %1301 = vmatprep.subr.mxu0 0.0
    %1302 = vmatpush2.xpose.msra.mxu0 0.0
    %1303 = vmatprep.subr.mxu0 0.0
    %1304 = vmatpush2.xpose.msra.mxu0 0.0
    %1305 = vmatprep.subr.mxu0 0.0
    %1306 = vmatpush2.xpose.msra.mxu0 0.0
    %1307 = vmatprep.subr.mxu0 0.0
    %1308 = vmatpush2.xpose.msra.mxu0 0.0
    %1309 = vmatprep.subr.mxu0 0.0
    %1310 = vmatpush2.xpose.msra.mxu0 0.0
    %1311 = vmatprep.subr.mxu0 0.0
    %1312 = vmatpush2.xpose.msra.mxu0 0.0
    %1313 = vmatprep.subr.mxu0 0.0
    %1314 = vmatpush2.xpose.msra.mxu0 0.0
    %1315 = vmatprep.subr.mxu0 0.0
    %1316 = vmatpush2.xpose.msra.mxu0 0.0
    %1317 = vmatprep.subr.mxu0 0.0
    %1318 = vmatpush2.xpose.msra.mxu0 0.0
    %1319 = vmatprep.subr.mxu0 0.0
    %1320 = vmatpush2.xpose.msra.mxu0 0.0
    %1321 = vmatprep.subr.mxu0 0.0
    %1322 = vmatpush2.xpose.msra.mxu0 0.0
    %1323 = vmatprep.subr.mxu0 0.0
    %1324 = vmatpush2.xpose.msra.mxu0 0.0
    %1325 = vmatprep.mubr.f32.mxu0 0.0
    %1326 = vmatmul.mubr.f32.gmra.mxu0 %v1256
    %v1327 = vpop.f32.mrf.mxu0
    %v1328 = vadd.f32 0.0, %v1327
    %v1329 = vpop.f32.mrf.mxu0
    %1330 = vdwg.mxu0
    %v1331 = vmul.f32 %v1100, 0.35355338
    %v1332 = vmul.f32 %v1176, 0.35355338
    %v1333 = vmul.f32 %v1252, 0.35355338
    %v1334 = vmul.f32 %v1328, 0.35355338
    %v1335 = vadd.f32 %v1331, %v1023
    %v1336 = vadd.f32 %v1332, %v1023
    %v1337 = vadd.f32 %v1333, %v1023
    %v1338 = vadd.f32 %v1334, %v1023
    %v1339 = vsel %vm1026, %v1335, -inf
    %1340 = vmax.xlane.f32.xlu0 %v1339
    %v1341 = vpop.xlane.xlu0 %1340
    %v1342 = vsel %vm1026, %v1336, -inf
    %1343 = vmax.xlane.f32.xlu0 %v1342
    %v1344 = vpop.xlane.xlu0 %1343
    %v1345 = vsel %vm1026, %v1337, -inf
    %1346 = vmax.xlane.f32.xlu0 %v1345
    %v1347 = vpop.xlane.xlu0 %1346
    %v1348 = vsel %vm1026, %v1338, -inf
    %1349 = vmax.xlane.f32.xlu0 %v1348
    %v1350 = vpop.xlane.xlu0 %1349
    %v1351 = vsub.f32 %v1335, %v1341
    %v1352 = vsub.f32 %v1336, %v1344
    %v1353 = vsub.f32 %v1337, %v1347
    %v1354 = vsub.f32 %v1338, %v1350
    %v1355 = vmul.f32 %v1351, 1.442695
    %v1356 = vpow.pop %v1355
    %v1357 = vmul.f32 %v1352, 1.442695
    %v1358 = vpow.pop %v1357
    %v1359 = vmul.f32 %v1353, 1.442695
    %v1360 = vpow.pop %v1359
    %v1361 = vmul.f32 %v1354, 1.442695
    %v1362 = vpow.pop %v1361
    %v1363 = vsel %vm1026, %v1356, 0.0
    %1364 = vadd.xlane.f32.xlu0 %v1363
    %v1365 = vpop.xlane.xlu0 %1364
    %v1366 = vsel %vm1026, %v1358, 0.0
    %1367 = vadd.xlane.f32.xlu0 %v1366
    %v1368 = vpop.xlane.xlu0 %1367
    %v1369 = vsel %vm1026, %v1360, 0.0
    %1370 = vadd.xlane.f32.xlu0 %v1369
    %v1371 = vpop.xlane.xlu0 %1370
    %v1372 = vsel %vm1026, %v1362, 0.0
    %1373 = vadd.xlane.f32.xlu0 %v1372
    %v1374 = vpop.xlane.xlu0 %1373
    %v1375 = vrcp.pop %v1365
    %v1376 = vrcp.pop %v1368
    %v1377 = vrcp.pop %v1371
    %v1378 = vrcp.pop %v1374
    %v1379 = vmul.f32 %v1356, %v1375
    %v1380 = vmul.f32 %v1358, %v1376
    %v1381 = vmul.f32 %v1360, %v1377
    %v1382 = vmul.f32 %v1362, %v1378
    %v1384 = vsel %vm1026, %v1379, 0
    %1386 = vmatprep.subr.mxu0 0.0
    %1387 = vmatpush1.msra.mxu0 0.0
    %1388 = vmatprep.subr.mxu0 0.0
    %1389 = vmatpush1.msra.mxu0 0.0
    %1390 = vmatprep.subr.mxu0 0.0
    %1391 = vmatpush1.msra.mxu0 0.0
    %1392 = vmatprep.subr.mxu0 0.0
    %1393 = vmatpush1.msra.mxu0 0.0
    %1394 = vmatprep.subr.mxu0 0.0
    %1395 = vmatpush1.msra.mxu0 0.0
    %1396 = vmatprep.subr.mxu0 0.0
    %1397 = vmatpush1.msra.mxu0 0.0
    %1398 = vmatprep.subr.mxu0 0.0
    %1399 = vmatpush1.msra.mxu0 0.0
    %1400 = vmatprep.subr.mxu0 0.0
    %1401 = vmatpush1.msra.mxu0 0.0
    %1402 = vmatprep.subr.mxu0 0.0
    %1403 = vmatpush1.msra.mxu0 0.0
    %1404 = vmatprep.subr.mxu0 0.0
    %1405 = vmatpush1.msra.mxu0 0.0
    %1406 = vmatprep.subr.mxu0 0.0
    %1407 = vmatpush1.msra.mxu0 0.0
    %1408 = vmatprep.subr.mxu0 0.0
    %1409 = vmatpush1.msra.mxu0 0.0
    %1410 = vmatprep.subr.mxu0 0.0
    %1411 = vmatpush1.msra.mxu0 0.0
    %1412 = vmatprep.subr.mxu0 0.0
    %1413 = vmatpush1.msra.mxu0 0.0
    %1414 = vmatprep.subr.mxu0 0.0
    %1415 = vmatpush1.msra.mxu0 0.0
    %1416 = vmatprep.subr.mxu0 0.0
    %1417 = vmatpush1.msra.mxu0 %v790
    %1418 = vmatprep.subr.mxu0 0.0
    %1419 = vmatpush2.msra.mxu0 0.0
    %1420 = vmatprep.subr.mxu0 0.0
    %1421 = vmatpush2.msra.mxu0 0.0
    %1422 = vmatprep.subr.mxu0 0.0
    %1423 = vmatpush2.msra.mxu0 0.0
    %1424 = vmatprep.subr.mxu0 0.0
    %1425 = vmatpush2.msra.mxu0 0.0
    %1426 = vmatprep.subr.mxu0 0.0
    %1427 = vmatpush2.msra.mxu0 0.0
    %1428 = vmatprep.subr.mxu0 0.0
    %1429 = vmatpush2.msra.mxu0 0.0
    %1430 = vmatprep.subr.mxu0 0.0
    %1431 = vmatpush2.msra.mxu0 0.0
    %1432 = vmatprep.subr.mxu0 0.0
    %1433 = vmatpush2.msra.mxu0 0.0
    %1434 = vmatprep.subr.mxu0 0.0
    %1435 = vmatpush2.msra.mxu0 0.0
    %1436 = vmatprep.subr.mxu0 0.0
    %1437 = vmatpush2.msra.mxu0 0.0
    %1438 = vmatprep.subr.mxu0 0.0
    %1439 = vmatpush2.msra.mxu0 0.0
    %1440 = vmatprep.subr.mxu0 0.0
    %1441 = vmatpush2.msra.mxu0 0.0
    %1442 = vmatprep.subr.mxu0 0.0
    %1443 = vmatpush2.msra.mxu0 0.0
    %1444 = vmatprep.subr.mxu0 0.0
    %1445 = vmatpush2.msra.mxu0 0.0
    %1446 = vmatprep.subr.mxu0 0.0
    %1447 = vmatpush2.msra.mxu0 0.0
    %1448 = vmatprep.subr.mxu0 0.0
    %1449 = vmatpush2.msra.mxu0 0.0
    %1450 = vmatprep.mubr.f32.mxu0 0.0
    %1451 = vmatmul.mubr.f32.gmra.mxu0 %v1384
    %v1452 = vpop.f32.mrf.mxu0
    %v1453 = vadd.f32 0.0, %v1452
    %v1454 = vpop.f32.mrf.mxu0
    %1455 = vdwg.mxu0
    %v1457 = vsel %vm1026, %v1380, 0
    %1459 = vmatprep.subr.mxu0 0.0
    %1460 = vmatpush1.msra.mxu0 0.0
    %1461 = vmatprep.subr.mxu0 0.0
    %1462 = vmatpush1.msra.mxu0 0.0
    %1463 = vmatprep.subr.mxu0 0.0
    %1464 = vmatpush1.msra.mxu0 0.0
    %1465 = vmatprep.subr.mxu0 0.0
    %1466 = vmatpush1.msra.mxu0 0.0
    %1467 = vmatprep.subr.mxu0 0.0
    %1468 = vmatpush1.msra.mxu0 0.0
    %1469 = vmatprep.subr.mxu0 0.0
    %1470 = vmatpush1.msra.mxu0 0.0
    %1471 = vmatprep.subr.mxu0 0.0
    %1472 = vmatpush1.msra.mxu0 0.0
    %1473 = vmatprep.subr.mxu0 0.0
    %1474 = vmatpush1.msra.mxu0 0.0
    %1475 = vmatprep.subr.mxu0 0.0
    %1476 = vmatpush1.msra.mxu0 0.0
    %1477 = vmatprep.subr.mxu0 0.0
    %1478 = vmatpush1.msra.mxu0 0.0
    %1479 = vmatprep.subr.mxu0 0.0
    %1480 = vmatpush1.msra.mxu0 0.0
    %1481 = vmatprep.subr.mxu0 0.0
    %1482 = vmatpush1.msra.mxu0 0.0
    %1483 = vmatprep.subr.mxu0 0.0
    %1484 = vmatpush1.msra.mxu0 0.0
    %1485 = vmatprep.subr.mxu0 0.0
    %1486 = vmatpush1.msra.mxu0 0.0
    %1487 = vmatprep.subr.mxu0 0.0
    %1488 = vmatpush1.msra.mxu0 0.0
    %1489 = vmatprep.subr.mxu0 0.0
    %1490 = vmatpush1.msra.mxu0 %v865
    %1491 = vmatprep.subr.mxu0 0.0
    %1492 = vmatpush2.msra.mxu0 0.0
    %1493 = vmatprep.subr.mxu0 0.0
    %1494 = vmatpush2.msra.mxu0 0.0
    %1495 = vmatprep.subr.mxu0 0.0
    %1496 = vmatpush2.msra.mxu0 0.0
    %1497 = vmatprep.subr.mxu0 0.0
    %1498 = vmatpush2.msra.mxu0 0.0
    %1499 = vmatprep.subr.mxu0 0.0
    %1500 = vmatpush2.msra.mxu0 0.0
    %1501 = vmatprep.subr.mxu0 0.0
    %1502 = vmatpush2.msra.mxu0 0.0
    %1503 = vmatprep.subr.mxu0 0.0
    %1504 = vmatpush2.msra.mxu0 0.0
    %1505 = vmatprep.subr.mxu0 0.0
    %1506 = vmatpush2.msra.mxu0 0.0
    %1507 = vmatprep.subr.mxu0 0.0
    %1508 = vmatpush2.msra.mxu0 0.0
    %1509 = vmatprep.subr.mxu0 0.0
    %1510 = vmatpush2.msra.mxu0 0.0
    %1511 = vmatprep.subr.mxu0 0.0
    %1512 = vmatpush2.msra.mxu0 0.0
    %1513 = vmatprep.subr.mxu0 0.0
    %1514 = vmatpush2.msra.mxu0 0.0
    %1515 = vmatprep.subr.mxu0 0.0
    %1516 = vmatpush2.msra.mxu0 0.0
    %1517 = vmatprep.subr.mxu0 0.0
    %1518 = vmatpush2.msra.mxu0 0.0
    %1519 = vmatprep.subr.mxu0 0.0
    %1520 = vmatpush2.msra.mxu0 0.0
    %1521 = vmatprep.subr.mxu0 0.0
    %1522 = vmatpush2.msra.mxu0 0.0
    %1523 = vmatprep.mubr.f32.mxu0 0.0
    %1524 = vmatmul.mubr.f32.gmra.mxu0 %v1457
    %v1525 = vpop.f32.mrf.mxu0
    %v1526 = vadd.f32 0.0, %v1525
    %v1527 = vpop.f32.mrf.mxu0
    %1528 = vdwg.mxu0
    %v1530 = vsel %vm1026, %v1381, 0
    %1532 = vmatprep.subr.mxu0 0.0
    %1533 = vmatpush1.msra.mxu0 0.0
    %1534 = vmatprep.subr.mxu0 0.0
    %1535 = vmatpush1.msra.mxu0 0.0
    %1536 = vmatprep.subr.mxu0 0.0
    %1537 = vmatpush1.msra.mxu0 0.0
    %1538 = vmatprep.subr.mxu0 0.0
    %1539 = vmatpush1.msra.mxu0 0.0
    %1540 = vmatprep.subr.mxu0 0.0
    %1541 = vmatpush1.msra.mxu0 0.0
    %1542 = vmatprep.subr.mxu0 0.0
    %1543 = vmatpush1.msra.mxu0 0.0
    %1544 = vmatprep.subr.mxu0 0.0
    %1545 = vmatpush1.msra.mxu0 0.0
    %1546 = vmatprep.subr.mxu0 0.0
    %1547 = vmatpush1.msra.mxu0 0.0
    %1548 = vmatprep.subr.mxu0 0.0
    %1549 = vmatpush1.msra.mxu0 0.0
    %1550 = vmatprep.subr.mxu0 0.0
    %1551 = vmatpush1.msra.mxu0 0.0
    %1552 = vmatprep.subr.mxu0 0.0
    %1553 = vmatpush1.msra.mxu0 0.0
    %1554 = vmatprep.subr.mxu0 0.0
    %1555 = vmatpush1.msra.mxu0 0.0
    %1556 = vmatprep.subr.mxu0 0.0
    %1557 = vmatpush1.msra.mxu0 0.0
    %1558 = vmatprep.subr.mxu0 0.0
    %1559 = vmatpush1.msra.mxu0 0.0
    %1560 = vmatprep.subr.mxu0 0.0
    %1561 = vmatpush1.msra.mxu0 0.0
    %1562 = vmatprep.subr.mxu0 0.0
    %1563 = vmatpush1.msra.mxu0 %v940
    %1564 = vmatprep.subr.mxu0 0.0
    %1565 = vmatpush2.msra.mxu0 0.0
    %1566 = vmatprep.subr.mxu0 0.0
    %1567 = vmatpush2.msra.mxu0 0.0
    %1568 = vmatprep.subr.mxu0 0.0
    %1569 = vmatpush2.msra.mxu0 0.0
    %1570 = vmatprep.subr.mxu0 0.0
    %1571 = vmatpush2.msra.mxu0 0.0
    %1572 = vmatprep.subr.mxu0 0.0
    %1573 = vmatpush2.msra.mxu0 0.0
    %1574 = vmatprep.subr.mxu0 0.0
    %1575 = vmatpush2.msra.mxu0 0.0
    %1576 = vmatprep.subr.mxu0 0.0
    %1577 = vmatpush2.msra.mxu0 0.0
    %1578 = vmatprep.subr.mxu0 0.0
    %1579 = vmatpush2.msra.mxu0 0.0
    %1580 = vmatprep.subr.mxu0 0.0
    %1581 = vmatpush2.msra.mxu0 0.0
    %1582 = vmatprep.subr.mxu0 0.0
    %1583 = vmatpush2.msra.mxu0 0.0
    %1584 = vmatprep.subr.mxu0 0.0
    %1585 = vmatpush2.msra.mxu0 0.0
    %1586 = vmatprep.subr.mxu0 0.0
    %1587 = vmatpush2.msra.mxu0 0.0
    %1588 = vmatprep.subr.mxu0 0.0
    %1589 = vmatpush2.msra.mxu0 0.0
    %1590 = vmatprep.subr.mxu0 0.0
    %1591 = vmatpush2.msra.mxu0 0.0
    %1592 = vmatprep.subr.mxu0 0.0
    %1593 = vmatpush2.msra.mxu0 0.0
    %1594 = vmatprep.subr.mxu0 0.0
    %1595 = vmatpush2.msra.mxu0 0.0
    %1596 = vmatprep.mubr.f32.mxu0 0.0
    %1597 = vmatmul.mubr.f32.gmra.mxu0 %v1530
    %v1598 = vpop.f32.mrf.mxu0
    %v1599 = vadd.f32 0.0, %v1598
    %v1600 = vpop.f32.mrf.mxu0
    %1601 = vdwg.mxu0
    %v1603 = vsel %vm1026, %v1382, 0
    %1605 = vmatprep.subr.mxu0 0.0
    %1606 = vmatpush1.msra.mxu0 0.0
    %1607 = vmatprep.subr.mxu0 0.0
    %1608 = vmatpush1.msra.mxu0 0.0
    %1609 = vmatprep.subr.mxu0 0.0
    %1610 = vmatpush1.msra.mxu0 0.0
    %1611 = vmatprep.subr.mxu0 0.0
    %1612 = vmatpush1.msra.mxu0 0.0
    %1613 = vmatprep.subr.mxu0 0.0
    %1614 = vmatpush1.msra.mxu0 0.0
    %1615 = vmatprep.subr.mxu0 0.0
    %1616 = vmatpush1.msra.mxu0 0.0
    %1617 = vmatprep.subr.mxu0 0.0
    %1618 = vmatpush1.msra.mxu0 0.0
    %1619 = vmatprep.subr.mxu0 0.0
    %1620 = vmatpush1.msra.mxu0 0.0
    %1621 = vmatprep.subr.mxu0 0.0
    %1622 = vmatpush1.msra.mxu0 0.0
    %1623 = vmatprep.subr.mxu0 0.0
    %1624 = vmatpush1.msra.mxu0 0.0
    %1625 = vmatprep.subr.mxu0 0.0
    %1626 = vmatpush1.msra.mxu0 0.0
    %1627 = vmatprep.subr.mxu0 0.0
    %1628 = vmatpush1.msra.mxu0 0.0
    %1629 = vmatprep.subr.mxu0 0.0
    %1630 = vmatpush1.msra.mxu0 0.0
    %1631 = vmatprep.subr.mxu0 0.0
    %1632 = vmatpush1.msra.mxu0 0.0
    %1633 = vmatprep.subr.mxu0 0.0
    %1634 = vmatpush1.msra.mxu0 0.0
    %1635 = vmatprep.subr.mxu0 0.0
    %1636 = vmatpush1.msra.mxu0 %v1015
    %1637 = vmatprep.subr.mxu0 0.0
    %1638 = vmatpush2.msra.mxu0 0.0
    %1639 = vmatprep.subr.mxu0 0.0
    %1640 = vmatpush2.msra.mxu0 0.0
    %1641 = vmatprep.subr.mxu0 0.0
    %1642 = vmatpush2.msra.mxu0 0.0
    %1643 = vmatprep.subr.mxu0 0.0
    %1644 = vmatpush2.msra.mxu0 0.0
    %1645 = vmatprep.subr.mxu0 0.0
    %1646 = vmatpush2.msra.mxu0 0.0
    %1647 = vmatprep.subr.mxu0 0.0
    %1648 = vmatpush2.msra.mxu0 0.0
    %1649 = vmatprep.subr.mxu0 0.0
    %1650 = vmatpush2.msra.mxu0 0.0
    %1651 = vmatprep.subr.mxu0 0.0
    %1652 = vmatpush2.msra.mxu0 0.0
    %1653 = vmatprep.subr.mxu0 0.0
    %1654 = vmatpush2.msra.mxu0 0.0
    %1655 = vmatprep.subr.mxu0 0.0
    %1656 = vmatpush2.msra.mxu0 0.0
    %1657 = vmatprep.subr.mxu0 0.0
    %1658 = vmatpush2.msra.mxu0 0.0
    %1659 = vmatprep.subr.mxu0 0.0
    %1660 = vmatpush2.msra.mxu0 0.0
    %1661 = vmatprep.subr.mxu0 0.0
    %1662 = vmatpush2.msra.mxu0 0.0
    %1663 = vmatprep.subr.mxu0 0.0
    %1664 = vmatpush2.msra.mxu0 0.0
    %1665 = vmatprep.subr.mxu0 0.0
    %1666 = vmatpush2.msra.mxu0 0.0
    %1667 = vmatprep.subr.mxu0 0.0
    %1668 = vmatpush2.msra.mxu0 0.0
    %1669 = vmatprep.mubr.f32.mxu0 0.0
    %1670 = vmatmul.mubr.f32.gmra.mxu0 %v1603
    %v1671 = vpop.f32.mrf.mxu0
    %v1672 = vadd.f32 0.0, %v1671
    %v1673 = vpop.f32.mrf.mxu0
    %1674 = vdwg.mxu0
    %v1676 = vsel %vm1026, %v1453, 0
    %1678 = vmatprep.subr.mxu0 0.0
    %1679 = vmatpush1.msra.mxu0 0.0
    %1680 = vmatprep.subr.mxu0 0.0
    %1681 = vmatpush1.msra.mxu0 0.0
    %1682 = vmatprep.subr.mxu0 0.0
    %1683 = vmatpush1.msra.mxu0 0.0
    %1684 = vmatprep.subr.mxu0 0.0
    %1685 = vmatpush1.msra.mxu0 0.0
    %1686 = vmatprep.subr.mxu0 0.0
    %1687 = vmatpush1.msra.mxu0 0.0
    %1688 = vmatprep.subr.mxu0 0.0
    %1689 = vmatpush1.msra.mxu0 0.0
    %1690 = vmatprep.subr.mxu0 0.0
    %1691 = vmatpush1.msra.mxu0 0.0
    %1692 = vmatprep.subr.mxu0 0.0
    %1693 = vmatpush1.msra.mxu0 0.0
    %1694 = vmatprep.subr.mxu0 0.0
    %1695 = vmatpush1.msra.mxu0 0.0
    %1696 = vmatprep.subr.mxu0 0.0
    %1697 = vmatpush1.msra.mxu0 0.0
    %1698 = vmatprep.subr.mxu0 0.0
    %1699 = vmatpush1.msra.mxu0 0.0
    %1700 = vmatprep.subr.mxu0 0.0
    %1701 = vmatpush1.msra.mxu0 0.0
    %1702 = vmatprep.subr.mxu0 0.0
    %1703 = vmatpush1.msra.mxu0 0.0
    %1704 = vmatprep.subr.mxu0 0.0
    %1705 = vmatpush1.msra.mxu0 0.0
    %1706 = vmatprep.subr.mxu0 0.0
    %1707 = vmatpush1.msra.mxu0 0.0
    %1708 = vmatprep.subr.mxu0 0.0
    %1709 = vmatpush1.msra.mxu0 %v76
    %1710 = vmatprep.subr.mxu0 0.0
    %1711 = vmatpush2.msra.mxu0 0.0
    %1712 = vmatprep.subr.mxu0 0.0
    %1713 = vmatpush2.msra.mxu0 0.0
    %1714 = vmatprep.subr.mxu0 0.0
    %1715 = vmatpush2.msra.mxu0 0.0
    %1716 = vmatprep.subr.mxu0 0.0
    %1717 = vmatpush2.msra.mxu0 0.0
    %1718 = vmatprep.subr.mxu0 0.0
    %1719 = vmatpush2.msra.mxu0 0.0
    %1720 = vmatprep.subr.mxu0 0.0
    %1721 = vmatpush2.msra.mxu0 0.0
    %1722 = vmatprep.subr.mxu0 0.0
    %1723 = vmatpush2.msra.mxu0 0.0
    %1724 = vmatprep.subr.mxu0 0.0
    %1725 = vmatpush2.msra.mxu0 0.0
    %1726 = vmatprep.subr.mxu0 0.0
    %1727 = vmatpush2.msra.mxu0 0.0
    %1728 = vmatprep.subr.mxu0 0.0
    %1729 = vmatpush2.msra.mxu0 0.0
    %1730 = vmatprep.subr.mxu0 0.0
    %1731 = vmatpush2.msra.mxu0 0.0
    %1732 = vmatprep.subr.mxu0 0.0
    %1733 = vmatpush2.msra.mxu0 0.0
    %1734 = vmatprep.subr.mxu0 0.0
    %1735 = vmatpush2.msra.mxu0 0.0
    %1736 = vmatprep.subr.mxu0 0.0
    %1737 = vmatpush2.msra.mxu0 0.0
    %1738 = vmatprep.subr.mxu0 0.0
    %1739 = vmatpush2.msra.mxu0 0.0
    %1740 = vmatprep.subr.mxu0 0.0
    %1741 = vmatpush2.msra.mxu0 0.0
    %1742 = vmatprep.mubr.f32.mxu0 0.0
    %1743 = vmatmul.mubr.f32.gmra.mxu0 %v1676
    %v1744 = vpop.f32.mrf.mxu0
    %v1745 = vadd.f32 0.0, %v1744
    %v1746 = vpop.f32.mrf.mxu0
    %1747 = vdwg.mxu0
    %v1749 = vsel %vm1026, %v1526, 0
    %1751 = vmatprep.subr.mxu0 0.0
    %1752 = vmatpush1.msra.mxu0 0.0
    %1753 = vmatprep.subr.mxu0 0.0
    %1754 = vmatpush1.msra.mxu0 0.0
    %1755 = vmatprep.subr.mxu0 0.0
    %1756 = vmatpush1.msra.mxu0 0.0
    %1757 = vmatprep.subr.mxu0 0.0
    %1758 = vmatpush1.msra.mxu0 0.0
    %1759 = vmatprep.subr.mxu0 0.0
    %1760 = vmatpush1.msra.mxu0 0.0
    %1761 = vmatprep.subr.mxu0 0.0
    %1762 = vmatpush1.msra.mxu0 0.0
    %1763 = vmatprep.subr.mxu0 0.0
    %1764 = vmatpush1.msra.mxu0 0.0
    %1765 = vmatprep.subr.mxu0 0.0
    %1766 = vmatpush1.msra.mxu0 0.0
    %1767 = vmatprep.subr.mxu0 0.0
    %1768 = vmatpush1.msra.mxu0 0.0
    %1769 = vmatprep.subr.mxu0 0.0
    %1770 = vmatpush1.msra.mxu0 0.0
    %1771 = vmatprep.subr.mxu0 0.0
    %1772 = vmatpush1.msra.mxu0 0.0
    %1773 = vmatprep.subr.mxu0 0.0
    %1774 = vmatpush1.msra.mxu0 0.0
    %1775 = vmatprep.subr.mxu0 0.0
    %1776 = vmatpush1.msra.mxu0 0.0
    %1777 = vmatprep.subr.mxu0 0.0
    %1778 = vmatpush1.msra.mxu0 0.0
    %1779 = vmatprep.subr.mxu0 0.0
    %1780 = vmatpush1.msra.mxu0 0.0
    %1781 = vmatprep.subr.mxu0 0.0
    %1782 = vmatpush1.msra.mxu0 %v77
    %1783 = vmatprep.subr.mxu0 0.0
    %1784 = vmatpush2.msra.mxu0 0.0
    %1785 = vmatprep.subr.mxu0 0.0
    %1786 = vmatpush2.msra.mxu0 0.0
    %1787 = vmatprep.subr.mxu0 0.0
    %1788 = vmatpush2.msra.mxu0 0.0
    %1789 = vmatprep.subr.mxu0 0.0
    %1790 = vmatpush2.msra.mxu0 0.0
    %1791 = vmatprep.subr.mxu0 0.0
    %1792 = vmatpush2.msra.mxu0 0.0
    %1793 = vmatprep.subr.mxu0 0.0
    %1794 = vmatpush2.msra.mxu0 0.0
    %1795 = vmatprep.subr.mxu0 0.0
    %1796 = vmatpush2.msra.mxu0 0.0
    %1797 = vmatprep.subr.mxu0 0.0
    %1798 = vmatpush2.msra.mxu0 0.0
    %1799 = vmatprep.subr.mxu0 0.0
    %1800 = vmatpush2.msra.mxu0 0.0
    %1801 = vmatprep.subr.mxu0 0.0
    %1802 = vmatpush2.msra.mxu0 0.0
    %1803 = vmatprep.subr.mxu0 0.0
    %1804 = vmatpush2.msra.mxu0 0.0
    %1805 = vmatprep.subr.mxu0 0.0
    %1806 = vmatpush2.msra.mxu0 0.0
    %1807 = vmatprep.subr.mxu0 0.0
    %1808 = vmatpush2.msra.mxu0 0.0
    %1809 = vmatprep.subr.mxu0 0.0
    %1810 = vmatpush2.msra.mxu0 0.0
    %1811 = vmatprep.subr.mxu0 0.0
    %1812 = vmatpush2.msra.mxu0 0.0
    %1813 = vmatprep.subr.mxu0 0.0
    %1814 = vmatpush2.msra.mxu0 0.0
    %1815 = vmatprep.mubr.f32.mxu0 0.0
    %1816 = vmatmul.mubr.f32.gmra.mxu0 %v1749
    %v1817 = vpop.f32.mrf.mxu0
    %v1818 = vadd.f32 0.0, %v1817
    %v1819 = vpop.f32.mrf.mxu0
    %1820 = vdwg.mxu0
    %v1822 = vsel %vm1026, %v1599, 0
    %1824 = vmatprep.subr.mxu0 0.0
    %1825 = vmatpush1.msra.mxu0 0.0
    %1826 = vmatprep.subr.mxu0 0.0
    %1827 = vmatpush1.msra.mxu0 0.0
    %1828 = vmatprep.subr.mxu0 0.0
    %1829 = vmatpush1.msra.mxu0 0.0
    %1830 = vmatprep.subr.mxu0 0.0
    %1831 = vmatpush1.msra.mxu0 0.0
    %1832 = vmatprep.subr.mxu0 0.0
    %1833 = vmatpush1.msra.mxu0 0.0
    %1834 = vmatprep.subr.mxu0 0.0
    %1835 = vmatpush1.msra.mxu0 0.0
    %1836 = vmatprep.subr.mxu0 0.0
    %1837 = vmatpush1.msra.mxu0 0.0
    %1838 = vmatprep.subr.mxu0 0.0
    %1839 = vmatpush1.msra.mxu0 0.0
    %1840 = vmatprep.subr.mxu0 0.0
    %1841 = vmatpush1.msra.mxu0 0.0
    %1842 = vmatprep.subr.mxu0 0.0
    %1843 = vmatpush1.msra.mxu0 0.0
    %1844 = vmatprep.subr.mxu0 0.0
    %1845 = vmatpush1.msra.mxu0 0.0
    %1846 = vmatprep.subr.mxu0 0.0
    %1847 = vmatpush1.msra.mxu0 0.0
    %1848 = vmatprep.subr.mxu0 0.0
    %1849 = vmatpush1.msra.mxu0 0.0
    %1850 = vmatprep.subr.mxu0 0.0
    %1851 = vmatpush1.msra.mxu0 0.0
    %1852 = vmatprep.subr.mxu0 0.0
    %1853 = vmatpush1.msra.mxu0 0.0
    %1854 = vmatprep.subr.mxu0 0.0
    %1855 = vmatpush1.msra.mxu0 %v78
    %1856 = vmatprep.subr.mxu0 0.0
    %1857 = vmatpush2.msra.mxu0 0.0
    %1858 = vmatprep.subr.mxu0 0.0
    %1859 = vmatpush2.msra.mxu0 0.0
    %1860 = vmatprep.subr.mxu0 0.0
    %1861 = vmatpush2.msra.mxu0 0.0
    %1862 = vmatprep.subr.mxu0 0.0
    %1863 = vmatpush2.msra.mxu0 0.0
    %1864 = vmatprep.subr.mxu0 0.0
    %1865 = vmatpush2.msra.mxu0 0.0
    %1866 = vmatprep.subr.mxu0 0.0
    %1867 = vmatpush2.msra.mxu0 0.0
    %1868 = vmatprep.subr.mxu0 0.0
    %1869 = vmatpush2.msra.mxu0 0.0
    %1870 = vmatprep.subr.mxu0 0.0
    %1871 = vmatpush2.msra.mxu0 0.0
    %1872 = vmatprep.subr.mxu0 0.0
    %1873 = vmatpush2.msra.mxu0 0.0
    %1874 = vmatprep.subr.mxu0 0.0
    %1875 = vmatpush2.msra.mxu0 0.0
    %1876 = vmatprep.subr.mxu0 0.0
    %1877 = vmatpush2.msra.mxu0 0.0
    %1878 = vmatprep.subr.mxu0 0.0
    %1879 = vmatpush2.msra.mxu0 0.0
    %1880 = vmatprep.subr.mxu0 0.0
    %1881 = vmatpush2.msra.mxu0 0.0
    %1882 = vmatprep.subr.mxu0 0.0
    %1883 = vmatpush2.msra.mxu0 0.0
    %1884 = vmatprep.subr.mxu0 0.0
    %1885 = vmatpush2.msra.mxu0 0.0
    %1886 = vmatprep.subr.mxu0 0.0
    %1887 = vmatpush2.msra.mxu0 0.0
    %1888 = vmatprep.mubr.f32.mxu0 0.0
    %1889 = vmatmul.mubr.f32.gmra.mxu0 %v1822
    %v1890 = vpop.f32.mrf.mxu0
    %v1891 = vadd.f32 0.0, %v1890
    %v1892 = vpop.f32.mrf.mxu0
    %1893 = vdwg.mxu0
    %v1895 = vsel %vm1026, %v1672, 0
    %1897 = vmatprep.subr.mxu0 0.0
    %1898 = vmatpush1.msra.mxu0 0.0
    %1899 = vmatprep.subr.mxu0 0.0
    %1900 = vmatpush1.msra.mxu0 0.0
    %1901 = vmatprep.subr.mxu0 0.0
    %1902 = vmatpush1.msra.mxu0 0.0
    %1903 = vmatprep.subr.mxu0 0.0
    %1904 = vmatpush1.msra.mxu0 0.0
    %1905 = vmatprep.subr.mxu0 0.0
    %1906 = vmatpush1.msra.mxu0 0.0
    %1907 = vmatprep.subr.mxu0 0.0
    %1908 = vmatpush1.msra.mxu0 0.0
    %1909 = vmatprep.subr.mxu0 0.0
    %1910 = vmatpush1.msra.mxu0 0.0
    %1911 = vmatprep.subr.mxu0 0.0
    %1912 = vmatpush1.msra.mxu0 0.0
    %1913 = vmatprep.subr.mxu0 0.0
    %1914 = vmatpush1.msra.mxu0 0.0
    %1915 = vmatprep.subr.mxu0 0.0
    %1916 = vmatpush1.msra.mxu0 0.0
    %1917 = vmatprep.subr.mxu0 0.0
    %1918 = vmatpush1.msra.mxu0 0.0
    %1919 = vmatprep.subr.mxu0 0.0
    %1920 = vmatpush1.msra.mxu0 0.0
    %1921 = vmatprep.subr.mxu0 0.0
    %1922 = vmatpush1.msra.mxu0 0.0
    %1923 = vmatprep.subr.mxu0 0.0
    %1924 = vmatpush1.msra.mxu0 0.0
    %1925 = vmatprep.subr.mxu0 0.0
    %1926 = vmatpush1.msra.mxu0 0.0
    %1927 = vmatprep.subr.mxu0 0.0
    %1928 = vmatpush1.msra.mxu0 %v79
    %1929 = vmatprep.subr.mxu0 0.0
    %1930 = vmatpush2.msra.mxu0 0.0
    %1931 = vmatprep.subr.mxu0 0.0
    %1932 = vmatpush2.msra.mxu0 0.0
    %1933 = vmatprep.subr.mxu0 0.0
    %1934 = vmatpush2.msra.mxu0 0.0
    %1935 = vmatprep.subr.mxu0 0.0
    %1936 = vmatpush2.msra.mxu0 0.0
    %1937 = vmatprep.subr.mxu0 0.0
    %1938 = vmatpush2.msra.mxu0 0.0
    %1939 = vmatprep.subr.mxu0 0.0
    %1940 = vmatpush2.msra.mxu0 0.0
    %1941 = vmatprep.subr.mxu0 0.0
    %1942 = vmatpush2.msra.mxu0 0.0
    %1943 = vmatprep.subr.mxu0 0.0
    %1944 = vmatpush2.msra.mxu0 0.0
    %1945 = vmatprep.subr.mxu0 0.0
    %1946 = vmatpush2.msra.mxu0 0.0
    %1947 = vmatprep.subr.mxu0 0.0
    %1948 = vmatpush2.msra.mxu0 0.0
    %1949 = vmatprep.subr.mxu0 0.0
    %1950 = vmatpush2.msra.mxu0 0.0
    %1951 = vmatprep.subr.mxu0 0.0
    %1952 = vmatpush2.msra.mxu0 0.0
    %1953 = vmatprep.subr.mxu0 0.0
    %1954 = vmatpush2.msra.mxu0 0.0
    %1955 = vmatprep.subr.mxu0 0.0
    %1956 = vmatpush2.msra.mxu0 0.0
    %1957 = vmatprep.subr.mxu0 0.0
    %1958 = vmatpush2.msra.mxu0 0.0
    %1959 = vmatprep.subr.mxu0 0.0
    %1960 = vmatpush2.msra.mxu0 0.0
    %1961 = vmatprep.mubr.f32.mxu0 0.0
    %1962 = vmatmul.mubr.f32.gmra.mxu0 %v1895
    %v1963 = vpop.f32.mrf.mxu0
    %v1964 = vadd.f32 0.0, %v1963
    %v1965 = vpop.f32.mrf.mxu0
    %1966 = vdwg.mxu0
    %v1967 = vsel %vm88, %v1745, 0.0
    %v1968 = vsel %vm88, %v1818, 0.0
    %v1969 = vadd.f32 %v1967, %v1968
    %v1970 = vsel %vm88, %v1891, 0.0
    %v1971 = vadd.f32 %v1969, %v1970
    %v1972 = vsel %vm88, %v1964, 0.0
    %v1973 = vadd.f32 %v1971, %v1972
    %v1975 = vlaneseq
    %v1976 = vshrl.u32 %v1975, 7
    %v1977 = vsub.s32 0, %v1976
    %v1978 = vrot.slane %v1024, %v1977
    %v1980 = vadd.f32 %v1973, %v1978
    %v1981 = vstv %s1025
    %v1982 = vmul.f32 %v1980, %v1981
    %1983 = vst.msk [vmem:[#allocation3] sm:$0xff] %vm88, %v1982
    %v1985 = vsel %vm1026, %v167, 0
    %v1988 = vsel %vm1026, %v481, 0
    %1990 = vmatprep.subr.mxu0 0.0
    %1991 = vmatpush1.xpose.msra.mxu0 0.0
    %1992 = vmatprep.subr.mxu0 0.0
    %1993 = vmatpush1.xpose.msra.mxu0 0.0
    %1994 = vmatprep.subr.mxu0 0.0
    %1995 = vmatpush1.xpose.msra.mxu0 0.0
    %1996 = vmatprep.subr.mxu0 0.0
    %1997 = vmatpush1.xpose.msra.mxu0 0.0
    %1998 = vmatprep.subr.mxu0 0.0
    %1999 = vmatpush1.xpose.msra.mxu0 0.0
    %2000 = vmatprep.subr.mxu0 0.0
    %2001 = vmatpush1.xpose.msra.mxu0 0.0
    %2002 = vmatprep.subr.mxu0 0.0
    %2003 = vmatpush1.xpose.msra.mxu0 0.0
    %2004 = vmatprep.subr.mxu0 0.0
    %2005 = vmatpush1.xpose.msra.mxu0 0.0
    %2006 = vmatprep.subr.mxu0 0.0
    %2007 = vmatpush1.xpose.msra.mxu0 0.0
    %2008 = vmatprep.subr.mxu0 0.0
    %2009 = vmatpush1.xpose.msra.mxu0 0.0
    %2010 = vmatprep.subr.mxu0 0.0
    %2011 = vmatpush1.xpose.msra.mxu0 0.0
    %2012 = vmatprep.subr.mxu0 0.0
    %2013 = vmatpush1.xpose.msra.mxu0 0.0
    %2014 = vmatprep.subr.mxu0 0.0
    %2015 = vmatpush1.xpose.msra.mxu0 0.0
    %2016 = vmatprep.subr.mxu0 0.0
    %2017 = vmatpush1.xpose.msra.mxu0 0.0
    %2018 = vmatprep.subr.mxu0 0.0
    %2019 = vmatpush1.xpose.msra.mxu0 0.0
    %2020 = vmatprep.subr.mxu0 0.0
    %2021 = vmatpush1.xpose.msra.mxu0 %v1988
    %2022 = vmatprep.subr.mxu0 0.0
    %2023 = vmatpush2.xpose.msra.mxu0 0.0
    %2024 = vmatprep.subr.mxu0 0.0
    %2025 = vmatpush2.xpose.msra.mxu0 0.0
    %2026 = vmatprep.subr.mxu0 0.0
    %2027 = vmatpush2.xpose.msra.mxu0 0.0
    %2028 = vmatprep.subr.mxu0 0.0
    %2029 = vmatpush2.xpose.msra.mxu0 0.0
    %2030 = vmatprep.subr.mxu0 0.0
    %2031 = vmatpush2.xpose.msra.mxu0 0.0
    %2032 = vmatprep.subr.mxu0 0.0
    %2033 = vmatpush2.xpose.msra.mxu0 0.0
    %2034 = vmatprep.subr.mxu0 0.0
    %2035 = vmatpush2.xpose.msra.mxu0 0.0
    %2036 = vmatprep.subr.mxu0 0.0
    %2037 = vmatpush2.xpose.msra.mxu0 0.0
    %2038 = vmatprep.subr.mxu0 0.0
    %2039 = vmatpush2.xpose.msra.mxu0 0.0
    %2040 = vmatprep.subr.mxu0 0.0
    %2041 = vmatpush2.xpose.msra.mxu0 0.0
    %2042 = vmatprep.subr.mxu0 0.0
    %2043 = vmatpush2.xpose.msra.mxu0 0.0
    %2044 = vmatprep.subr.mxu0 0.0
    %2045 = vmatpush2.xpose.msra.mxu0 0.0
    %2046 = vmatprep.subr.mxu0 0.0
    %2047 = vmatpush2.xpose.msra.mxu0 0.0
    %2048 = vmatprep.subr.mxu0 0.0
    %2049 = vmatpush2.xpose.msra.mxu0 0.0
    %2050 = vmatprep.subr.mxu0 0.0
    %2051 = vmatpush2.xpose.msra.mxu0 0.0
    %2052 = vmatprep.subr.mxu0 0.0
    %2053 = vmatpush2.xpose.msra.mxu0 0.0
    %2054 = vmatprep.mubr.f32.mxu0 0.0
    %2055 = vmatmul.mubr.f32.gmra.mxu0 %v1985
    %v2056 = vpop.f32.mrf.mxu0
    %v2057 = vadd.f32 0.0, %v2056
    %v2058 = vpop.f32.mrf.mxu0
    %2059 = vdwg.mxu0
    %v2061 = vsel %vm1026, %v242, 0
    %v2064 = vsel %vm1026, %v556, 0
    %2066 = vmatprep.subr.mxu0 0.0
    %2067 = vmatpush1.xpose.msra.mxu0 0.0
    %2068 = vmatprep.subr.mxu0 0.0
    %2069 = vmatpush1.xpose.msra.mxu0 0.0
    %2070 = vmatprep.subr.mxu0 0.0
    %2071 = vmatpush1.xpose.msra.mxu0 0.0
    %2072 = vmatprep.subr.mxu0 0.0
    %2073 = vmatpush1.xpose.msra.mxu0 0.0
    %2074 = vmatprep.subr.mxu0 0.0
    %2075 = vmatpush1.xpose.msra.mxu0 0.0
    %2076 = vmatprep.subr.mxu0 0.0
    %2077 = vmatpush1.xpose.msra.mxu0 0.0
    %2078 = vmatprep.subr.mxu0 0.0
    %2079 = vmatpush1.xpose.msra.mxu0 0.0
    %2080 = vmatprep.subr.mxu0 0.0
    %2081 = vmatpush1.xpose.msra.mxu0 0.0
    %2082 = vmatprep.subr.mxu0 0.0
    %2083 = vmatpush1.xpose.msra.mxu0 0.0
    %2084 = vmatprep.subr.mxu0 0.0
    %2085 = vmatpush1.xpose.msra.mxu0 0.0
    %2086 = vmatprep.subr.mxu0 0.0
    %2087 = vmatpush1.xpose.msra.mxu0 0.0
    %2088 = vmatprep.subr.mxu0 0.0
    %2089 = vmatpush1.xpose.msra.mxu0 0.0
    %2090 = vmatprep.subr.mxu0 0.0
    %2091 = vmatpush1.xpose.msra.mxu0 0.0
    %2092 = vmatprep.subr.mxu0 0.0
    %2093 = vmatpush1.xpose.msra.mxu0 0.0
    %2094 = vmatprep.subr.mxu0 0.0
    %2095 = vmatpush1.xpose.msra.mxu0 0.0
    %2096 = vmatprep.subr.mxu0 0.0
    %2097 = vmatpush1.xpose.msra.mxu0 %v2064
    %2098 = vmatprep.subr.mxu0 0.0
    %2099 = vmatpush2.xpose.msra.mxu0 0.0
    %2100 = vmatprep.subr.mxu0 0.0
    %2101 = vmatpush2.xpose.msra.mxu0 0.0
    %2102 = vmatprep.subr.mxu0 0.0
    %2103 = vmatpush2.xpose.msra.mxu0 0.0
    %2104 = vmatprep.subr.mxu0 0.0
    %2105 = vmatpush2.xpose.msra.mxu0 0.0
    %2106 = vmatprep.subr.mxu0 0.0
    %2107 = vmatpush2.xpose.msra.mxu0 0.0
    %2108 = vmatprep.subr.mxu0 0.0
    %2109 = vmatpush2.xpose.msra.mxu0 0.0
    %2110 = vmatprep.subr.mxu0 0.0
    %2111 = vmatpush2.xpose.msra.mxu0 0.0
    %2112 = vmatprep.subr.mxu0 0.0
    %2113 = vmatpush2.xpose.msra.mxu0 0.0
    %2114 = vmatprep.subr.mxu0 0.0
    %2115 = vmatpush2.xpose.msra.mxu0 0.0
    %2116 = vmatprep.subr.mxu0 0.0
    %2117 = vmatpush2.xpose.msra.mxu0 0.0
    %2118 = vmatprep.subr.mxu0 0.0
    %2119 = vmatpush2.xpose.msra.mxu0 0.0
    %2120 = vmatprep.subr.mxu0 0.0
    %2121 = vmatpush2.xpose.msra.mxu0 0.0
    %2122 = vmatprep.subr.mxu0 0.0
    %2123 = vmatpush2.xpose.msra.mxu0 0.0
    %2124 = vmatprep.subr.mxu0 0.0
    %2125 = vmatpush2.xpose.msra.mxu0 0.0
    %2126 = vmatprep.subr.mxu0 0.0
    %2127 = vmatpush2.xpose.msra.mxu0 0.0
    %2128 = vmatprep.subr.mxu0 0.0
    %2129 = vmatpush2.xpose.msra.mxu0 0.0
    %2130 = vmatprep.mubr.f32.mxu0 0.0
    %2131 = vmatmul.mubr.f32.gmra.mxu0 %v2061
    %v2132 = vpop.f32.mrf.mxu0
    %v2133 = vadd.f32 0.0, %v2132
    %v2134 = vpop.f32.mrf.mxu0
    %2135 = vdwg.mxu0
    %v2137 = vsel %vm1026, %v317, 0
    %v2140 = vsel %vm1026, %v631, 0
    %2142 = vmatprep.subr.mxu0 0.0
    %2143 = vmatpush1.xpose.msra.mxu0 0.0
    %2144 = vmatprep.subr.mxu0 0.0
    %2145 = vmatpush1.xpose.msra.mxu0 0.0
    %2146 = vmatprep.subr.mxu0 0.0
    %2147 = vmatpush1.xpose.msra.mxu0 0.0
    %2148 = vmatprep.subr.mxu0 0.0
    %2149 = vmatpush1.xpose.msra.mxu0 0.0
    %2150 = vmatprep.subr.mxu0 0.0
    %2151 = vmatpush1.xpose.msra.mxu0 0.0
    %2152 = vmatprep.subr.mxu0 0.0
    %2153 = vmatpush1.xpose.msra.mxu0 0.0
    %2154 = vmatprep.subr.mxu0 0.0
    %2155 = vmatpush1.xpose.msra.mxu0 0.0
    %2156 = vmatprep.subr.mxu0 0.0
    %2157 = vmatpush1.xpose.msra.mxu0 0.0
    %2158 = vmatprep.subr.mxu0 0.0
    %2159 = vmatpush1.xpose.msra.mxu0 0.0
    %2160 = vmatprep.subr.mxu0 0.0
    %2161 = vmatpush1.xpose.msra.mxu0 0.0
    %2162 = vmatprep.subr.mxu0 0.0
    %2163 = vmatpush1.xpose.msra.mxu0 0.0
    %2164 = vmatprep.subr.mxu0 0.0
    %2165 = vmatpush1.xpose.msra.mxu0 0.0
    %2166 = vmatprep.subr.mxu0 0.0
    %2167 = vmatpush1.xpose.msra.mxu0 0.0
    %2168 = vmatprep.subr.mxu0 0.0
    %2169 = vmatpush1.xpose.msra.mxu0 0.0
    %2170 = vmatprep.subr.mxu0 0.0
    %2171 = vmatpush1.xpose.msra.mxu0 0.0
    %2172 = vmatprep.subr.mxu0 0.0
    %2173 = vmatpush1.xpose.msra.mxu0 %v2140
    %2174 = vmatprep.subr.mxu0 0.0
    %2175 = vmatpush2.xpose.msra.mxu0 0.0
    %2176 = vmatprep.subr.mxu0 0.0
    %2177 = vmatpush2.xpose.msra.mxu0 0.0
    %2178 = vmatprep.subr.mxu0 0.0
    %2179 = vmatpush2.xpose.msra.mxu0 0.0
    %2180 = vmatprep.subr.mxu0 0.0
    %2181 = vmatpush2.xpose.msra.mxu0 0.0
    %2182 = vmatprep.subr.mxu0 0.0
    %2183 = vmatpush2.xpose.msra.mxu0 0.0
    %2184 = vmatprep.subr.mxu0 0.0
    %2185 = vmatpush2.xpose.msra.mxu0 0.0
    %2186 = vmatprep.subr.mxu0 0.0
    %2187 = vmatpush2.xpose.msra.mxu0 0.0
    %2188 = vmatprep.subr.mxu0 0.0
    %2189 = vmatpush2.xpose.msra.mxu0 0.0
    %2190 = vmatprep.subr.mxu0 0.0
    %2191 = vmatpush2.xpose.msra.mxu0 0.0
    %2192 = vmatprep.subr.mxu0 0.0
    %2193 = vmatpush2.xpose.msra.mxu0 0.0
    %2194 = vmatprep.subr.mxu0 0.0
    %2195 = vmatpush2.xpose.msra.mxu0 0.0
    %2196 = vmatprep.subr.mxu0 0.0
    %2197 = vmatpush2.xpose.msra.mxu0 0.0
    %2198 = vmatprep.subr.mxu0 0.0
    %2199 = vmatpush2.xpose.msra.mxu0 0.0
    %2200 = vmatprep.subr.mxu0 0.0
    %2201 = vmatpush2.xpose.msra.mxu0 0.0
    %2202 = vmatprep.subr.mxu0 0.0
    %2203 = vmatpush2.xpose.msra.mxu0 0.0
    %2204 = vmatprep.subr.mxu0 0.0
    %2205 = vmatpush2.xpose.msra.mxu0 0.0
    %2206 = vmatprep.mubr.f32.mxu0 0.0
    %2207 = vmatmul.mubr.f32.gmra.mxu0 %v2137
    %v2208 = vpop.f32.mrf.mxu0
    %v2209 = vadd.f32 0.0, %v2208
    %v2210 = vpop.f32.mrf.mxu0
    %2211 = vdwg.mxu0
    %v2213 = vsel %vm1026, %v392, 0
    %v2216 = vsel %vm1026, %v706, 0
    %2218 = vmatprep.subr.mxu0 0.0
    %2219 = vmatpush1.xpose.msra.mxu0 0.0
    %2220 = vmatprep.subr.mxu0 0.0
    %2221 = vmatpush1.xpose.msra.mxu0 0.0
    %2222 = vmatprep.subr.mxu0 0.0
    %2223 = vmatpush1.xpose.msra.mxu0 0.0
    %2224 = vmatprep.subr.mxu0 0.0
    %2225 = vmatpush1.xpose.msra.mxu0 0.0
    %2226 = vmatprep.subr.mxu0 0.0
    %2227 = vmatpush1.xpose.msra.mxu0 0.0
    %2228 = vmatprep.subr.mxu0 0.0
    %2229 = vmatpush1.xpose.msra.mxu0 0.0
    %2230 = vmatprep.subr.mxu0 0.0
    %2231 = vmatpush1.xpose.msra.mxu0 0.0
    %2232 = vmatprep.subr.mxu0 0.0
    %2233 = vmatpush1.xpose.msra.mxu0 0.0
    %2234 = vmatprep.subr.mxu0 0.0
    %2235 = vmatpush1.xpose.msra.mxu0 0.0
    %2236 = vmatprep.subr.mxu0 0.0
    %2237 = vmatpush1.xpose.msra.mxu0 0.0
    %2238 = vmatprep.subr.mxu0 0.0
    %2239 = vmatpush1.xpose.msra.mxu0 0.0
    %2240 = vmatprep.subr.mxu0 0.0
    %2241 = vmatpush1.xpose.msra.mxu0 0.0
    %2242 = vmatprep.subr.mxu0 0.0
    %2243 = vmatpush1.xpose.msra.mxu0 0.0
    %2244 = vmatprep.subr.mxu0 0.0
    %2245 = vmatpush1.xpose.msra.mxu0 0.0
    %2246 = vmatprep.subr.mxu0 0.0
    %2247 = vmatpush1.xpose.msra.mxu0 0.0
    %2248 = vmatprep.subr.mxu0 0.0
    %2249 = vmatpush1.xpose.msra.mxu0 %v2216
    %2250 = vmatprep.subr.mxu0 0.0
    %2251 = vmatpush2.xpose.msra.mxu0 0.0
    %2252 = vmatprep.subr.mxu0 0.0
    %2253 = vmatpush2.xpose.msra.mxu0 0.0
    %2254 = vmatprep.subr.mxu0 0.0
    %2255 = vmatpush2.xpose.msra.mxu0 0.0
    %2256 = vmatprep.subr.mxu0 0.0
    %2257 = vmatpush2.xpose.msra.mxu0 0.0
    %2258 = vmatprep.subr.mxu0 0.0
    %2259 = vmatpush2.xpose.msra.mxu0 0.0
    %2260 = vmatprep.subr.mxu0 0.0
    %2261 = vmatpush2.xpose.msra.mxu0 0.0
    %2262 = vmatprep.subr.mxu0 0.0
    %2263 = vmatpush2.xpose.msra.mxu0 0.0
    %2264 = vmatprep.subr.mxu0 0.0
    %2265 = vmatpush2.xpose.msra.mxu0 0.0
    %2266 = vmatprep.subr.mxu0 0.0
    %2267 = vmatpush2.xpose.msra.mxu0 0.0
    %2268 = vmatprep.subr.mxu0 0.0
    %2269 = vmatpush2.xpose.msra.mxu0 0.0
    %2270 = vmatprep.subr.mxu0 0.0
    %2271 = vmatpush2.xpose.msra.mxu0 0.0
    %2272 = vmatprep.subr.mxu0 0.0
    %2273 = vmatpush2.xpose.msra.mxu0 0.0
    %2274 = vmatprep.subr.mxu0 0.0
    %2275 = vmatpush2.xpose.msra.mxu0 0.0
    %2276 = vmatprep.subr.mxu0 0.0
    %2277 = vmatpush2.xpose.msra.mxu0 0.0
    %2278 = vmatprep.subr.mxu0 0.0
    %2279 = vmatpush2.xpose.msra.mxu0 0.0
    %2280 = vmatprep.subr.mxu0 0.0
    %2281 = vmatpush2.xpose.msra.mxu0 0.0
    %2282 = vmatprep.mubr.f32.mxu0 0.0
    %2283 = vmatmul.mubr.f32.gmra.mxu0 %v2213
    %v2284 = vpop.f32.mrf.mxu0
    %v2285 = vadd.f32 0.0, %v2284
    %v2286 = vpop.f32.mrf.mxu0
    %2287 = vdwg.mxu0
    %v2288 = vmul.f32 %v2057, 0.35355338
    %v2289 = vmul.f32 %v2133, 0.35355338
    %v2290 = vmul.f32 %v2209, 0.35355338
    %v2291 = vmul.f32 %v2285, 0.35355338
    %v2292 = vadd.f32 %v2288, %v1023
    %v2293 = vadd.f32 %v2289, %v1023
    %v2294 = vadd.f32 %v2290, %v1023
    %v2295 = vadd.f32 %v2291, %v1023
    %v2296 = vsel %vm1026, %v2292, -inf
    %2297 = vmax.xlane.f32.xlu0 %v2296
    %v2298 = vpop.xlane.xlu0 %2297
    %v2299 = vsel %vm1026, %v2293, -inf
    %2300 = vmax.xlane.f32.xlu0 %v2299
    %v2301 = vpop.xlane.xlu0 %2300
    %v2302 = vsel %vm1026, %v2294, -inf
    %2303 = vmax.xlane.f32.xlu0 %v2302
    %v2304 = vpop.xlane.xlu0 %2303
    %v2305 = vsel %vm1026, %v2295, -inf
    %2306 = vmax.xlane.f32.xlu0 %v2305
    %v2307 = vpop.xlane.xlu0 %2306
    %v2308 = vsub.f32 %v2292, %v2298
    %v2309 = vsub.f32 %v2293, %v2301
    %v2310 = vsub.f32 %v2294, %v2304
    %v2311 = vsub.f32 %v2295, %v2307
    %v2312 = vmul.f32 %v2308, 1.442695
    %v2313 = vpow.pop %v2312
    %v2314 = vmul.f32 %v2309, 1.442695
    %v2315 = vpow.pop %v2314
    %v2316 = vmul.f32 %v2310, 1.442695
    %v2317 = vpow.pop %v2316
    %v2318 = vmul.f32 %v2311, 1.442695
    %v2319 = vpow.pop %v2318
    %v2320 = vsel %vm1026, %v2313, 0.0
    %2321 = vadd.xlane.f32.xlu0 %v2320
    %v2322 = vpop.xlane.xlu0 %2321
    %v2323 = vsel %vm1026, %v2315, 0.0
    %2324 = vadd.xlane.f32.xlu0 %v2323
    %v2325 = vpop.xlane.xlu0 %2324
    %v2326 = vsel %vm1026, %v2317, 0.0
    %2327 = vadd.xlane.f32.xlu0 %v2326
    %v2328 = vpop.xlane.xlu0 %2327
    %v2329 = vsel %vm1026, %v2319, 0.0
    %2330 = vadd.xlane.f32.xlu0 %v2329
    %v2331 = vpop.xlane.xlu0 %2330
    %v2332 = vrcp.pop %v2322
    %v2333 = vrcp.pop %v2325
    %v2334 = vrcp.pop %v2328
    %v2335 = vrcp.pop %v2331
    %v2336 = vmul.f32 %v2313, %v2332
    %v2337 = vmul.f32 %v2315, %v2333
    %v2338 = vmul.f32 %v2317, %v2334
    %v2339 = vmul.f32 %v2319, %v2335
    %v2341 = vsel %vm1026, %v2336, 0
    %2343 = vmatprep.subr.mxu0 0.0
    %2344 = vmatpush1.msra.mxu0 0.0
    %2345 = vmatprep.subr.mxu0 0.0
    %2346 = vmatpush1.msra.mxu0 0.0
    %2347 = vmatprep.subr.mxu0 0.0
    %2348 = vmatpush1.msra.mxu0 0.0
    %2349 = vmatprep.subr.mxu0 0.0
    %2350 = vmatpush1.msra.mxu0 0.0
    %2351 = vmatprep.subr.mxu0 0.0
    %2352 = vmatpush1.msra.mxu0 0.0
    %2353 = vmatprep.subr.mxu0 0.0
    %2354 = vmatpush1.msra.mxu0 0.0
    %2355 = vmatprep.subr.mxu0 0.0
    %2356 = vmatpush1.msra.mxu0 0.0
    %2357 = vmatprep.subr.mxu0 0.0
    %2358 = vmatpush1.msra.mxu0 0.0
    %2359 = vmatprep.subr.mxu0 0.0
    %2360 = vmatpush1.msra.mxu0 0.0
    %2361 = vmatprep.subr.mxu0 0.0
    %2362 = vmatpush1.msra.mxu0 0.0
    %2363 = vmatprep.subr.mxu0 0.0
    %2364 = vmatpush1.msra.mxu0 0.0
    %2365 = vmatprep.subr.mxu0 0.0
    %2366 = vmatpush1.msra.mxu0 0.0
    %2367 = vmatprep.subr.mxu0 0.0
    %2368 = vmatpush1.msra.mxu0 0.0
    %2369 = vmatprep.subr.mxu0 0.0
    %2370 = vmatpush1.msra.mxu0 0.0
    %2371 = vmatprep.subr.mxu0 0.0
    %2372 = vmatpush1.msra.mxu0 0.0
    %2373 = vmatprep.subr.mxu0 0.0
    %2374 = vmatpush1.msra.mxu0 %v795
    %2375 = vmatprep.subr.mxu0 0.0
    %2376 = vmatpush2.msra.mxu0 0.0
    %2377 = vmatprep.subr.mxu0 0.0
    %2378 = vmatpush2.msra.mxu0 0.0
    %2379 = vmatprep.subr.mxu0 0.0
    %2380 = vmatpush2.msra.mxu0 0.0
    %2381 = vmatprep.subr.mxu0 0.0
    %2382 = vmatpush2.msra.mxu0 0.0
    %2383 = vmatprep.subr.mxu0 0.0
    %2384 = vmatpush2.msra.mxu0 0.0
    %2385 = vmatprep.subr.mxu0 0.0
    %2386 = vmatpush2.msra.mxu0 0.0
    %2387 = vmatprep.subr.mxu0 0.0
    %2388 = vmatpush2.msra.mxu0 0.0
    %2389 = vmatprep.subr.mxu0 0.0
    %2390 = vmatpush2.msra.mxu0 0.0
    %2391 = vmatprep.subr.mxu0 0.0
    %2392 = vmatpush2.msra.mxu0 0.0
    %2393 = vmatprep.subr.mxu0 0.0
    %2394 = vmatpush2.msra.mxu0 0.0
    %2395 = vmatprep.subr.mxu0 0.0
    %2396 = vmatpush2.msra.mxu0 0.0
    %2397 = vmatprep.subr.mxu0 0.0
    %2398 = vmatpush2.msra.mxu0 0.0
    %2399 = vmatprep.subr.mxu0 0.0
    %2400 = vmatpush2.msra.mxu0 0.0
    %2401 = vmatprep.subr.mxu0 0.0
    %2402 = vmatpush2.msra.mxu0 0.0
    %2403 = vmatprep.subr.mxu0 0.0
    %2404 = vmatpush2.msra.mxu0 0.0
    %2405 = vmatprep.subr.mxu0 0.0
    %2406 = vmatpush2.msra.mxu0 0.0
    %2407 = vmatprep.mubr.f32.mxu0 0.0
    %2408 = vmatmul.mubr.f32.gmra.mxu0 %v2341
    %v2409 = vpop.f32.mrf.mxu0
    %v2410 = vadd.f32 0.0, %v2409
    %v2411 = vpop.f32.mrf.mxu0
    %2412 = vdwg.mxu0
    %v2414 = vsel %vm1026, %v2337, 0
    %2416 = vmatprep.subr.mxu0 0.0
    %2417 = vmatpush1.msra.mxu0 0.0
    %2418 = vmatprep.subr.mxu0 0.0
    %2419 = vmatpush1.msra.mxu0 0.0
    %2420 = vmatprep.subr.mxu0 0.0
    %2421 = vmatpush1.msra.mxu0 0.0
    %2422 = vmatprep.subr.mxu0 0.0
    %2423 = vmatpush1.msra.mxu0 0.0
    %2424 = vmatprep.subr.mxu0 0.0
    %2425 = vmatpush1.msra.mxu0 0.0
    %2426 = vmatprep.subr.mxu0 0.0
    %2427 = vmatpush1.msra.mxu0 0.0
    %2428 = vmatprep.subr.mxu0 0.0
    %2429 = vmatpush1.msra.mxu0 0.0
    %2430 = vmatprep.subr.mxu0 0.0
    %2431 = vmatpush1.msra.mxu0 0.0
    %2432 = vmatprep.subr.mxu0 0.0
    %2433 = vmatpush1.msra.mxu0 0.0
    %2434 = vmatprep.subr.mxu0 0.0
    %2435 = vmatpush1.msra.mxu0 0.0
    %2436 = vmatprep.subr.mxu0 0.0
    %2437 = vmatpush1.msra.mxu0 0.0
    %2438 = vmatprep.subr.mxu0 0.0
    %2439 = vmatpush1.msra.mxu0 0.0
    %2440 = vmatprep.subr.mxu0 0.0
    %2441 = vmatpush1.msra.mxu0 0.0
    %2442 = vmatprep.subr.mxu0 0.0
    %2443 = vmatpush1.msra.mxu0 0.0
    %2444 = vmatprep.subr.mxu0 0.0
    %2445 = vmatpush1.msra.mxu0 0.0
    %2446 = vmatprep.subr.mxu0 0.0
    %2447 = vmatpush1.msra.mxu0 %v870
    %2448 = vmatprep.subr.mxu0 0.0
    %2449 = vmatpush2.msra.mxu0 0.0
    %2450 = vmatprep.subr.mxu0 0.0
    %2451 = vmatpush2.msra.mxu0 0.0
    %2452 = vmatprep.subr.mxu0 0.0
    %2453 = vmatpush2.msra.mxu0 0.0
    %2454 = vmatprep.subr.mxu0 0.0
    %2455 = vmatpush2.msra.mxu0 0.0
    %2456 = vmatprep.subr.mxu0 0.0
    %2457 = vmatpush2.msra.mxu0 0.0
    %2458 = vmatprep.subr.mxu0 0.0
    %2459 = vmatpush2.msra.mxu0 0.0
    %2460 = vmatprep.subr.mxu0 0.0
    %2461 = vmatpush2.msra.mxu0 0.0
    %2462 = vmatprep.subr.mxu0 0.0
    %2463 = vmatpush2.msra.mxu0 0.0
    %2464 = vmatprep.subr.mxu0 0.0
    %2465 = vmatpush2.msra.mxu0 0.0
    %2466 = vmatprep.subr.mxu0 0.0
    %2467 = vmatpush2.msra.mxu0 0.0
    %2468 = vmatprep.subr.mxu0 0.0
    %2469 = vmatpush2.msra.mxu0 0.0
    %2470 = vmatprep.subr.mxu0 0.0
    %2471 = vmatpush2.msra.mxu0 0.0
    %2472 = vmatprep.subr.mxu0 0.0
    %2473 = vmatpush2.msra.mxu0 0.0
    %2474 = vmatprep.subr.mxu0 0.0
    %2475 = vmatpush2.msra.mxu0 0.0
    %2476 = vmatprep.subr.mxu0 0.0
    %2477 = vmatpush2.msra.mxu0 0.0
    %2478 = vmatprep.subr.mxu0 0.0
    %2479 = vmatpush2.msra.mxu0 0.0
    %2480 = vmatprep.mubr.f32.mxu0 0.0
    %2481 = vmatmul.mubr.f32.gmra.mxu0 %v2414
    %v2482 = vpop.f32.mrf.mxu0
    %v2483 = vadd.f32 0.0, %v2482
    %v2484 = vpop.f32.mrf.mxu0
    %2485 = vdwg.mxu0
    %v2487 = vsel %vm1026, %v2338, 0
    %2489 = vmatprep.subr.mxu0 0.0
    %2490 = vmatpush1.msra.mxu0 0.0
    %2491 = vmatprep.subr.mxu0 0.0
    %2492 = vmatpush1.msra.mxu0 0.0
    %2493 = vmatprep.subr.mxu0 0.0
    %2494 = vmatpush1.msra.mxu0 0.0
    %2495 = vmatprep.subr.mxu0 0.0
    %2496 = vmatpush1.msra.mxu0 0.0
    %2497 = vmatprep.subr.mxu0 0.0
    %2498 = vmatpush1.msra.mxu0 0.0
    %2499 = vmatprep.subr.mxu0 0.0
    %2500 = vmatpush1.msra.mxu0 0.0
    %2501 = vmatprep.subr.mxu0 0.0
    %2502 = vmatpush1.msra.mxu0 0.0
    %2503 = vmatprep.subr.mxu0 0.0
    %2504 = vmatpush1.msra.mxu0 0.0
    %2505 = vmatprep.subr.mxu0 0.0
    %2506 = vmatpush1.msra.mxu0 0.0
    %2507 = vmatprep.subr.mxu0 0.0
    %2508 = vmatpush1.msra.mxu0 0.0
    %2509 = vmatprep.subr.mxu0 0.0
    %2510 = vmatpush1.msra.mxu0 0.0
    %2511 = vmatprep.subr.mxu0 0.0
    %2512 = vmatpush1.msra.mxu0 0.0
    %2513 = vmatprep.subr.mxu0 0.0
    %2514 = vmatpush1.msra.mxu0 0.0
    %2515 = vmatprep.subr.mxu0 0.0
    %2516 = vmatpush1.msra.mxu0 0.0
    %2517 = vmatprep.subr.mxu0 0.0
    %2518 = vmatpush1.msra.mxu0 0.0
    %2519 = vmatprep.subr.mxu0 0.0
    %2520 = vmatpush1.msra.mxu0 %v945
    %2521 = vmatprep.subr.mxu0 0.0
    %2522 = vmatpush2.msra.mxu0 0.0
    %2523 = vmatprep.subr.mxu0 0.0
    %2524 = vmatpush2.msra.mxu0 0.0
    %2525 = vmatprep.subr.mxu0 0.0
    %2526 = vmatpush2.msra.mxu0 0.0
    %2527 = vmatprep.subr.mxu0 0.0
    %2528 = vmatpush2.msra.mxu0 0.0
    %2529 = vmatprep.subr.mxu0 0.0
    %2530 = vmatpush2.msra.mxu0 0.0
    %2531 = vmatprep.subr.mxu0 0.0
    %2532 = vmatpush2.msra.mxu0 0.0
    %2533 = vmatprep.subr.mxu0 0.0
    %2534 = vmatpush2.msra.mxu0 0.0
    %2535 = vmatprep.subr.mxu0 0.0
    %2536 = vmatpush2.msra.mxu0 0.0
    %2537 = vmatprep.subr.mxu0 0.0
    %2538 = vmatpush2.msra.mxu0 0.0
    %2539 = vmatprep.subr.mxu0 0.0
    %2540 = vmatpush2.msra.mxu0 0.0
    %2541 = vmatprep.subr.mxu0 0.0
    %2542 = vmatpush2.msra.mxu0 0.0
    %2543 = vmatprep.subr.mxu0 0.0
    %2544 = vmatpush2.msra.mxu0 0.0
    %2545 = vmatprep.subr.mxu0 0.0
    %2546 = vmatpush2.msra.mxu0 0.0
    %2547 = vmatprep.subr.mxu0 0.0
    %2548 = vmatpush2.msra.mxu0 0.0
    %2549 = vmatprep.subr.mxu0 0.0
    %2550 = vmatpush2.msra.mxu0 0.0
    %2551 = vmatprep.subr.mxu0 0.0
    %2552 = vmatpush2.msra.mxu0 0.0
    %2553 = vmatprep.mubr.f32.mxu0 0.0
    %2554 = vmatmul.mubr.f32.gmra.mxu0 %v2487
    %v2555 = vpop.f32.mrf.mxu0
    %v2556 = vadd.f32 0.0, %v2555
    %v2557 = vpop.f32.mrf.mxu0
    %2558 = vdwg.mxu0
    %v2560 = vsel %vm1026, %v2339, 0
    %2562 = vmatprep.subr.mxu0 0.0
    %2563 = vmatpush1.msra.mxu0 0.0
    %2564 = vmatprep.subr.mxu0 0.0
    %2565 = vmatpush1.msra.mxu0 0.0
    %2566 = vmatprep.subr.mxu0 0.0
    %2567 = vmatpush1.msra.mxu0 0.0
    %2568 = vmatprep.subr.mxu0 0.0
    %2569 = vmatpush1.msra.mxu0 0.0
    %2570 = vmatprep.subr.mxu0 0.0
    %2571 = vmatpush1.msra.mxu0 0.0
    %2572 = vmatprep.subr.mxu0 0.0
    %2573 = vmatpush1.msra.mxu0 0.0
    %2574 = vmatprep.subr.mxu0 0.0
    %2575 = vmatpush1.msra.mxu0 0.0
    %2576 = vmatprep.subr.mxu0 0.0
    %2577 = vmatpush1.msra.mxu0 0.0
    %2578 = vmatprep.subr.mxu0 0.0
    %2579 = vmatpush1.msra.mxu0 0.0
    %2580 = vmatprep.subr.mxu0 0.0
    %2581 = vmatpush1.msra.mxu0 0.0
    %2582 = vmatprep.subr.mxu0 0.0
    %2583 = vmatpush1.msra.mxu0 0.0
    %2584 = vmatprep.subr.mxu0 0.0
    %2585 = vmatpush1.msra.mxu0 0.0
    %2586 = vmatprep.subr.mxu0 0.0
    %2587 = vmatpush1.msra.mxu0 0.0
    %2588 = vmatprep.subr.mxu0 0.0
    %2589 = vmatpush1.msra.mxu0 0.0
    %2590 = vmatprep.subr.mxu0 0.0
    %2591 = vmatpush1.msra.mxu0 0.0
    %2592 = vmatprep.subr.mxu0 0.0
    %2593 = vmatpush1.msra.mxu0 %v1020
    %2594 = vmatprep.subr.mxu0 0.0
    %2595 = vmatpush2.msra.mxu0 0.0
    %2596 = vmatprep.subr.mxu0 0.0
    %2597 = vmatpush2.msra.mxu0 0.0
    %2598 = vmatprep.subr.mxu0 0.0
    %2599 = vmatpush2.msra.mxu0 0.0
    %2600 = vmatprep.subr.mxu0 0.0
    %2601 = vmatpush2.msra.mxu0 0.0
    %2602 = vmatprep.subr.mxu0 0.0
    %2603 = vmatpush2.msra.mxu0 0.0
    %2604 = vmatprep.subr.mxu0 0.0
    %2605 = vmatpush2.msra.mxu0 0.0
    %2606 = vmatprep.subr.mxu0 0.0
    %2607 = vmatpush2.msra.mxu0 0.0
    %2608 = vmatprep.subr.mxu0 0.0
    %2609 = vmatpush2.msra.mxu0 0.0
    %2610 = vmatprep.subr.mxu0 0.0
    %2611 = vmatpush2.msra.mxu0 0.0
    %2612 = vmatprep.subr.mxu0 0.0
    %2613 = vmatpush2.msra.mxu0 0.0
    %2614 = vmatprep.subr.mxu0 0.0
    %2615 = vmatpush2.msra.mxu0 0.0
    %2616 = vmatprep.subr.mxu0 0.0
    %2617 = vmatpush2.msra.mxu0 0.0
    %2618 = vmatprep.subr.mxu0 0.0
    %2619 = vmatpush2.msra.mxu0 0.0
    %2620 = vmatprep.subr.mxu0 0.0
    %2621 = vmatpush2.msra.mxu0 0.0
    %2622 = vmatprep.subr.mxu0 0.0
    %2623 = vmatpush2.msra.mxu0 0.0
    %2624 = vmatprep.subr.mxu0 0.0
    %2625 = vmatpush2.msra.mxu0 0.0
    %2626 = vmatprep.mubr.f32.mxu0 0.0
    %2627 = vmatmul.mubr.f32.gmra.mxu0 %v2560
    %v2628 = vpop.f32.mrf.mxu0
    %v2629 = vadd.f32 0.0, %v2628
    %v2630 = vpop.f32.mrf.mxu0
    %2631 = vdwg.mxu0
    %v2633 = vsel %vm1026, %v2410, 0
    %2635 = vmatprep.subr.mxu0 0.0
    %2636 = vmatpush1.msra.mxu0 0.0
    %2637 = vmatprep.subr.mxu0 0.0
    %2638 = vmatpush1.msra.mxu0 0.0
    %2639 = vmatprep.subr.mxu0 0.0
    %2640 = vmatpush1.msra.mxu0 0.0
    %2641 = vmatprep.subr.mxu0 0.0
    %2642 = vmatpush1.msra.mxu0 0.0
    %2643 = vmatprep.subr.mxu0 0.0
    %2644 = vmatpush1.msra.mxu0 0.0
    %2645 = vmatprep.subr.mxu0 0.0
    %2646 = vmatpush1.msra.mxu0 0.0
    %2647 = vmatprep.subr.mxu0 0.0
    %2648 = vmatpush1.msra.mxu0 0.0
    %2649 = vmatprep.subr.mxu0 0.0
    %2650 = vmatpush1.msra.mxu0 0.0
    %2651 = vmatprep.subr.mxu0 0.0
    %2652 = vmatpush1.msra.mxu0 0.0
    %2653 = vmatprep.subr.mxu0 0.0
    %2654 = vmatpush1.msra.mxu0 0.0
    %2655 = vmatprep.subr.mxu0 0.0
    %2656 = vmatpush1.msra.mxu0 0.0
    %2657 = vmatprep.subr.mxu0 0.0
    %2658 = vmatpush1.msra.mxu0 0.0
    %2659 = vmatprep.subr.mxu0 0.0
    %2660 = vmatpush1.msra.mxu0 0.0
    %2661 = vmatprep.subr.mxu0 0.0
    %2662 = vmatpush1.msra.mxu0 0.0
    %2663 = vmatprep.subr.mxu0 0.0
    %2664 = vmatpush1.msra.mxu0 0.0
    %2665 = vmatprep.subr.mxu0 0.0
    %2666 = vmatpush1.msra.mxu0 %v76
    %2667 = vmatprep.subr.mxu0 0.0
    %2668 = vmatpush2.msra.mxu0 0.0
    %2669 = vmatprep.subr.mxu0 0.0
    %2670 = vmatpush2.msra.mxu0 0.0
    %2671 = vmatprep.subr.mxu0 0.0
    %2672 = vmatpush2.msra.mxu0 0.0
    %2673 = vmatprep.subr.mxu0 0.0
    %2674 = vmatpush2.msra.mxu0 0.0
    %2675 = vmatprep.subr.mxu0 0.0
    %2676 = vmatpush2.msra.mxu0 0.0
    %2677 = vmatprep.subr.mxu0 0.0
    %2678 = vmatpush2.msra.mxu0 0.0
    %2679 = vmatprep.subr.mxu0 0.0
    %2680 = vmatpush2.msra.mxu0 0.0
    %2681 = vmatprep.subr.mxu0 0.0
    %2682 = vmatpush2.msra.mxu0 0.0
    %2683 = vmatprep.subr.mxu0 0.0
    %2684 = vmatpush2.msra.mxu0 0.0
    %2685 = vmatprep.subr.mxu0 0.0
    %2686 = vmatpush2.msra.mxu0 0.0
    %2687 = vmatprep.subr.mxu0 0.0
    %2688 = vmatpush2.msra.mxu0 0.0
    %2689 = vmatprep.subr.mxu0 0.0
    %2690 = vmatpush2.msra.mxu0 0.0
    %2691 = vmatprep.subr.mxu0 0.0
    %2692 = vmatpush2.msra.mxu0 0.0
    %2693 = vmatprep.subr.mxu0 0.0
    %2694 = vmatpush2.msra.mxu0 0.0
    %2695 = vmatprep.subr.mxu0 0.0
    %2696 = vmatpush2.msra.mxu0 0.0
    %2697 = vmatprep.subr.mxu0 0.0
    %2698 = vmatpush2.msra.mxu0 0.0
    %2699 = vmatprep.mubr.f32.mxu0 0.0
    %2700 = vmatmul.mubr.f32.gmra.mxu0 %v2633
    %v2701 = vpop.f32.mrf.mxu0
    %v2702 = vadd.f32 0.0, %v2701
    %v2703 = vpop.f32.mrf.mxu0
    %2704 = vdwg.mxu0
    %v2706 = vsel %vm1026, %v2483, 0
    %2708 = vmatprep.subr.mxu0 0.0
    %2709 = vmatpush1.msra.mxu0 0.0
    %2710 = vmatprep.subr.mxu0 0.0
    %2711 = vmatpush1.msra.mxu0 0.0
    %2712 = vmatprep.subr.mxu0 0.0
    %2713 = vmatpush1.msra.mxu0 0.0
    %2714 = vmatprep.subr.mxu0 0.0
    %2715 = vmatpush1.msra.mxu0 0.0
    %2716 = vmatprep.subr.mxu0 0.0
    %2717 = vmatpush1.msra.mxu0 0.0
    %2718 = vmatprep.subr.mxu0 0.0
    %2719 = vmatpush1.msra.mxu0 0.0
    %2720 = vmatprep.subr.mxu0 0.0
    %2721 = vmatpush1.msra.mxu0 0.0
    %2722 = vmatprep.subr.mxu0 0.0
    %2723 = vmatpush1.msra.mxu0 0.0
    %2724 = vmatprep.subr.mxu0 0.0
    %2725 = vmatpush1.msra.mxu0 0.0
    %2726 = vmatprep.subr.mxu0 0.0
    %2727 = vmatpush1.msra.mxu0 0.0
    %2728 = vmatprep.subr.mxu0 0.0
    %2729 = vmatpush1.msra.mxu0 0.0
    %2730 = vmatprep.subr.mxu0 0.0
    %2731 = vmatpush1.msra.mxu0 0.0
    %2732 = vmatprep.subr.mxu0 0.0
    %2733 = vmatpush1.msra.mxu0 0.0
    %2734 = vmatprep.subr.mxu0 0.0
    %2735 = vmatpush1.msra.mxu0 0.0
    %2736 = vmatprep.subr.mxu0 0.0
    %2737 = vmatpush1.msra.mxu0 0.0
    %2738 = vmatprep.subr.mxu0 0.0
    %2739 = vmatpush1.msra.mxu0 %v77
    %2740 = vmatprep.subr.mxu0 0.0
    %2741 = vmatpush2.msra.mxu0 0.0
    %2742 = vmatprep.subr.mxu0 0.0
    %2743 = vmatpush2.msra.mxu0 0.0
    %2744 = vmatprep.subr.mxu0 0.0
    %2745 = vmatpush2.msra.mxu0 0.0
    %2746 = vmatprep.subr.mxu0 0.0
    %2747 = vmatpush2.msra.mxu0 0.0
    %2748 = vmatprep.subr.mxu0 0.0
    %2749 = vmatpush2.msra.mxu0 0.0
    %2750 = vmatprep.subr.mxu0 0.0
    %2751 = vmatpush2.msra.mxu0 0.0
    %2752 = vmatprep.subr.mxu0 0.0
    %2753 = vmatpush2.msra.mxu0 0.0
    %2754 = vmatprep.subr.mxu0 0.0
    %2755 = vmatpush2.msra.mxu0 0.0
    %2756 = vmatprep.subr.mxu0 0.0
    %2757 = vmatpush2.msra.mxu0 0.0
    %2758 = vmatprep.subr.mxu0 0.0
    %2759 = vmatpush2.msra.mxu0 0.0
    %2760 = vmatprep.subr.mxu0 0.0
    %2761 = vmatpush2.msra.mxu0 0.0
    %2762 = vmatprep.subr.mxu0 0.0
    %2763 = vmatpush2.msra.mxu0 0.0
    %2764 = vmatprep.subr.mxu0 0.0
    %2765 = vmatpush2.msra.mxu0 0.0
    %2766 = vmatprep.subr.mxu0 0.0
    %2767 = vmatpush2.msra.mxu0 0.0
    %2768 = vmatprep.subr.mxu0 0.0
    %2769 = vmatpush2.msra.mxu0 0.0
    %2770 = vmatprep.subr.mxu0 0.0
    %2771 = vmatpush2.msra.mxu0 0.0
    %2772 = vmatprep.mubr.f32.mxu0 0.0
    %2773 = vmatmul.mubr.f32.gmra.mxu0 %v2706
    %v2774 = vpop.f32.mrf.mxu0
    %v2775 = vadd.f32 0.0, %v2774
    %v2776 = vpop.f32.mrf.mxu0
    %2777 = vdwg.mxu0
    %v2779 = vsel %vm1026, %v2556, 0
    %2781 = vmatprep.subr.mxu0 0.0
    %2782 = vmatpush1.msra.mxu0 0.0
    %2783 = vmatprep.subr.mxu0 0.0
    %2784 = vmatpush1.msra.mxu0 0.0
    %2785 = vmatprep.subr.mxu0 0.0
    %2786 = vmatpush1.msra.mxu0 0.0
    %2787 = vmatprep.subr.mxu0 0.0
    %2788 = vmatpush1.msra.mxu0 0.0
    %2789 = vmatprep.subr.mxu0 0.0
    %2790 = vmatpush1.msra.mxu0 0.0
    %2791 = vmatprep.subr.mxu0 0.0
    %2792 = vmatpush1.msra.mxu0 0.0
    %2793 = vmatprep.subr.mxu0 0.0
    %2794 = vmatpush1.msra.mxu0 0.0
    %2795 = vmatprep.subr.mxu0 0.0
    %2796 = vmatpush1.msra.mxu0 0.0
    %2797 = vmatprep.subr.mxu0 0.0
    %2798 = vmatpush1.msra.mxu0 0.0
    %2799 = vmatprep.subr.mxu0 0.0
    %2800 = vmatpush1.msra.mxu0 0.0
    %2801 = vmatprep.subr.mxu0 0.0
    %2802 = vmatpush1.msra.mxu0 0.0
    %2803 = vmatprep.subr.mxu0 0.0
    %2804 = vmatpush1.msra.mxu0 0.0
    %2805 = vmatprep.subr.mxu0 0.0
    %2806 = vmatpush1.msra.mxu0 0.0
    %2807 = vmatprep.subr.mxu0 0.0
    %2808 = vmatpush1.msra.mxu0 0.0
    %2809 = vmatprep.subr.mxu0 0.0
    %2810 = vmatpush1.msra.mxu0 0.0
    %2811 = vmatprep.subr.mxu0 0.0
    %2812 = vmatpush1.msra.mxu0 %v78
    %2813 = vmatprep.subr.mxu0 0.0
    %2814 = vmatpush2.msra.mxu0 0.0
    %2815 = vmatprep.subr.mxu0 0.0
    %2816 = vmatpush2.msra.mxu0 0.0
    %2817 = vmatprep.subr.mxu0 0.0
    %2818 = vmatpush2.msra.mxu0 0.0
    %2819 = vmatprep.subr.mxu0 0.0
    %2820 = vmatpush2.msra.mxu0 0.0
    %2821 = vmatprep.subr.mxu0 0.0
    %2822 = vmatpush2.msra.mxu0 0.0
    %2823 = vmatprep.subr.mxu0 0.0
    %2824 = vmatpush2.msra.mxu0 0.0
    %2825 = vmatprep.subr.mxu0 0.0
    %2826 = vmatpush2.msra.mxu0 0.0
    %2827 = vmatprep.subr.mxu0 0.0
    %2828 = vmatpush2.msra.mxu0 0.0
    %2829 = vmatprep.subr.mxu0 0.0
    %2830 = vmatpush2.msra.mxu0 0.0
    %2831 = vmatprep.subr.mxu0 0.0
    %2832 = vmatpush2.msra.mxu0 0.0
    %2833 = vmatprep.subr.mxu0 0.0
    %2834 = vmatpush2.msra.mxu0 0.0
    %2835 = vmatprep.subr.mxu0 0.0
    %2836 = vmatpush2.msra.mxu0 0.0
    %2837 = vmatprep.subr.mxu0 0.0
    %2838 = vmatpush2.msra.mxu0 0.0
    %2839 = vmatprep.subr.mxu0 0.0
    %2840 = vmatpush2.msra.mxu0 0.0
    %2841 = vmatprep.subr.mxu0 0.0
    %2842 = vmatpush2.msra.mxu0 0.0
    %2843 = vmatprep.subr.mxu0 0.0
    %2844 = vmatpush2.msra.mxu0 0.0
    %2845 = vmatprep.mubr.f32.mxu0 0.0
    %2846 = vmatmul.mubr.f32.gmra.mxu0 %v2779
    %v2847 = vpop.f32.mrf.mxu0
    %v2848 = vadd.f32 0.0, %v2847
    %v2849 = vpop.f32.mrf.mxu0
    %2850 = vdwg.mxu0
    %v2852 = vsel %vm1026, %v2629, 0
    %2854 = vmatprep.subr.mxu0 0.0
    %2855 = vmatpush1.msra.mxu0 0.0
    %2856 = vmatprep.subr.mxu0 0.0
    %2857 = vmatpush1.msra.mxu0 0.0
    %2858 = vmatprep.subr.mxu0 0.0
    %2859 = vmatpush1.msra.mxu0 0.0
    %2860 = vmatprep.subr.mxu0 0.0
    %2861 = vmatpush1.msra.mxu0 0.0
    %2862 = vmatprep.subr.mxu0 0.0
    %2863 = vmatpush1.msra.mxu0 0.0
    %2864 = vmatprep.subr.mxu0 0.0
    %2865 = vmatpush1.msra.mxu0 0.0
    %2866 = vmatprep.subr.mxu0 0.0
    %2867 = vmatpush1.msra.mxu0 0.0
    %2868 = vmatprep.subr.mxu0 0.0
    %2869 = vmatpush1.msra.mxu0 0.0
    %2870 = vmatprep.subr.mxu0 0.0
    %2871 = vmatpush1.msra.mxu0 0.0
    %2872 = vmatprep.subr.mxu0 0.0
    %2873 = vmatpush1.msra.mxu0 0.0
    %2874 = vmatprep.subr.mxu0 0.0
    %2875 = vmatpush1.msra.mxu0 0.0
    %2876 = vmatprep.subr.mxu0 0.0
    %2877 = vmatpush1.msra.mxu0 0.0
    %2878 = vmatprep.subr.mxu0 0.0
    %2879 = vmatpush1.msra.mxu0 0.0
    %2880 = vmatprep.subr.mxu0 0.0
    %2881 = vmatpush1.msra.mxu0 0.0
    %2882 = vmatprep.subr.mxu0 0.0
    %2883 = vmatpush1.msra.mxu0 0.0
    %2884 = vmatprep.subr.mxu0 0.0
    %2885 = vmatpush1.msra.mxu0 %v79
    %2886 = vmatprep.subr.mxu0 0.0
    %2887 = vmatpush2.msra.mxu0 0.0
    %2888 = vmatprep.subr.mxu0 0.0
    %2889 = vmatpush2.msra.mxu0 0.0
    %2890 = vmatprep.subr.mxu0 0.0
    %2891 = vmatpush2.msra.mxu0 0.0
    %2892 = vmatprep.subr.mxu0 0.0
    %2893 = vmatpush2.msra.mxu0 0.0
    %2894 = vmatprep.subr.mxu0 0.0
    %2895 = vmatpush2.msra.mxu0 0.0
    %2896 = vmatprep.subr.mxu0 0.0
    %2897 = vmatpush2.msra.mxu0 0.0
    %2898 = vmatprep.subr.mxu0 0.0
    %2899 = vmatpush2.msra.mxu0 0.0
    %2900 = vmatprep.subr.mxu0 0.0
    %2901 = vmatpush2.msra.mxu0 0.0
    %2902 = vmatprep.subr.mxu0 0.0
    %2903 = vmatpush2.msra.mxu0 0.0
    %2904 = vmatprep.subr.mxu0 0.0
    %2905 = vmatpush2.msra.mxu0 0.0
    %2906 = vmatprep.subr.mxu0 0.0
    %2907 = vmatpush2.msra.mxu0 0.0
    %2908 = vmatprep.subr.mxu0 0.0
    %2909 = vmatpush2.msra.mxu0 0.0
    %2910 = vmatprep.subr.mxu0 0.0
    %2911 = vmatpush2.msra.mxu0 0.0
    %2912 = vmatprep.subr.mxu0 0.0
    %2913 = vmatpush2.msra.mxu0 0.0
    %2914 = vmatprep.subr.mxu0 0.0
    %2915 = vmatpush2.msra.mxu0 0.0
    %2916 = vmatprep.subr.mxu0 0.0
    %2917 = vmatpush2.msra.mxu0 0.0
    %2918 = vmatprep.mubr.f32.mxu0 0.0
    %2919 = vmatmul.mubr.f32.gmra.mxu0 %v2852
    %v2920 = vpop.f32.mrf.mxu0
    %v2921 = vadd.f32 0.0, %v2920
    %v2922 = vpop.f32.mrf.mxu0
    %2923 = vdwg.mxu0
    %v2924 = vsel %vm88, %v2702, 0.0
    %v2925 = vsel %vm88, %v2775, 0.0
    %v2926 = vadd.f32 %v2924, %v2925
    %v2927 = vsel %vm88, %v2848, 0.0
    %v2928 = vadd.f32 %v2926, %v2927
    %v2929 = vsel %vm88, %v2921, 0.0
    %v2930 = vadd.f32 %v2928, %v2929
    %v2931 = vadd.f32 %v2930, %v1978
    %v2932 = vmul.f32 %v2931, %v1981
    %2933 = vst.msk [vmem:[#allocation3 + $0x8] sm:$0xff] %vm88, %v2932
    // Predicated region
    $region54: #{tpu_custom_call.1} parent=1 // pred_check
      _
    $region55: #{tpu_custom_call.1} parent=1 // pred_check_branch
      %2935 = sbr.rel (0) target = $region57
    $region56: #{tpu_custom_call.1} parent=1 // pred_region
      %s2937 = ssub.s32 256, 256
      %2938 = vsyncadd [#allocation4], %s2937
      %s2939 = sshll.u32 [#allocation3], 4
      %s2940 = int_to_ptr.vmem [resolvable:$true] %s2939
      %2945 = dma.vmem_to_hbm [thread:$0]  %s2940, 256, %s13, [#allocation4], 128, 128, 8
    $region57: #{tpu_custom_call.1} parent=1 // pred_fallthru
      _
    // Predicated region
    $region58: #{tpu_custom_call.1} parent=1 // pred_check
      _
    $region59: #{tpu_custom_call.1} parent=1 // pred_check_branch
      %2947 = sbr.rel (0) target = $region61
    $region60: #{tpu_custom_call.1} parent=1 // pred_region
      %2948 = dma.done [#allocation4], 256
    $region61: #{tpu_custom_call.1} parent=1 // pred_fallthru
      _
    %2949 = vsyncpa [#allocation4], 1

</llo_original>
